<compile_context>
chip_gen: v7x
topology: tpu7x:2x2x1
jax: 0.10.0
libtpu: 0.0.40
codegen_flags: <defaults>
</compile_context>

<pallas_src>
import functools

import jax
import jax.numpy as jnp
from jax.experimental import pallas as pl
from jax.experimental.pallas import tpu as pltpu

EPS = 1e-5
MXU_DTYPE = jnp.bfloat16      # MXU / patch dtype (accumulation stays float32)
INTER_DTYPE = jnp.bfloat16    # storage dtype of the layer-1 -> layer-2 activation


# ---------------------------------------------------------------------------
# Small static helpers (trace-time Python only)
# ---------------------------------------------------------------------------
def _vmem_limit_bytes():
    """~half of physical VMEM (64 MiB on v5e/v6e, 32 MiB on v7x); safe default."""
    try:
        cap = getattr(pltpu.get_tpu_info(), "vmem_capacity_bytes", None)
    except Exception:
        cap = None
    if not cap:
        return 32 * 1024 * 1024                       # fits every generation
    return int(min(max(cap // 2, 32 * 1024 * 1024), 100 * 1024 * 1024))


def _divisors(n):
    return [d for d in range(1, n + 1) if n % d == 0]


def _pick_band_rows(H, W, Cin, Cout, taps, x_bytes, y_bytes):
    """Largest divisor of H whose per-band working set fits ~half the VMEM limit."""
    budget = _vmem_limit_bytes() // 2
    fixed = 2 * 9 * Cin * Cout * 2 + 64 * Cout        # weights (x2 buf) + small vecs
    per_row = W * (2 * Cin * x_bytes                  # input band, double-buffered
                   + 2 * Cout * y_bytes               # output band, double-buffered
                   + Cin * 4                          # f32 halo scratch
                   + taps * Cin * 2                   # bf16 patch scratch
                   + Cout * 4)                        # f32 accumulator value
    max_rows = max((budget - fixed) // max(per_row, 1), 1)
    max_rows = min(max_rows, 512)                     # keep several grid steps pipelined
    divs = _divisors(H)
    cands = [d for d in divs if d <= max_rows]
    th = max(cands) if cands else divs[0]
    if th < 8:                                        # don't collapse the MXU M dim
        bigger = [d for d in divs if d >= 8]
        th = min(bigger) if bigger else H
    return th


def _pick_row_tile(R, row_bytes):
    """Row tile for the elementwise BN+ReLU pass over a (R, W*C) view."""
    target = max(min(_vmem_limit_bytes() // 4, 8 * 1024 * 1024) // max(row_bytes, 1), 8)
    divs8 = [d for d in _divisors(R) if d % 8 == 0]
    under = [d for d in divs8 if d <= target]
    if under:
        return max(under)
    if divs8:
        return min(divs8)
    return R                                          # full extent is always legal


# ---------------------------------------------------------------------------
# Kernel 1: [fused prev-layer BN-affine + ReLU] -> 3x3 conv (stride 1, pad 1)
#           + bias, plus per-(image, row-band) BatchNorm partial sums.
# ---------------------------------------------------------------------------
def _conv3x3_kernel(x_ref, halo_ref, w_ref, b_ref, scale_ref, shift_ref,
                    y_ref, s_ref, ss_ref, xp_ref, patch_ref, *,
                    apply_preact, n_dy_groups):
    # x_ref     : (1, TH, W, Cin)   raw band (pre-activation of prev layer)
    # halo_ref  : (1, 1, 2, W, Cin) raw rows just above / below the band
    # w_ref     : (9*Cin, Cout)     bf16 weights, rows ordered (ky, kx, ci)
    # b_ref     : (1, Cout)  f32;  scale/shift_ref: (1, Cin) prev-layer BN affine
    # y_ref     : (1, TH, W, Cout) conv output (pre-BN)
    # s_ref/ss_ref : (1, 1, 1, Cout) per-(image, band) partial sums
    # xp_ref    : (TH+2, W+2, Cin) f32 halo scratch
    # patch_ref : (TH*W, taps*Cin) bf16 im2col scratch (taps = 9 or 3)
    _, TH, W, Cout = y_ref.shape
    Cin = x_ref.shape[-1]
    taps = 9 // n_dy_groups
    h = pl.program_id(1)
    n_bands = pl.num_programs(1)

    def act(v):                       # previous layer's folded BN affine + ReLU
        v = v.astype(jnp.float32)
        if apply_preact:
            v = jnp.maximum(v * scale_ref[...] + shift_ref[...], 0.0)
        return v

    # Zero-padded halo in VMEM.  Only the border *columns* are re-zeroed each
    # step; every row (incl. the two halo rows) is fully overwritten below.
    xp_ref[:, 0:1, :] = jnp.zeros((TH + 2, 1, Cin), jnp.float32)
    xp_ref[:, W + 1:W + 2, :] = jnp.zeros((TH + 2, 1, Cin), jnp.float32)
    top = act(halo_ref[0, 0, 0])                       # row above the band
    bot = act(halo_ref[0, 0, 1])                       # row below the band
    top = jnp.where(h > 0, top, 0.0)                   # image boundary -> zeros
    bot = jnp.where(h < n_bands - 1, bot, 0.0)         # (zero-pad AFTER activation)
    xp_ref[0:1, 1:W + 1, :] = top[None]
    xp_ref[TH + 1:TH + 2, 1:W + 1, :] = bot[None]
    xp_ref[1:TH + 1, 1:W + 1, :] = act(x_ref[0])
    # TODO(synk): a bf16 halo scratch + pltpu.roll for the +/-1 W shifts would
    # halve the window-read bytes and move the shifts onto the idle XLU.

    # Single-pass bf16 im2col + MXU contraction.
    #   n_dy_groups == 1: one (TH*W, 9*Cin) patch, one dot   (small Cin)
    #   n_dy_groups == 3: per-dy (TH*W, 3*Cin) patch, 3 accumulated dots
    #                     (Cin >= 128: no 9x replication, MRB-friendly on v7x)
    acc = jnp.zeros((TH * W, Cout), jnp.float32)
    for g in range(n_dy_groups):
        for j in range(taps):
            dy, dx = (j // 3, j % 3) if n_dy_groups == 1 else (g, j)
            win = xp_ref[dy:dy + TH, dx:dx + W, :]            # (TH, W, Cin) f32
            patch_ref[:, j * Cin:(j + 1) * Cin] = (
                win.reshape(TH * W, Cin).astype(patch_ref.dtype))
        w_g = w_ref[g * taps * Cin:(g + 1) * taps * Cin, :]
        acc = acc + jnp.dot(patch_ref[...], w_g,
                            preferred_element_type=jnp.float32)
    acc = acc + b_ref[...]                                    # bias in f32

    y_ref[...] = acc.reshape(1, TH, W, Cout).astype(y_ref.dtype)
    # Per-(image, band) partials -> both grid axes stay "parallel".
    # TODO(synk): Welford/centered partials would avoid E[x^2]-E[x]^2
    # cancellation for very large N*H*W.
    s_ref[...] = jnp.sum(acc, axis=0, keepdims=True).reshape(1, 1, 1, Cout)
    ss_ref[...] = jnp.sum(acc * acc, axis=0, keepdims=True).reshape(1, 1, 1, Cout)


def conv3x3_bn_partials(x_nhwc, w_flat, b, scale_prev, shift_prev, *,
                        apply_preact, y_dtype, band_rows=None):
    N, H, W, Cin = x_nhwc.shape
    Cout = w_flat.shape[-1]
    n_dy_groups = 3 if Cin >= 128 else 1
    taps = 9 // n_dy_groups

    if band_rows is None:
        TH = _pick_band_rows(H, W, Cin, Cout, taps,
                             x_bytes=jnp.dtype(x_nhwc.dtype).itemsize,
                             y_bytes=jnp.dtype(y_dtype).itemsize)
    else:
        TH = max(d for d in _divisors(H) if d <= band_rows)
    Hb = H // TH

    # Raw halo rows for every band, gathered once in HBM (tiny: 2 rows / band).
    # Boundary rows are replaced with zeros in-kernel *after* the activation.
    starts = jnp.arange(Hb) * TH
    top_idx = jnp.clip(starts - 1, 0, H - 1)
    bot_idx = jnp.clip(starts + TH, 0, H - 1)
    halo = jnp.stack([x_nhwc[:, top_idx], x_nhwc[:, bot_idx]], axis=2)

    kernel = functools.partial(_conv3x3_kernel, apply_preact=apply_preact,
                               n_dy_groups=n_dy_groups)
    # TODO(synk): pipeline_mode=pl.Buffered(3) on the band input if the DMA is
    # exposed at small Cin/Cout; pad Cout to 128 (zero weight columns) when
    # 64 <= Cout < 128 to make the y stores lane-dense.
    y, s, ss = pl.pallas_call(
        kernel,
        out_shape=(jax.ShapeDtypeStruct((N, H, W, Cout), y_dtype),
                   jax.ShapeDtypeStruct((N, Hb, 1, Cout), jnp.float32),
                   jax.ShapeDtypeStruct((N, Hb, 1, Cout), jnp.float32)),
        grid=(N, Hb),
        in_specs=[pl.BlockSpec((1, TH, W, Cin), lambda n, h: (n, h, 0, 0)),
                  pl.BlockSpec((1, 1, 2, W, Cin), lambda n, h: (n, h, 0, 0, 0)),
                  pl.BlockSpec((9 * Cin, Cout), lambda n, h: (0, 0)),
                  pl.BlockSpec((1, Cout), lambda n, h: (0, 0)),
                  pl.BlockSpec((1, Cin), lambda n, h: (0, 0)),
                  pl.BlockSpec((1, Cin), lambda n, h: (0, 0))],
        out_specs=(pl.BlockSpec((1, TH, W, Cout), lambda n, h: (n, h, 0, 0)),
                   pl.BlockSpec((1, 1, 1, Cout), lambda n, h: (n, h, 0, 0)),
                   pl.BlockSpec((1, 1, 1, Cout), lambda n, h: (n, h, 0, 0))),
        scratch_shapes=[pltpu.VMEM((TH + 2, W + 2, Cin), jnp.float32),
                        pltpu.VMEM((TH * W, taps * Cin), MXU_DTYPE)],
        compiler_params=pltpu.CompilerParams(
            dimension_semantics=("parallel", "parallel"),
            vmem_limit_bytes=_vmem_limit_bytes()),
    )(x_nhwc, halo, w_flat, b.reshape(1, Cout),
      scale_prev.reshape(1, Cin), shift_prev.reshape(1, Cin))
    return y, jnp.sum(s, axis=(0, 1, 2)), jnp.sum(ss, axis=(0, 1, 2))


# ---------------------------------------------------------------------------
# Kernel 2: final BatchNorm affine + ReLU, on a lane-dense (N*H, W*C) view.
# ---------------------------------------------------------------------------
def _bn_relu_kernel(y_ref, scale_ref, shift_ref, o_ref):
    y = y_ref[...].astype(jnp.float32)
    o_ref[...] = jnp.maximum(y * scale_ref[...] + shift_ref[...], 0.0)


def bn_relu(y_nhwc, scale, shift):
    N, H, W, C = y_nhwc.shape
    WC = W * C
    R = N * H
    y2 = y_nhwc.reshape(R, WC)                      # free view: lane-dense rows
    scale_row = jnp.tile(scale, W).reshape(1, WC)   # per-channel, tiled along W
    shift_row = jnp.tile(shift, W).reshape(1, WC)
    TR = _pick_row_tile(R, WC * 4)                  # budget-based row tile
    out = pl.pallas_call(
        _bn_relu_kernel,
        out_shape=jax.ShapeDtypeStruct((R, WC), jnp.float32),
        grid=(R // TR,),
        in_specs=[pl.BlockSpec((TR, WC), lambda r: (r, 0)),
                  pl.BlockSpec((1, WC), lambda r: (0, 0)),
                  pl.BlockSpec((1, WC), lambda r: (0, 0))],
        out_specs=pl.BlockSpec((TR, WC), lambda r: (r, 0)),
        compiler_params=pltpu.CompilerParams(
            dimension_semantics=("parallel",),
            vmem_limit_bytes=_vmem_limit_bytes()),
    )(y2, scale_row, shift_row)
    return out.reshape(N, H, W, C)


# ---------------------------------------------------------------------------
# conv_block forward: [conv -> BN -> ReLU] x 2 (layer-1's BN+ReLU fused into
# layer-2's conv kernel; only layer-2's BN+ReLU runs as a separate pass).
# ---------------------------------------------------------------------------
def conv_block_forward(x_nchw, params, band_rows=None):
    x = jnp.transpose(x_nchw, (0, 2, 3, 1)).astype(jnp.float32)
    n_layers = len(params)
    scale = shift = None
    for li, (w, b, gamma, beta) in enumerate(params):
        Cin, Cout = x.shape[-1], w.shape[-1]
        w_flat = w.reshape(9 * Cin, Cout).astype(MXU_DTYPE)
        first, last = li == 0, li == n_layers - 1
        if first:                        # no previous BN+ReLU to fuse (dummy affine)
            scale = jnp.ones((Cin,), jnp.float32)
            shift = jnp.zeros((Cin,), jnp.float32)
        y, s, ss = conv3x3_bn_partials(
            x, w_flat, b, scale, shift, apply_preact=not first,
            y_dtype=jnp.float32 if last else INTER_DTYPE,
            band_rows=band_rows)
        # BatchNorm batch statistics (training-mode forward, biased variance)
        cnt = y.shape[0] * y.shape[1] * y.shape[2]
        mean = s / cnt
        var = jnp.maximum(ss / cnt - mean * mean, 0.0)
        scale = gamma / jnp.sqrt(var + EPS)
        shift = beta - mean * scale
        x = y
    out = bn_relu(x, scale, shift)                   # final BN + ReLU (lane-dense)
    return jnp.transpose(out, (0, 3, 1, 2))


# ---------------------------------------------------------------------------
# Pure-JAX reference (same bf16-at-MXU casting points, f32 elsewhere).
# ---------------------------------------------------------------------------
def ref_forward(x, params):
    x = x.astype(jnp.float32)
    for (w, b, gamma, beta) in params:
        w_oihw = jnp.transpose(w, (3, 2, 0, 1)).astype(MXU_DTYPE)
        y = jax.lax.conv_general_dilated(
            x.astype(MXU_DTYPE), w_oihw, (1, 1), ((1, 1), (1, 1)),
            dimension_numbers=("NCHW", "OIHW", "NCHW"),
            preferred_element_type=jnp.float32)
        y = y + b[None, :, None, None]
        mean = jnp.mean(y, axis=(0, 2, 3))
        var = jnp.var(y, axis=(0, 2, 3))
        y = (y - mean[None, :, None, None]) / jnp.sqrt(
            var[None, :, None, None] + EPS)
        y = y * gamma[None, :, None, None] + beta[None, :, None, None]
        x = jnp.maximum(y, 0.0)
    return x


def init_params(key, ch_in, ch_out):
    """Deterministic synthetic params: two (conv_w (HWIO), conv_b, gamma, beta)."""
    params = []
    cin = ch_in
    for _ in range(2):
        k_w, k_b, key = jax.random.split(key, 3)
        w = jax.random.normal(k_w, (3, 3, cin, ch_out), jnp.float32) * 0.1
        b = jax.random.normal(k_b, (ch_out,), jnp.float32) * 0.1
        gamma = jnp.ones((ch_out,), jnp.float32)      # BatchNorm2d default init
        beta = jnp.zeros((ch_out,), jnp.float32)
        params.append((w, b, gamma, beta))
        cin = ch_out
    return params


if __name__ == "__main__":
    key = jax.random.PRNGKey(0)
    k_x, k_p = jax.random.split(key)

    N, CH_IN, CH_OUT, H, W = 2, 4, 8, 16, 16
    x = jax.random.normal(k_x, (N, CH_IN, H, W), jnp.float32)
    params = init_params(k_p, CH_IN, CH_OUT)

    fwd = jax.jit(conv_block_forward, static_argnames=("band_rows",))
    out = jax.block_until_ready(fwd(x, params))                    # auto band size
    out_banded = jax.block_until_ready(fwd(x, params, band_rows=8))  # 2 bands/image
    ref = jax.block_until_ready(ref_forward(x, params))

    assert out.shape == (N, CH_OUT, H, W)
    # bf16 MXU inputs on both sides; the bf16-stored inter-layer activation adds
    # ~bf16-eps-level error on top, hence the slightly wider tolerance.
    err = float(jnp.max(jnp.abs(out - ref)))
    err_b = float(jnp.max(jnp.abs(out_banded - ref)))
    assert jnp.allclose(out, ref, rtol=2e-2, atol=2e-2), err
    assert jnp.allclose(out_banded, ref, rtol=2e-2, atol=2e-2), err_b
    # Band decomposition only reorders the f32 stat reduction -> near-identical.
    assert jnp.allclose(out, out_banded, rtol=1e-3, atol=1e-3)
    print("KERNEL_OK")
</pallas_src>

<mosaic_0001>
module attributes {stable_mosaic.version = 11 : i64} {
  func.func @_conv3x3_kernel(%arg0: i32, %arg1: i32, %arg2: memref<1x16x16x8xbf16, #tpu.memory_space<vmem>>, %arg3: memref<1x1x2x16x8xbf16, #tpu.memory_space<vmem>>, %arg4: memref<72x8xbf16, #tpu.memory_space<vmem>>, %arg5: memref<1x8xf32, #tpu.memory_space<vmem>>, %arg6: memref<1x8xf32, #tpu.memory_space<vmem>>, %arg7: memref<1x8xf32, #tpu.memory_space<vmem>>, %arg8: memref<1x16x16x8xf32, #tpu.memory_space<vmem>>, %arg9: memref<1x1x1x8xf32, #tpu.memory_space<vmem>>, %arg10: memref<1x1x1x8xf32, #tpu.memory_space<vmem>>, %arg11: memref<18x18x8xf32, #tpu.memory_space<vmem>>, %arg12: memref<256x72xbf16, #tpu.memory_space<vmem>>) attributes {dimension_semantics = [#tpu.dimension_semantics<parallel>, #tpu.dimension_semantics<parallel>], iteration_bounds = array<i64: 2, 1>, scalar_prefetch = 0 : i64, scratch_operands = 2 : i64, tpu.core_type = #tpu.core_type<tc>, window_params = [{transform_indices = @transform_0, window_bounds = array<i64: 1, 16, 16, 8>}, {transform_indices = @transform_1, window_bounds = array<i64: 1, 1, 2, 16, 8>}, {pipeline_mode = #tpu.pipeline_mode<synchronous>, transform_indices = @transform_2, window_bounds = array<i64: 72, 8>}, {pipeline_mode = #tpu.pipeline_mode<synchronous>, transform_indices = @transform_3, window_bounds = array<i64: 1, 8>}, {pipeline_mode = #tpu.pipeline_mode<synchronous>, transform_indices = @transform_4, window_bounds = array<i64: 1, 8>}, {pipeline_mode = #tpu.pipeline_mode<synchronous>, transform_indices = @transform_5, window_bounds = array<i64: 1, 8>}, {transform_indices = @transform_6, window_bounds = array<i64: 1, 16, 16, 8>}, {transform_indices = @transform_7, window_bounds = array<i64: 1, 1, 1, 8>}, {transform_indices = @transform_8, window_bounds = array<i64: 1, 1, 1, 8>}]} {
    %cst = arith.constant 0.000000e+00 : f32
    %0 = vector.broadcast %cst : f32 to vector<18x1x8xf32>
    %c0 = arith.constant 0 : index
    %c0_0 = arith.constant 0 : index
    %c0_1 = arith.constant 0 : index
    %1 = vector.load %arg11[%c0, %c0_0, %c0_1] : memref<18x18x8xf32, #tpu.memory_space<vmem>>, vector<18x1x8xf32>
    tpu.vector_store %arg11[%c0, %c0_0, %c0_1], %0 {strides = array<i32>} : memref<18x18x8xf32, #tpu.memory_space<vmem>>, vector<18x1x8xf32>,
    %cst_2 = arith.constant 0.000000e+00 : f32
    %2 = vector.broadcast %cst_2 : f32 to vector<18x1x8xf32>
    %c0_3 = arith.constant 0 : index
    %c17 = arith.constant 17 : index
    %c0_4 = arith.constant 0 : index
    %3 = vector.load %arg11[%c0_3, %c17, %c0_4] : memref<18x18x8xf32, #tpu.memory_space<vmem>>, vector<18x1x8xf32>
    tpu.vector_store %arg11[%c0_3, %c17, %c0_4], %2 {strides = array<i32>} : memref<18x18x8xf32, #tpu.memory_space<vmem>>, vector<18x1x8xf32>,
    %c0_5 = arith.constant 0 : index
    %c0_6 = arith.constant 0 : index
    %c0_7 = arith.constant 0 : index
    %c0_8 = arith.constant 0 : index
    %c0_9 = arith.constant 0 : index
    %4 = vector.load %arg3[%c0_5, %c0_6, %c0_7, %c0_8, %c0_9] : memref<1x1x2x16x8xbf16, #tpu.memory_space<vmem>>, vector<1x1x1x16x8xbf16>
    %5 = vector.shape_cast %4 : vector<1x1x1x16x8xbf16> to vector<16x8xbf16>
    %6 = arith.extf %5 : vector<16x8xbf16> to vector<16x8xf32>
    %c0_10 = arith.constant 0 : index
    %c0_11 = arith.constant 0 : index
    %7 = vector.load %arg6[%c0_10, %c0_11] : memref<1x8xf32, #tpu.memory_space<vmem>>, vector<1x8xf32>
    %8 = vector.broadcast %7 : vector<1x8xf32> to vector<16x8xf32>
    %9 = arith.mulf %6, %8 : vector<16x8xf32>
    %c0_12 = arith.constant 0 : index
    %c0_13 = arith.constant 0 : index
    %10 = vector.load %arg7[%c0_12, %c0_13] : memref<1x8xf32, #tpu.memory_space<vmem>>, vector<1x8xf32>
    %11 = vector.broadcast %10 : vector<1x8xf32> to vector<16x8xf32>
    %12 = arith.addf %9, %11 : vector<16x8xf32>
    %cst_14 = arith.constant 0.000000e+00 : f32
    %13 = vector.broadcast %cst_14 : f32 to vector<16x8xf32>
    %14 = arith.maximumf %12, %13 : vector<16x8xf32>
    %c0_15 = arith.constant 0 : index
    %c0_16 = arith.constant 0 : index
    %c1 = arith.constant 1 : index
    %c0_17 = arith.constant 0 : index
    %c0_18 = arith.constant 0 : index
    %15 = vector.load %arg3[%c0_15, %c0_16, %c1, %c0_17, %c0_18] : memref<1x1x2x16x8xbf16, #tpu.memory_space<vmem>>, vector<1x1x1x16x8xbf16>
    %16 = vector.shape_cast %15 : vector<1x1x1x16x8xbf16> to vector<16x8xbf16>
    %17 = arith.extf %16 : vector<16x8xbf16> to vector<16x8xf32>
    %c0_19 = arith.constant 0 : index
    %c0_20 = arith.constant 0 : index
    %18 = vector.load %arg6[%c0_19, %c0_20] : memref<1x8xf32, #tpu.memory_space<vmem>>, vector<1x8xf32>
    %19 = vector.broadcast %18 : vector<1x8xf32> to vector<16x8xf32>
    %20 = arith.mulf %17, %19 : vector<16x8xf32>
    %c0_21 = arith.constant 0 : index
    %c0_22 = arith.constant 0 : index
    %21 = vector.load %arg7[%c0_21, %c0_22] : memref<1x8xf32, #tpu.memory_space<vmem>>, vector<1x8xf32>
    %22 = vector.broadcast %21 : vector<1x8xf32> to vector<16x8xf32>
    %23 = arith.addf %20, %22 : vector<16x8xf32>
    %cst_23 = arith.constant 0.000000e+00 : f32
    %24 = vector.broadcast %cst_23 : f32 to vector<16x8xf32>
    %25 = arith.maximumf %23, %24 : vector<16x8xf32>
    %c0_i32 = arith.constant 0 : i32
    %26 = arith.cmpi sgt, %arg1, %c0_i32 : i32
    %cst_24 = arith.constant 0.000000e+00 : f32
    %27 = vector.broadcast %cst_24 : f32 to vector<16x8xf32>
    %28 = arith.select %26, %14, %27 : vector<16x8xf32>
    %c0_i32_25 = arith.constant 0 : i32
    %29 = arith.cmpi slt, %arg1, %c0_i32_25 : i32
    %cst_26 = arith.constant 0.000000e+00 : f32
    %30 = vector.broadcast %cst_26 : f32 to vector<16x8xf32>
    %31 = arith.select %29, %25, %30 : vector<16x8xf32>
    %32 = vector.shape_cast %28 : vector<16x8xf32> to vector<1x16x8xf32>
    %c0_27 = arith.constant 0 : index
    %c1_28 = arith.constant 1 : index
    %c0_29 = arith.constant 0 : index
    %33 = vector.load %arg11[%c0_27, %c1_28, %c0_29] : memref<18x18x8xf32, #tpu.memory_space<vmem>>, vector<1x16x8xf32>
    tpu.vector_store %arg11[%c0_27, %c1_28, %c0_29], %32 {strides = array<i32>} : memref<18x18x8xf32, #tpu.memory_space<vmem>>, vector<1x16x8xf32>,
    %34 = vector.shape_cast %31 : vector<16x8xf32> to vector<1x16x8xf32>
    %c17_30 = arith.constant 17 : index
    %c1_31 = arith.constant 1 : index
    %c0_32 = arith.constant 0 : index
    %35 = vector.load %arg11[%c17_30, %c1_31, %c0_32] : memref<18x18x8xf32, #tpu.memory_space<vmem>>, vector<1x16x8xf32>
    tpu.vector_store %arg11[%c17_30, %c1_31, %c0_32], %34 {strides = array<i32>} : memref<18x18x8xf32, #tpu.memory_space<vmem>>, vector<1x16x8xf32>,
    %c0_33 = arith.constant 0 : index
    %c0_34 = arith.constant 0 : index
    %c0_35 = arith.constant 0 : index
    %c0_36 = arith.constant 0 : index
    %36 = vector.load %arg2[%c0_33, %c0_34, %c0_35, %c0_36] : memref<1x16x16x8xbf16, #tpu.memory_space<vmem>>, vector<1x16x16x8xbf16>
    %37 = vector.shape_cast %36 : vector<1x16x16x8xbf16> to vector<16x16x8xbf16>
    %38 = arith.extf %37 : vector<16x16x8xbf16> to vector<16x16x8xf32>
    %c0_37 = arith.constant 0 : index
    %c0_38 = arith.constant 0 : index
    %39 = vector.load %arg6[%c0_37, %c0_38] : memref<1x8xf32, #tpu.memory_space<vmem>>, vector<1x8xf32>
    %40 = vector.shape_cast %39 : vector<1x8xf32> to vector<1x1x8xf32>
    %41 = vector.broadcast %40 : vector<1x1x8xf32> to vector<16x16x8xf32>
    %42 = arith.mulf %38, %41 : vector<16x16x8xf32>
    %c0_39 = arith.constant 0 : index
    %c0_40 = arith.constant 0 : index
    %43 = vector.load %arg7[%c0_39, %c0_40] : memref<1x8xf32, #tpu.memory_space<vmem>>, vector<1x8xf32>
    %44 = vector.shape_cast %43 : vector<1x8xf32> to vector<1x1x8xf32>
    %45 = vector.broadcast %44 : vector<1x1x8xf32> to vector<16x16x8xf32>
    %46 = arith.addf %42, %45 : vector<16x16x8xf32>
    %cst_41 = arith.constant 0.000000e+00 : f32
    %47 = vector.broadcast %cst_41 : f32 to vector<16x16x8xf32>
    %48 = arith.maximumf %46, %47 : vector<16x16x8xf32>
    %c1_42 = arith.constant 1 : index
    %c1_43 = arith.constant 1 : index
    %c0_44 = arith.constant 0 : index
    %49 = vector.load %arg11[%c1_42, %c1_43, %c0_44] : memref<18x18x8xf32, #tpu.memory_space<vmem>>, vector<16x16x8xf32>
    tpu.vector_store %arg11[%c1_42, %c1_43, %c0_44], %48 {strides = array<i32>} : memref<18x18x8xf32, #tpu.memory_space<vmem>>, vector<16x16x8xf32>,
    %cst_45 = arith.constant 0.000000e+00 : f32
    %50 = vector.broadcast %cst_45 : f32 to vector<256x8xf32>
    %c0_46 = arith.constant 0 : index
    %c0_47 = arith.constant 0 : index
    %c0_48 = arith.constant 0 : index
    %51 = vector.load %arg11[%c0_46, %c0_47, %c0_48] : memref<18x18x8xf32, #tpu.memory_space<vmem>>, vector<16x16x8xf32>
    %52 = vector.shape_cast %51 : vector<16x16x8xf32> to vector<256x8xf32>
    %53 = arith.truncf %52 : vector<256x8xf32> to vector<256x8xbf16>
    %c0_49 = arith.constant 0 : index
    %c0_50 = arith.constant 0 : index
    %54 = vector.load %arg12[%c0_49, %c0_50] : memref<256x72xbf16, #tpu.memory_space<vmem>>, vector<256x8xbf16>
    tpu.vector_store %arg12[%c0_49, %c0_50], %53 {strides = array<i32>} : memref<256x72xbf16, #tpu.memory_space<vmem>>, vector<256x8xbf16>,
    %c0_51 = arith.constant 0 : index
    %c1_52 = arith.constant 1 : index
    %c0_53 = arith.constant 0 : index
    %55 = vector.load %arg11[%c0_51, %c1_52, %c0_53] : memref<18x18x8xf32, #tpu.memory_space<vmem>>, vector<16x16x8xf32>
    %56 = vector.shape_cast %55 : vector<16x16x8xf32> to vector<256x8xf32>
    %57 = arith.truncf %56 : vector<256x8xf32> to vector<256x8xbf16>
    %c0_54 = arith.constant 0 : index
    %c8 = arith.constant 8 : index
    %58 = vector.load %arg12[%c0_54, %c8] : memref<256x72xbf16, #tpu.memory_space<vmem>>, vector<256x8xbf16>
    tpu.vector_store %arg12[%c0_54, %c8], %57 {strides = array<i32>} : memref<256x72xbf16, #tpu.memory_space<vmem>>, vector<256x8xbf16>,
    %c0_55 = arith.constant 0 : index
    %c2 = arith.constant 2 : index
    %c0_56 = arith.constant 0 : index
    %59 = vector.load %arg11[%c0_55, %c2, %c0_56] : memref<18x18x8xf32, #tpu.memory_space<vmem>>, vector<16x16x8xf32>
    %60 = vector.shape_cast %59 : vector<16x16x8xf32> to vector<256x8xf32>
    %61 = arith.truncf %60 : vector<256x8xf32> to vector<256x8xbf16>
    %c0_57 = arith.constant 0 : index
    %c16 = arith.constant 16 : index
    %62 = vector.load %arg12[%c0_57, %c16] : memref<256x72xbf16, #tpu.memory_space<vmem>>, vector<256x8xbf16>
    tpu.vector_store %arg12[%c0_57, %c16], %61 {strides = array<i32>} : memref<256x72xbf16, #tpu.memory_space<vmem>>, vector<256x8xbf16>,
    %c1_58 = arith.constant 1 : index
    %c0_59 = arith.constant 0 : index
    %c0_60 = arith.constant 0 : index
    %63 = vector.load %arg11[%c1_58, %c0_59, %c0_60] : memref<18x18x8xf32, #tpu.memory_space<vmem>>, vector<16x16x8xf32>
    %64 = vector.shape_cast %63 : vector<16x16x8xf32> to vector<256x8xf32>
    %65 = arith.truncf %64 : vector<256x8xf32> to vector<256x8xbf16>
    %c0_61 = arith.constant 0 : index
    %c24 = arith.constant 24 : index
    %66 = vector.load %arg12[%c0_61, %c24] : memref<256x72xbf16, #tpu.memory_space<vmem>>, vector<256x8xbf16>
    tpu.vector_store %arg12[%c0_61, %c24], %65 {strides = array<i32>} : memref<256x72xbf16, #tpu.memory_space<vmem>>, vector<256x8xbf16>,
    %c1_62 = arith.constant 1 : index
    %c1_63 = arith.constant 1 : index
    %c0_64 = arith.constant 0 : index
    %67 = vector.load %arg11[%c1_62, %c1_63, %c0_64] : memref<18x18x8xf32, #tpu.memory_space<vmem>>, vector<16x16x8xf32>
    %68 = vector.shape_cast %67 : vector<16x16x8xf32> to vector<256x8xf32>
    %69 = arith.truncf %68 : vector<256x8xf32> to vector<256x8xbf16>
    %c0_65 = arith.constant 0 : index
    %c32 = arith.constant 32 : index
    %70 = vector.load %arg12[%c0_65, %c32] : memref<256x72xbf16, #tpu.memory_space<vmem>>, vector<256x8xbf16>
    tpu.vector_store %arg12[%c0_65, %c32], %69 {strides = array<i32>} : memref<256x72xbf16, #tpu.memory_space<vmem>>, vector<256x8xbf16>,
    %c1_66 = arith.constant 1 : index
    %c2_67 = arith.constant 2 : index
    %c0_68 = arith.constant 0 : index
    %71 = vector.load %arg11[%c1_66, %c2_67, %c0_68] : memref<18x18x8xf32, #tpu.memory_space<vmem>>, vector<16x16x8xf32>
    %72 = vector.shape_cast %71 : vector<16x16x8xf32> to vector<256x8xf32>
    %73 = arith.truncf %72 : vector<256x8xf32> to vector<256x8xbf16>
    %c0_69 = arith.constant 0 : index
    %c40 = arith.constant 40 : index
    %74 = vector.load %arg12[%c0_69, %c40] : memref<256x72xbf16, #tpu.memory_space<vmem>>, vector<256x8xbf16>
    tpu.vector_store %arg12[%c0_69, %c40], %73 {strides = array<i32>} : memref<256x72xbf16, #tpu.memory_space<vmem>>, vector<256x8xbf16>,
    %c2_70 = arith.constant 2 : index
    %c0_71 = arith.constant 0 : index
    %c0_72 = arith.constant 0 : index
    %75 = vector.load %arg11[%c2_70, %c0_71, %c0_72] : memref<18x18x8xf32, #tpu.memory_space<vmem>>, vector<16x16x8xf32>
    %76 = vector.shape_cast %75 : vector<16x16x8xf32> to vector<256x8xf32>
    %77 = arith.truncf %76 : vector<256x8xf32> to vector<256x8xbf16>
    %c0_73 = arith.constant 0 : index
    %c48 = arith.constant 48 : index
    %78 = vector.load %arg12[%c0_73, %c48] : memref<256x72xbf16, #tpu.memory_space<vmem>>, vector<256x8xbf16>
    tpu.vector_store %arg12[%c0_73, %c48], %77 {strides = array<i32>} : memref<256x72xbf16, #tpu.memory_space<vmem>>, vector<256x8xbf16>,
    %c2_74 = arith.constant 2 : index
    %c1_75 = arith.constant 1 : index
    %c0_76 = arith.constant 0 : index
    %79 = vector.load %arg11[%c2_74, %c1_75, %c0_76] : memref<18x18x8xf32, #tpu.memory_space<vmem>>, vector<16x16x8xf32>
    %80 = vector.shape_cast %79 : vector<16x16x8xf32> to vector<256x8xf32>
    %81 = arith.truncf %80 : vector<256x8xf32> to vector<256x8xbf16>
    %c0_77 = arith.constant 0 : index
    %c56 = arith.constant 56 : index
    %82 = vector.load %arg12[%c0_77, %c56] : memref<256x72xbf16, #tpu.memory_space<vmem>>, vector<256x8xbf16>
    tpu.vector_store %arg12[%c0_77, %c56], %81 {strides = array<i32>} : memref<256x72xbf16, #tpu.memory_space<vmem>>, vector<256x8xbf16>,
    %c2_78 = arith.constant 2 : index
    %c2_79 = arith.constant 2 : index
    %c0_80 = arith.constant 0 : index
    %83 = vector.load %arg11[%c2_78, %c2_79, %c0_80] : memref<18x18x8xf32, #tpu.memory_space<vmem>>, vector<16x16x8xf32>
    %84 = vector.shape_cast %83 : vector<16x16x8xf32> to vector<256x8xf32>
    %85 = arith.truncf %84 : vector<256x8xf32> to vector<256x8xbf16>
    %c0_81 = arith.constant 0 : index
    %c64 = arith.constant 64 : index
    %86 = vector.load %arg12[%c0_81, %c64] : memref<256x72xbf16, #tpu.memory_space<vmem>>, vector<256x8xbf16>
    tpu.vector_store %arg12[%c0_81, %c64], %85 {strides = array<i32>} : memref<256x72xbf16, #tpu.memory_space<vmem>>, vector<256x8xbf16>,
    %c0_82 = arith.constant 0 : index
    %c0_83 = arith.constant 0 : index
    %87 = vector.load %arg4[%c0_82, %c0_83] : memref<72x8xbf16, #tpu.memory_space<vmem>>, vector<72x8xbf16>
    %c0_84 = arith.constant 0 : index
    %c0_85 = arith.constant 0 : index
    %88 = vector.load %arg12[%c0_84, %c0_85] : memref<256x72xbf16, #tpu.memory_space<vmem>>, vector<256x72xbf16>
    %cst_86 = arith.constant dense<0.000000e+00> : vector<256x8xf32>
    %89 = tpu.matmul %88, %87, %cst_86 {dimension_numbers = #tpu.dot_dimension_numbers<[1], [0], [0], [1], [0, 0, 1, 1], [], []>} : vector<256x72xbf16>, vector<72x8xbf16>, vector<256x8xf32> -> vector<256x8xf32>
    %90 = arith.addf %50, %89 : vector<256x8xf32>
    %c0_87 = arith.constant 0 : index
    %c0_88 = arith.constant 0 : index
    %91 = vector.load %arg5[%c0_87, %c0_88] : memref<1x8xf32, #tpu.memory_space<vmem>>, vector<1x8xf32>
    %92 = vector.broadcast %91 : vector<1x8xf32> to vector<256x8xf32>
    %93 = arith.addf %90, %92 : vector<256x8xf32>
    %94 = vector.shape_cast %93 : vector<256x8xf32> to vector<1x16x16x8xf32>
    %c0_89 = arith.constant 0 : index
    %c0_90 = arith.constant 0 : index
    %c0_91 = arith.constant 0 : index
    %c0_92 = arith.constant 0 : index
    %95 = vector.load %arg8[%c0_89, %c0_90, %c0_91, %c0_92] : memref<1x16x16x8xf32, #tpu.memory_space<vmem>>, vector<1x16x16x8xf32>
    tpu.vector_store %arg8[%c0_89, %c0_90, %c0_91, %c0_92], %94 {strides = array<i32>} : memref<1x16x16x8xf32, #tpu.memory_space<vmem>>, vector<1x16x16x8xf32>,
    %cst_93 = arith.constant dense<0.000000e+00> : vector<8xf32>
    %96 = vector.multi_reduction <add>, %93, %cst_93 [0] : vector<256x8xf32> to vector<8xf32>
    %97 = vector.shape_cast %96 : vector<8xf32> to vector<1x8xf32>
    %98 = vector.shape_cast %97 : vector<1x8xf32> to vector<1x1x1x8xf32>
    %c0_94 = arith.constant 0 : index
    %c0_95 = arith.constant 0 : index
    %c0_96 = arith.constant 0 : index
    %c0_97 = arith.constant 0 : index
    %99 = vector.load %arg9[%c0_94, %c0_95, %c0_96, %c0_97] : memref<1x1x1x8xf32, #tpu.memory_space<vmem>>, vector<1x1x1x8xf32>
    tpu.vector_store %arg9[%c0_94, %c0_95, %c0_96, %c0_97], %98 {strides = array<i32>} : memref<1x1x1x8xf32, #tpu.memory_space<vmem>>, vector<1x1x1x8xf32>,
    %100 = arith.mulf %93, %93 : vector<256x8xf32>
    %cst_98 = arith.constant dense<0.000000e+00> : vector<8xf32>
    %101 = vector.multi_reduction <add>, %100, %cst_98 [0] : vector<256x8xf32> to vector<8xf32>
    %102 = vector.shape_cast %101 : vector<8xf32> to vector<1x8xf32>
    %103 = vector.shape_cast %102 : vector<1x8xf32> to vector<1x1x1x8xf32>
    %c0_99 = arith.constant 0 : index
    %c0_100 = arith.constant 0 : index
    %c0_101 = arith.constant 0 : index
    %c0_102 = arith.constant 0 : index
    %104 = vector.load %arg10[%c0_99, %c0_100, %c0_101, %c0_102] : memref<1x1x1x8xf32, #tpu.memory_space<vmem>>, vector<1x1x1x8xf32>
    tpu.vector_store %arg10[%c0_99, %c0_100, %c0_101, %c0_102], %103 {strides = array<i32>} : memref<1x1x1x8xf32, #tpu.memory_space<vmem>>, vector<1x1x1x8xf32>,
    return
  }
  func.func @transform_0(%arg0: i32, %arg1: i32) -> (i32, i32, i32, i32) {
    %c0_i32 = arith.constant 0 : i32
    %c0_i32_0 = arith.constant 0 : i32
    %c0_i32_1 = arith.constant 0 : i32
    return %arg0, %arg1, %c0_i32, %c0_i32_0 : i32, i32, i32, i32
  }
  func.func @transform_1(%arg0: i32, %arg1: i32) -> (i32, i32, i32, i32, i32) {
    %c0_i32 = arith.constant 0 : i32
    %c0_i32_0 = arith.constant 0 : i32
    %c0_i32_1 = arith.constant 0 : i32
    %c0_i32_2 = arith.constant 0 : i32
    return %arg0, %arg1, %c0_i32, %c0_i32_0, %c0_i32_1 : i32, i32, i32, i32, i32
  }
  func.func @transform_2(%arg0: i32, %arg1: i32) -> (i32, i32) {
    %c0_i32 = arith.constant 0 : i32
    %c0_i32_0 = arith.constant 0 : i32
    %c0_i32_1 = arith.constant 0 : i32
    return %c0_i32, %c0_i32_0 : i32, i32
  }
  func.func @transform_3(%arg0: i32, %arg1: i32) -> (i32, i32) {
    %c0_i32 = arith.constant 0 : i32
    %c0_i32_0 = arith.constant 0 : i32
    %c0_i32_1 = arith.constant 0 : i32
    return %c0_i32, %c0_i32_0 : i32, i32
  }
  func.func @transform_4(%arg0: i32, %arg1: i32) -> (i32, i32) {
    %c0_i32 = arith.constant 0 : i32
    %c0_i32_0 = arith.constant 0 : i32
    %c0_i32_1 = arith.constant 0 : i32
    return %c0_i32, %c0_i32_0 : i32, i32
  }
  func.func @transform_5(%arg0: i32, %arg1: i32) -> (i32, i32) {
    %c0_i32 = arith.constant 0 : i32
    %c0_i32_0 = arith.constant 0 : i32
    %c0_i32_1 = arith.constant 0 : i32
    return %c0_i32, %c0_i32_0 : i32, i32
  }
  func.func @transform_6(%arg0: i32, %arg1: i32) -> (i32, i32, i32, i32) {
    %c0_i32 = arith.constant 0 : i32
    %c0_i32_0 = arith.constant 0 : i32
    %c0_i32_1 = arith.constant 0 : i32
    return %arg0, %arg1, %c0_i32, %c0_i32_0 : i32, i32, i32, i32
  }
  func.func @transform_7(%arg0: i32, %arg1: i32) -> (i32, i32, i32, i32) {
    %c0_i32 = arith.constant 0 : i32
    %c0_i32_0 = arith.constant 0 : i32
    %c0_i32_1 = arith.constant 0 : i32
    return %arg0, %arg1, %c0_i32, %c0_i32_0 : i32, i32, i32, i32
  }
  func.func @transform_8(%arg0: i32, %arg1: i32) -> (i32, i32, i32, i32) {
    %c0_i32 = arith.constant 0 : i32
    %c0_i32_0 = arith.constant 0 : i32
    %c0_i32_1 = arith.constant 0 : i32
    return %arg0, %arg1, %c0_i32, %c0_i32_0 : i32, i32, i32, i32
  }
}

module attributes {stable_mosaic.version = 11 : i64} {
  func.func @_conv3x3_kernel(%arg0: i32, %arg1: i32, %arg2: memref<1x16x16x4xf32, #tpu.memory_space<vmem>>, %arg3: memref<1x1x2x16x4xf32, #tpu.memory_space<vmem>>, %arg4: memref<36x8xbf16, #tpu.memory_space<vmem>>, %arg5: memref<1x8xf32, #tpu.memory_space<vmem>>, %arg6: memref<1x4xf32, #tpu.memory_space<vmem>>, %arg7: memref<1x4xf32, #tpu.memory_space<vmem>>, %arg8: memref<1x16x16x8xbf16, #tpu.memory_space<vmem>>, %arg9: memref<1x1x1x8xf32, #tpu.memory_space<vmem>>, %arg10: memref<1x1x1x8xf32, #tpu.memory_space<vmem>>, %arg11: memref<18x18x4xf32, #tpu.memory_space<vmem>>, %arg12: memref<256x36xbf16, #tpu.memory_space<vmem>>) attributes {dimension_semantics = [#tpu.dimension_semantics<parallel>, #tpu.dimension_semantics<parallel>], iteration_bounds = array<i64: 2, 1>, scalar_prefetch = 0 : i64, scratch_operands = 2 : i64, tpu.core_type = #tpu.core_type<tc>, window_params = [{transform_indices = @transform_0, window_bounds = array<i64: 1, 16, 16, 4>}, {transform_indices = @transform_1, window_bounds = array<i64: 1, 1, 2, 16, 4>}, {pipeline_mode = #tpu.pipeline_mode<synchronous>, transform_indices = @transform_2, window_bounds = array<i64: 36, 8>}, {pipeline_mode = #tpu.pipeline_mode<synchronous>, transform_indices = @transform_3, window_bounds = array<i64: 1, 8>}, {pipeline_mode = #tpu.pipeline_mode<synchronous>, transform_indices = @transform_4, window_bounds = array<i64: 1, 4>}, {pipeline_mode = #tpu.pipeline_mode<synchronous>, transform_indices = @transform_5, window_bounds = array<i64: 1, 4>}, {transform_indices = @transform_6, window_bounds = array<i64: 1, 16, 16, 8>}, {transform_indices = @transform_7, window_bounds = array<i64: 1, 1, 1, 8>}, {transform_indices = @transform_8, window_bounds = array<i64: 1, 1, 1, 8>}]} {
    %cst = arith.constant 0.000000e+00 : f32
    %0 = vector.broadcast %cst : f32 to vector<18x1x4xf32>
    %c0 = arith.constant 0 : index
    %c0_0 = arith.constant 0 : index
    %c0_1 = arith.constant 0 : index
    %1 = vector.load %arg11[%c0, %c0_0, %c0_1] : memref<18x18x4xf32, #tpu.memory_space<vmem>>, vector<18x1x4xf32>
    tpu.vector_store %arg11[%c0, %c0_0, %c0_1], %0 {strides = array<i32>} : memref<18x18x4xf32, #tpu.memory_space<vmem>>, vector<18x1x4xf32>,
    %cst_2 = arith.constant 0.000000e+00 : f32
    %2 = vector.broadcast %cst_2 : f32 to vector<18x1x4xf32>
    %c0_3 = arith.constant 0 : index
    %c17 = arith.constant 17 : index
    %c0_4 = arith.constant 0 : index
    %3 = vector.load %arg11[%c0_3, %c17, %c0_4] : memref<18x18x4xf32, #tpu.memory_space<vmem>>, vector<18x1x4xf32>
    tpu.vector_store %arg11[%c0_3, %c17, %c0_4], %2 {strides = array<i32>} : memref<18x18x4xf32, #tpu.memory_space<vmem>>, vector<18x1x4xf32>,
    %c0_5 = arith.constant 0 : index
    %c0_6 = arith.constant 0 : index
    %c0_7 = arith.constant 0 : index
    %c0_8 = arith.constant 0 : index
    %c0_9 = arith.constant 0 : index
    %4 = vector.load %arg3[%c0_5, %c0_6, %c0_7, %c0_8, %c0_9] : memref<1x1x2x16x4xf32, #tpu.memory_space<vmem>>, vector<1x1x1x16x4xf32>
    %5 = vector.shape_cast %4 : vector<1x1x1x16x4xf32> to vector<16x4xf32>
    %c0_10 = arith.constant 0 : index
    %c0_11 = arith.constant 0 : index
    %c1 = arith.constant 1 : index
    %c0_12 = arith.constant 0 : index
    %c0_13 = arith.constant 0 : index
    %6 = vector.load %arg3[%c0_10, %c0_11, %c1, %c0_12, %c0_13] : memref<1x1x2x16x4xf32, #tpu.memory_space<vmem>>, vector<1x1x1x16x4xf32>
    %7 = vector.shape_cast %6 : vector<1x1x1x16x4xf32> to vector<16x4xf32>
    %c0_i32 = arith.constant 0 : i32
    %8 = arith.cmpi sgt, %arg1, %c0_i32 : i32
    %cst_14 = arith.constant 0.000000e+00 : f32
    %9 = vector.broadcast %cst_14 : f32 to vector<16x4xf32>
    %10 = arith.select %8, %5, %9 : vector<16x4xf32>
    %c0_i32_15 = arith.constant 0 : i32
    %11 = arith.cmpi slt, %arg1, %c0_i32_15 : i32
    %cst_16 = arith.constant 0.000000e+00 : f32
    %12 = vector.broadcast %cst_16 : f32 to vector<16x4xf32>
    %13 = arith.select %11, %7, %12 : vector<16x4xf32>
    %14 = vector.shape_cast %10 : vector<16x4xf32> to vector<1x16x4xf32>
    %c0_17 = arith.constant 0 : index
    %c1_18 = arith.constant 1 : index
    %c0_19 = arith.constant 0 : index
    %15 = vector.load %arg11[%c0_17, %c1_18, %c0_19] : memref<18x18x4xf32, #tpu.memory_space<vmem>>, vector<1x16x4xf32>
    tpu.vector_store %arg11[%c0_17, %c1_18, %c0_19], %14 {strides = array<i32>} : memref<18x18x4xf32, #tpu.memory_space<vmem>>, vector<1x16x4xf32>,
    %16 = vector.shape_cast %13 : vector<16x4xf32> to vector<1x16x4xf32>
    %c17_20 = arith.constant 17 : index
    %c1_21 = arith.constant 1 : index
    %c0_22 = arith.constant 0 : index
    %17 = vector.load %arg11[%c17_20, %c1_21, %c0_22] : memref<18x18x4xf32, #tpu.memory_space<vmem>>, vector<1x16x4xf32>
    tpu.vector_store %arg11[%c17_20, %c1_21, %c0_22], %16 {strides = array<i32>} : memref<18x18x4xf32, #tpu.memory_space<vmem>>, vector<1x16x4xf32>,
    %c0_23 = arith.constant 0 : index
    %c0_24 = arith.constant 0 : index
    %c0_25 = arith.constant 0 : index
    %c0_26 = arith.constant 0 : index
    %18 = vector.load %arg2[%c0_23, %c0_24, %c0_25, %c0_26] : memref<1x16x16x4xf32, #tpu.memory_space<vmem>>, vector<1x16x16x4xf32>
    %19 = vector.shape_cast %18 : vector<1x16x16x4xf32> to vector<16x16x4xf32>
    %c1_27 = arith.constant 1 : index
    %c1_28 = arith.constant 1 : index
    %c0_29 = arith.constant 0 : index
    %20 = vector.load %arg11[%c1_27, %c1_28, %c0_29] : memref<18x18x4xf32, #tpu.memory_space<vmem>>, vector<16x16x4xf32>
    tpu.vector_store %arg11[%c1_27, %c1_28, %c0_29], %19 {strides = array<i32>} : memref<18x18x4xf32, #tpu.memory_space<vmem>>, vector<16x16x4xf32>,
    %cst_30 = arith.constant 0.000000e+00 : f32
    %21 = vector.broadcast %cst_30 : f32 to vector<256x8xf32>
    %c0_31 = arith.constant 0 : index
    %c0_32 = arith.constant 0 : index
    %c0_33 = arith.constant 0 : index
    %22 = vector.load %arg11[%c0_31, %c0_32, %c0_33] : memref<18x18x4xf32, #tpu.memory_space<vmem>>, vector<16x16x4xf32>
    %23 = vector.shape_cast %22 : vector<16x16x4xf32> to vector<256x4xf32>
    %24 = arith.truncf %23 : vector<256x4xf32> to vector<256x4xbf16>
    %c0_34 = arith.constant 0 : index
    %c0_35 = arith.constant 0 : index
    %25 = vector.load %arg12[%c0_34, %c0_35] : memref<256x36xbf16, #tpu.memory_space<vmem>>, vector<256x4xbf16>
    tpu.vector_store %arg12[%c0_34, %c0_35], %24 {strides = array<i32>} : memref<256x36xbf16, #tpu.memory_space<vmem>>, vector<256x4xbf16>,
    %c0_36 = arith.constant 0 : index
    %c1_37 = arith.constant 1 : index
    %c0_38 = arith.constant 0 : index
    %26 = vector.load %arg11[%c0_36, %c1_37, %c0_38] : memref<18x18x4xf32, #tpu.memory_space<vmem>>, vector<16x16x4xf32>
    %27 = vector.shape_cast %26 : vector<16x16x4xf32> to vector<256x4xf32>
    %28 = arith.truncf %27 : vector<256x4xf32> to vector<256x4xbf16>
    %c0_39 = arith.constant 0 : index
    %c4 = arith.constant 4 : index
    %29 = vector.load %arg12[%c0_39, %c4] : memref<256x36xbf16, #tpu.memory_space<vmem>>, vector<256x4xbf16>
    tpu.vector_store %arg12[%c0_39, %c4], %28 {strides = array<i32>} : memref<256x36xbf16, #tpu.memory_space<vmem>>, vector<256x4xbf16>,
    %c0_40 = arith.constant 0 : index
    %c2 = arith.constant 2 : index
    %c0_41 = arith.constant 0 : index
    %30 = vector.load %arg11[%c0_40, %c2, %c0_41] : memref<18x18x4xf32, #tpu.memory_space<vmem>>, vector<16x16x4xf32>
    %31 = vector.shape_cast %30 : vector<16x16x4xf32> to vector<256x4xf32>
    %32 = arith.truncf %31 : vector<256x4xf32> to vector<256x4xbf16>
    %c0_42 = arith.constant 0 : index
    %c8 = arith.constant 8 : index
    %33 = vector.load %arg12[%c0_42, %c8] : memref<256x36xbf16, #tpu.memory_space<vmem>>, vector<256x4xbf16>
    tpu.vector_store %arg12[%c0_42, %c8], %32 {strides = array<i32>} : memref<256x36xbf16, #tpu.memory_space<vmem>>, vector<256x4xbf16>,
    %c1_43 = arith.constant 1 : index
    %c0_44 = arith.constant 0 : index
    %c0_45 = arith.constant 0 : index
    %34 = vector.load %arg11[%c1_43, %c0_44, %c0_45] : memref<18x18x4xf32, #tpu.memory_space<vmem>>, vector<16x16x4xf32>
    %35 = vector.shape_cast %34 : vector<16x16x4xf32> to vector<256x4xf32>
    %36 = arith.truncf %35 : vector<256x4xf32> to vector<256x4xbf16>
    %c0_46 = arith.constant 0 : index
    %c12 = arith.constant 12 : index
    %37 = vector.load %arg12[%c0_46, %c12] : memref<256x36xbf16, #tpu.memory_space<vmem>>, vector<256x4xbf16>
    tpu.vector_store %arg12[%c0_46, %c12], %36 {strides = array<i32>} : memref<256x36xbf16, #tpu.memory_space<vmem>>, vector<256x4xbf16>,
    %c1_47 = arith.constant 1 : index
    %c1_48 = arith.constant 1 : index
    %c0_49 = arith.constant 0 : index
    %38 = vector.load %arg11[%c1_47, %c1_48, %c0_49] : memref<18x18x4xf32, #tpu.memory_space<vmem>>, vector<16x16x4xf32>
    %39 = vector.shape_cast %38 : vector<16x16x4xf32> to vector<256x4xf32>
    %40 = arith.truncf %39 : vector<256x4xf32> to vector<256x4xbf16>
    %c0_50 = arith.constant 0 : index
    %c16 = arith.constant 16 : index
    %41 = vector.load %arg12[%c0_50, %c16] : memref<256x36xbf16, #tpu.memory_space<vmem>>, vector<256x4xbf16>
    tpu.vector_store %arg12[%c0_50, %c16], %40 {strides = array<i32>} : memref<256x36xbf16, #tpu.memory_space<vmem>>, vector<256x4xbf16>,
    %c1_51 = arith.constant 1 : index
    %c2_52 = arith.constant 2 : index
    %c0_53 = arith.constant 0 : index
    %42 = vector.load %arg11[%c1_51, %c2_52, %c0_53] : memref<18x18x4xf32, #tpu.memory_space<vmem>>, vector<16x16x4xf32>
    %43 = vector.shape_cast %42 : vector<16x16x4xf32> to vector<256x4xf32>
    %44 = arith.truncf %43 : vector<256x4xf32> to vector<256x4xbf16>
    %c0_54 = arith.constant 0 : index
    %c20 = arith.constant 20 : index
    %45 = vector.load %arg12[%c0_54, %c20] : memref<256x36xbf16, #tpu.memory_space<vmem>>, vector<256x4xbf16>
    tpu.vector_store %arg12[%c0_54, %c20], %44 {strides = array<i32>} : memref<256x36xbf16, #tpu.memory_space<vmem>>, vector<256x4xbf16>,
    %c2_55 = arith.constant 2 : index
    %c0_56 = arith.constant 0 : index
    %c0_57 = arith.constant 0 : index
    %46 = vector.load %arg11[%c2_55, %c0_56, %c0_57] : memref<18x18x4xf32, #tpu.memory_space<vmem>>, vector<16x16x4xf32>
    %47 = vector.shape_cast %46 : vector<16x16x4xf32> to vector<256x4xf32>
    %48 = arith.truncf %47 : vector<256x4xf32> to vector<256x4xbf16>
    %c0_58 = arith.constant 0 : index
    %c24 = arith.constant 24 : index
    %49 = vector.load %arg12[%c0_58, %c24] : memref<256x36xbf16, #tpu.memory_space<vmem>>, vector<256x4xbf16>
    tpu.vector_store %arg12[%c0_58, %c24], %48 {strides = array<i32>} : memref<256x36xbf16, #tpu.memory_space<vmem>>, vector<256x4xbf16>,
    %c2_59 = arith.constant 2 : index
    %c1_60 = arith.constant 1 : index
    %c0_61 = arith.constant 0 : index
    %50 = vector.load %arg11[%c2_59, %c1_60, %c0_61] : memref<18x18x4xf32, #tpu.memory_space<vmem>>, vector<16x16x4xf32>
    %51 = vector.shape_cast %50 : vector<16x16x4xf32> to vector<256x4xf32>
    %52 = arith.truncf %51 : vector<256x4xf32> to vector<256x4xbf16>
    %c0_62 = arith.constant 0 : index
    %c28 = arith.constant 28 : index
    %53 = vector.load %arg12[%c0_62, %c28] : memref<256x36xbf16, #tpu.memory_space<vmem>>, vector<256x4xbf16>
    tpu.vector_store %arg12[%c0_62, %c28], %52 {strides = array<i32>} : memref<256x36xbf16, #tpu.memory_space<vmem>>, vector<256x4xbf16>,
    %c2_63 = arith.constant 2 : index
    %c2_64 = arith.constant 2 : index
    %c0_65 = arith.constant 0 : index
    %54 = vector.load %arg11[%c2_63, %c2_64, %c0_65] : memref<18x18x4xf32, #tpu.memory_space<vmem>>, vector<16x16x4xf32>
    %55 = vector.shape_cast %54 : vector<16x16x4xf32> to vector<256x4xf32>
    %56 = arith.truncf %55 : vector<256x4xf32> to vector<256x4xbf16>
    %c0_66 = arith.constant 0 : index
    %c32 = arith.constant 32 : index
    %57 = vector.load %arg12[%c0_66, %c32] : memref<256x36xbf16, #tpu.memory_space<vmem>>, vector<256x4xbf16>
    tpu.vector_store %arg12[%c0_66, %c32], %56 {strides = array<i32>} : memref<256x36xbf16, #tpu.memory_space<vmem>>, vector<256x4xbf16>,
    %c0_67 = arith.constant 0 : index
    %c0_68 = arith.constant 0 : index
    %58 = vector.load %arg4[%c0_67, %c0_68] : memref<36x8xbf16, #tpu.memory_space<vmem>>, vector<36x8xbf16>
    %c0_69 = arith.constant 0 : index
    %c0_70 = arith.constant 0 : index
    %59 = vector.load %arg12[%c0_69, %c0_70] : memref<256x36xbf16, #tpu.memory_space<vmem>>, vector<256x36xbf16>
    %cst_71 = arith.constant dense<0.000000e+00> : vector<256x8xf32>
    %60 = tpu.matmul %59, %58, %cst_71 {dimension_numbers = #tpu.dot_dimension_numbers<[1], [0], [0], [1], [0, 0, 1, 1], [], []>} : vector<256x36xbf16>, vector<36x8xbf16>, vector<256x8xf32> -> vector<256x8xf32>
    %61 = arith.addf %21, %60 : vector<256x8xf32>
    %c0_72 = arith.constant 0 : index
    %c0_73 = arith.constant 0 : index
    %62 = vector.load %arg5[%c0_72, %c0_73] : memref<1x8xf32, #tpu.memory_space<vmem>>, vector<1x8xf32>
    %63 = vector.broadcast %62 : vector<1x8xf32> to vector<256x8xf32>
    %64 = arith.addf %61, %63 : vector<256x8xf32>
    %65 = vector.shape_cast %64 : vector<256x8xf32> to vector<1x16x16x8xf32>
    %66 = arith.truncf %65 : vector<1x16x16x8xf32> to vector<1x16x16x8xbf16>
    %c0_74 = arith.constant 0 : index
    %c0_75 = arith.constant 0 : index
    %c0_76 = arith.constant 0 : index
    %c0_77 = arith.constant 0 : index
    %67 = vector.load %arg8[%c0_74, %c0_75, %c0_76, %c0_77] : memref<1x16x16x8xbf16, #tpu.memory_space<vmem>>, vector<1x16x16x8xbf16>
    tpu.vector_store %arg8[%c0_74, %c0_75, %c0_76, %c0_77], %66 {strides = array<i32>} : memref<1x16x16x8xbf16, #tpu.memory_space<vmem>>, vector<1x16x16x8xbf16>,
    %cst_78 = arith.constant dense<0.000000e+00> : vector<8xf32>
    %68 = vector.multi_reduction <add>, %64, %cst_78 [0] : vector<256x8xf32> to vector<8xf32>
    %69 = vector.shape_cast %68 : vector<8xf32> to vector<1x8xf32>
    %70 = vector.shape_cast %69 : vector<1x8xf32> to vector<1x1x1x8xf32>
    %c0_79 = arith.constant 0 : index
    %c0_80 = arith.constant 0 : index
    %c0_81 = arith.constant 0 : index
    %c0_82 = arith.constant 0 : index
    %71 = vector.load %arg9[%c0_79, %c0_80, %c0_81, %c0_82] : memref<1x1x1x8xf32, #tpu.memory_space<vmem>>, vector<1x1x1x8xf32>
    tpu.vector_store %arg9[%c0_79, %c0_80, %c0_81, %c0_82], %70 {strides = array<i32>} : memref<1x1x1x8xf32, #tpu.memory_space<vmem>>, vector<1x1x1x8xf32>,
    %72 = arith.mulf %64, %64 : vector<256x8xf32>
    %cst_83 = arith.constant dense<0.000000e+00> : vector<8xf32>
    %73 = vector.multi_reduction <add>, %72, %cst_83 [0] : vector<256x8xf32> to vector<8xf32>
    %74 = vector.shape_cast %73 : vector<8xf32> to vector<1x8xf32>
    %75 = vector.shape_cast %74 : vector<1x8xf32> to vector<1x1x1x8xf32>
    %c0_84 = arith.constant 0 : index
    %c0_85 = arith.constant 0 : index
    %c0_86 = arith.constant 0 : index
    %c0_87 = arith.constant 0 : index
    %76 = vector.load %arg10[%c0_84, %c0_85, %c0_86, %c0_87] : memref<1x1x1x8xf32, #tpu.memory_space<vmem>>, vector<1x1x1x8xf32>
    tpu.vector_store %arg10[%c0_84, %c0_85, %c0_86, %c0_87], %75 {strides = array<i32>} : memref<1x1x1x8xf32, #tpu.memory_space<vmem>>, vector<1x1x1x8xf32>,
    return
  }
  func.func @transform_0(%arg0: i32, %arg1: i32) -> (i32, i32, i32, i32) {
    %c0_i32 = arith.constant 0 : i32
    %c0_i32_0 = arith.constant 0 : i32
    %c0_i32_1 = arith.constant 0 : i32
    return %arg0, %arg1, %c0_i32, %c0_i32_0 : i32, i32, i32, i32
  }
  func.func @transform_1(%arg0: i32, %arg1: i32) -> (i32, i32, i32, i32, i32) {
    %c0_i32 = arith.constant 0 : i32
    %c0_i32_0 = arith.constant 0 : i32
    %c0_i32_1 = arith.constant 0 : i32
    %c0_i32_2 = arith.constant 0 : i32
    return %arg0, %arg1, %c0_i32, %c0_i32_0, %c0_i32_1 : i32, i32, i32, i32, i32
  }
  func.func @transform_2(%arg0: i32, %arg1: i32) -> (i32, i32) {
    %c0_i32 = arith.constant 0 : i32
    %c0_i32_0 = arith.constant 0 : i32
    %c0_i32_1 = arith.constant 0 : i32
    return %c0_i32, %c0_i32_0 : i32, i32
  }
  func.func @transform_3(%arg0: i32, %arg1: i32) -> (i32, i32) {
    %c0_i32 = arith.constant 0 : i32
    %c0_i32_0 = arith.constant 0 : i32
    %c0_i32_1 = arith.constant 0 : i32
    return %c0_i32, %c0_i32_0 : i32, i32
  }
  func.func @transform_4(%arg0: i32, %arg1: i32) -> (i32, i32) {
    %c0_i32 = arith.constant 0 : i32
    %c0_i32_0 = arith.constant 0 : i32
    %c0_i32_1 = arith.constant 0 : i32
    return %c0_i32, %c0_i32_0 : i32, i32
  }
  func.func @transform_5(%arg0: i32, %arg1: i32) -> (i32, i32) {
    %c0_i32 = arith.constant 0 : i32
    %c0_i32_0 = arith.constant 0 : i32
    %c0_i32_1 = arith.constant 0 : i32
    return %c0_i32, %c0_i32_0 : i32, i32
  }
  func.func @transform_6(%arg0: i32, %arg1: i32) -> (i32, i32, i32, i32) {
    %c0_i32 = arith.constant 0 : i32
    %c0_i32_0 = arith.constant 0 : i32
    %c0_i32_1 = arith.constant 0 : i32
    return %arg0, %arg1, %c0_i32, %c0_i32_0 : i32, i32, i32, i32
  }
  func.func @transform_7(%arg0: i32, %arg1: i32) -> (i32, i32, i32, i32) {
    %c0_i32 = arith.constant 0 : i32
    %c0_i32_0 = arith.constant 0 : i32
    %c0_i32_1 = arith.constant 0 : i32
    return %arg0, %arg1, %c0_i32, %c0_i32_0 : i32, i32, i32, i32
  }
  func.func @transform_8(%arg0: i32, %arg1: i32) -> (i32, i32, i32, i32) {
    %c0_i32 = arith.constant 0 : i32
    %c0_i32_0 = arith.constant 0 : i32
    %c0_i32_1 = arith.constant 0 : i32
    return %arg0, %arg1, %c0_i32, %c0_i32_0 : i32, i32, i32, i32
  }
}

module attributes {stable_mosaic.version = 11 : i64} {
  func.func @_bn_relu_kernel(%arg0: i32, %arg1: memref<32x128xf32, #tpu.memory_space<vmem>>, %arg2: memref<1x128xf32, #tpu.memory_space<vmem>>, %arg3: memref<1x128xf32, #tpu.memory_space<vmem>>, %arg4: memref<32x128xf32, #tpu.memory_space<vmem>>) attributes {dimension_semantics = [#tpu.dimension_semantics<parallel>], iteration_bounds = array<i64: 1>, scalar_prefetch = 0 : i64, scratch_operands = 0 : i64, tpu.core_type = #tpu.core_type<tc>, window_params = [{transform_indices = @transform_0, window_bounds = array<i64: 32, 128>}, {pipeline_mode = #tpu.pipeline_mode<synchronous>, transform_indices = @transform_1, window_bounds = array<i64: 1, 128>}, {pipeline_mode = #tpu.pipeline_mode<synchronous>, transform_indices = @transform_2, window_bounds = array<i64: 1, 128>}, {transform_indices = @transform_3, window_bounds = array<i64: 32, 128>}]} {
    %c0 = arith.constant 0 : index
    %c0_0 = arith.constant 0 : index
    %0 = vector.load %arg1[%c0, %c0_0] : memref<32x128xf32, #tpu.memory_space<vmem>>, vector<32x128xf32>
    %c0_1 = arith.constant 0 : index
    %c0_2 = arith.constant 0 : index
    %1 = vector.load %arg2[%c0_1, %c0_2] : memref<1x128xf32, #tpu.memory_space<vmem>>, vector<1x128xf32>
    %2 = vector.broadcast %1 : vector<1x128xf32> to vector<32x128xf32>
    %3 = arith.mulf %0, %2 : vector<32x128xf32>
    %c0_3 = arith.constant 0 : index
    %c0_4 = arith.constant 0 : index
    %4 = vector.load %arg3[%c0_3, %c0_4] : memref<1x128xf32, #tpu.memory_space<vmem>>, vector<1x128xf32>
    %5 = vector.broadcast %4 : vector<1x128xf32> to vector<32x128xf32>
    %6 = arith.addf %3, %5 : vector<32x128xf32>
    %cst = arith.constant 0.000000e+00 : f32
    %7 = vector.broadcast %cst : f32 to vector<32x128xf32>
    %8 = arith.maximumf %6, %7 : vector<32x128xf32>
    %c0_5 = arith.constant 0 : index
    %c0_6 = arith.constant 0 : index
    %9 = vector.load %arg4[%c0_5, %c0_6] : memref<32x128xf32, #tpu.memory_space<vmem>>, vector<32x128xf32>
    tpu.vector_store %arg4[%c0_5, %c0_6], %8 {strides = array<i32>} : memref<32x128xf32, #tpu.memory_space<vmem>>, vector<32x128xf32>,
    return
  }
  func.func @transform_0(%arg0: i32) -> (i32, i32) {
    %c0_i32 = arith.constant 0 : i32
    %c0_i32_0 = arith.constant 0 : i32
    return %arg0, %c0_i32 : i32, i32
  }
  func.func @transform_1(%arg0: i32) -> (i32, i32) {
    %c0_i32 = arith.constant 0 : i32
    %c0_i32_0 = arith.constant 0 : i32
    %c0_i32_1 = arith.constant 0 : i32
    return %c0_i32, %c0_i32_0 : i32, i32
  }
  func.func @transform_2(%arg0: i32) -> (i32, i32) {
    %c0_i32 = arith.constant 0 : i32
    %c0_i32_0 = arith.constant 0 : i32
    %c0_i32_1 = arith.constant 0 : i32
    return %c0_i32, %c0_i32_0 : i32, i32
  }
  func.func @transform_3(%arg0: i32) -> (i32, i32) {
    %c0_i32 = arith.constant 0 : i32
    %c0_i32_0 = arith.constant 0 : i32
    return %arg0, %c0_i32 : i32, i32
  }
}

</mosaic_0001>

<llo_original>
// kernel: tile.13
$region0: #{tile.13}
  #allocation0 [shape = 's32[1]{0}', space=sflag, size = 0x4, scoped, tag = 'scoped memory for tile.13']
  %s0 = inlined_call_operand.vmem [shape: f32[8], index: 0, kind: input, shape index: {}]
  %s1 = inlined_call_operand.vmem [shape: f32[16,8], index: 1, kind: output, shape index: {}]
  // Predicated region
  $region2: #{tile.13} parent=0 // pred_check
    _
  $region3: #{tile.13} parent=0 // pred_check_branch
    %3 = sbr.rel (0) target = $region5
  $region4: #{tile.13} parent=0 // pred_region
    _
  $region5: #{tile.13} parent=0 // pred_fallthru
    _
  %v4 = vld [vmem:[%s0] ss:$0 sm:$0xff]
  %5 = vst [vmem:[%s1] sm:$0xff] %v4
  %s6 = scalar_lea.vmem %s1, 8
  %7 = vst [vmem:[%s6] sm:$0xff] %v4

// kernel: tile.14
$region0: #{tile.14}
  %s0 = inlined_call_operand.vmem [shape: f32[16,8], index: 0, kind: input, shape index: {}]
  %s1 = inlined_call_operand.vmem [shape: f32[1,128], index: 1, kind: output, shape index: {}]
  $region1: #{tile.14} parent=0
    #allocation0 [shape = 'u8[4096]{0}', space=vmem, size = 0x1000, scoped, tag = 'scoped mem for output reshape']
    %v2 = vld [vmem:[%s0] sm:$0x1]
    %vm3 = vcmask 64512
    %4 = vst.msk [vmem:[#allocation0] sm:$0x1] %vm3, %v2
    %s5 = scalar_lea.vmem %s0, 15
    %v6 = vld [vmem:[%s5] sm:$0x1]
    %7 = vrot.lane.b32.xlu0 %v6, 120
    %v8 = vpop.permute.xlu0 %7
    %vm9 = vcmask 1048512
    %10 = vst.msk [vmem:[#allocation0] sm:$0x1] %vm9, %v8
    %s11 = scalar_lea.vmem %s0, 14
    %v12 = vld [vmem:[%s11] sm:$0x1]
    %13 = vrot.lane.b32.xlu0 %v12, 112
    %v14 = vpop.permute.xlu0 %13
    %vm15 = vcmask 982912
    %16 = vst.msk [vmem:[#allocation0] sm:$0x1] %vm15, %v14
    %s17 = scalar_lea.vmem %s0, 13
    %v18 = vld [vmem:[%s17] sm:$0x1]
    %19 = vrot.lane.b32.xlu0 %v18, 104
    %v20 = vpop.permute.xlu0 %19
    %vm21 = vcmask 917312
    %22 = vst.msk [vmem:[#allocation0] sm:$0x1] %vm21, %v20
    %s23 = scalar_lea.vmem %s0, 12
    %v24 = vld [vmem:[%s23] sm:$0x1]
    %25 = vrot.lane.b32.xlu0 %v24, 96
    %v26 = vpop.permute.xlu0 %25
    %vm27 = vcmask 851712
    %28 = vst.msk [vmem:[#allocation0] sm:$0x1] %vm27, %v26
    %s29 = scalar_lea.vmem %s0, 11
    %v30 = vld [vmem:[%s29] sm:$0x1]
    %31 = vrot.lane.b32.xlu0 %v30, 88
    %v32 = vpop.permute.xlu0 %31
    %vm33 = vcmask 786112
    %34 = vst.msk [vmem:[#allocation0] sm:$0x1] %vm33, %v32
    %s35 = scalar_lea.vmem %s0, 10
    %v36 = vld [vmem:[%s35] sm:$0x1]
    %37 = vrot.lane.b32.xlu0 %v36, 80
    %v38 = vpop.permute.xlu0 %37
    %vm39 = vcmask 720512
    %40 = vst.msk [vmem:[#allocation0] sm:$0x1] %vm39, %v38
    %s41 = scalar_lea.vmem %s0, 9
    %v42 = vld [vmem:[%s41] sm:$0x1]
    %43 = vrot.lane.b32.xlu0 %v42, 72
    %v44 = vpop.permute.xlu0 %43
    %vm45 = vcmask 654912
    %46 = vst.msk [vmem:[#allocation0] sm:$0x1] %vm45, %v44
    %s47 = scalar_lea.vmem %s0, 8
    %v48 = vld [vmem:[%s47] sm:$0x1]
    %49 = vrot.lane.b32.xlu0 %v48, 64
    %v50 = vpop.permute.xlu0 %49
    %vm51 = vcmask 589312
    %52 = vst.msk [vmem:[#allocation0] sm:$0x1] %vm51, %v50
    %s53 = scalar_lea.vmem %s0, 7
    %v54 = vld [vmem:[%s53] sm:$0x1]
    %55 = vrot.lane.b32.xlu0 %v54, 56
    %v56 = vpop.permute.xlu0 %55
    %vm57 = vcmask 523712
    %58 = vst.msk [vmem:[#allocation0] sm:$0x1] %vm57, %v56
    %s59 = scalar_lea.vmem %s0, 6
    %v60 = vld [vmem:[%s59] sm:$0x1]
    %61 = vrot.lane.b32.xlu0 %v60, 48
    %v62 = vpop.permute.xlu0 %61
    %vm63 = vcmask 458112
    %64 = vst.msk [vmem:[#allocation0] sm:$0x1] %vm63, %v62
    %s65 = scalar_lea.vmem %s0, 5
    %v66 = vld [vmem:[%s65] sm:$0x1]
    %67 = vrot.lane.b32.xlu0 %v66, 40
    %v68 = vpop.permute.xlu0 %67
    %vm69 = vcmask 392512
    %70 = vst.msk [vmem:[#allocation0] sm:$0x1] %vm69, %v68
    %s71 = scalar_lea.vmem %s0, 4
    %v72 = vld [vmem:[%s71] sm:$0x1]
    %73 = vrot.lane.b32.xlu0 %v72, 32
    %v74 = vpop.permute.xlu0 %73
    %vm75 = vcmask 326912
    %76 = vst.msk [vmem:[#allocation0] sm:$0x1] %vm75, %v74
    %s77 = scalar_lea.vmem %s0, 3
    %v78 = vld [vmem:[%s77] sm:$0x1]
    %79 = vrot.lane.b32.xlu0 %v78, 24
    %v80 = vpop.permute.xlu0 %79
    %vm81 = vcmask 261312
    %82 = vst.msk [vmem:[#allocation0] sm:$0x1] %vm81, %v80
    %s83 = scalar_lea.vmem %s0, 2
    %v84 = vld [vmem:[%s83] sm:$0x1]
    %85 = vrot.lane.b32.xlu0 %v84, 16
    %v86 = vpop.permute.xlu0 %85
    %vm87 = vcmask 195712
    %88 = vst.msk [vmem:[#allocation0] sm:$0x1] %vm87, %v86
    %s89 = scalar_lea.vmem %s0, 1
    %v90 = vld [vmem:[%s89] sm:$0x1]
    %91 = vrot.lane.b32.xlu0 %v90, 8
    %v92 = vpop.permute.xlu0 %91
    %vm93 = vcmask 130112
    %94 = vst.msk [vmem:[#allocation0] sm:$0x1] %vm93, %v92
    %s96 = sshllo.u32 0, 1
    %v98 = vld [vmem:[#allocation0] sm:%s96]
    %s99 = sshllo.u32 0, 1
    %100 = vst [vmem:[%s1] sm:%s99] %v98

// kernel: conv_block_forward.5
$region0: #{conv_block_forward.5}
  #allocation0 [shape = 'u32[]', space=smem, size = 0x4, offset = 0x4, fixed_abs, tag = 'smem constant byte address 0x4 - core index']
  #allocation1 [shape = 'u32[144,128]{1,0:T(1,128)}', space=vmem, size = 0x12000, scoped, tag = 'internal scratch']
  %s0 = inlined_call_operand.vmem [shape: f32[32,128], index: 0, kind: input, shape index: {}]
  %s1 = inlined_call_operand.vmem [shape: f32[1,128], index: 1, kind: input, shape index: {}]
  %s2 = inlined_call_operand.vmem [shape: f32[1,128], index: 2, kind: input, shape index: {}]
  %s3 = inlined_call_operand.vmem [shape: f32[32,128], index: 3, kind: output, shape index: {}]
  %s4 = sld [smem:[#allocation0]]
  $region22: #{conv_block_forward.5} parent=0
    _
  %s6 = ssub.s32 1, %s4
  %s7 = scalar_select 0, %s6, %s4
  // Predicated region
  $region2: #{conv_block_forward.5} parent=0 // pred_check
    _
  $region3: #{conv_block_forward.5} parent=0 // pred_check_branch
    %9 = sbr.rel (0) target = $region5
  $region4: #{conv_block_forward.5} parent=0 // pred_region
    _
  $region5: #{conv_block_forward.5} parent=0 // pred_fallthru
    _
  // Predicated region
  $region6: #{conv_block_forward.5} parent=0 // pred_check
    _
  $region7: #{conv_block_forward.5} parent=0 // pred_check_branch
    %11 = sbr.rel (0) target = $region9
  $region8: #{conv_block_forward.5} parent=0 // pred_region
    _
  $region9: #{conv_block_forward.5} parent=0 // pred_fallthru
    _
  // Predicated region
  $region10: #{conv_block_forward.5} parent=0 // pred_check
    _
  $region11: #{conv_block_forward.5} parent=0 // pred_check_branch
    %13 = sbr.rel (0) target = $region13
  $region12: #{conv_block_forward.5} parent=0 // pred_region
    _
  $region13: #{conv_block_forward.5} parent=0 // pred_fallthru
    _
  %v14 = vld [vmem:[%s0] sm:$0xff]
  %v15 = vld [vmem:[%s0 + $0x8] sm:$0xff]
  %v16 = vld [vmem:[%s0 + $0x10] sm:$0xff]
  %v17 = vld [vmem:[%s0 + $0x18] sm:$0xff]
  %v18 = vld [vmem:[%s1] sm:$0x1]
  %v20 = vlaneseq
  %v21 = vshrl.u32 %v20, 7
  %v22 = vsub.s32 0, %v21
  %v23 = vrot.slane %v18, %v22
  %v25 = vmul.f32 %v14, %v23
  %v26 = vmul.f32 %v15, %v23
  %v27 = vmul.f32 %v16, %v23
  %v28 = vmul.f32 %v17, %v23
  %v29 = vld [vmem:[%s2] sm:$0x1]
  %v31 = vlaneseq
  %v32 = vshrl.u32 %v31, 7
  %v33 = vsub.s32 0, %v32
  %v34 = vrot.slane %v29, %v33
  %v36 = vadd.f32 %v25, %v34
  %v37 = vadd.f32 %v26, %v34
  %v38 = vadd.f32 %v27, %v34
  %v39 = vadd.f32 %v28, %v34
  %v40 = vmax.f32 %v36, 0.0
  %v41 = vmax.f32 %v37, 0.0
  %v42 = vmax.f32 %v38, 0.0
  %v43 = vmax.f32 %v39, 0.0
  %44 = vst [vmem:[%s3] sm:$0xff] %v40
  %45 = vst [vmem:[%s3 + $0x8] sm:$0xff] %v41
  %46 = vst [vmem:[%s3 + $0x10] sm:$0xff] %v42
  %47 = vst [vmem:[%s3 + $0x18] sm:$0xff] %v43
  // Predicated region
  $region14: #{conv_block_forward.5} parent=0 // pred_check
    _
  $region15: #{conv_block_forward.5} parent=0 // pred_check_branch
    %49 = sbr.rel (0) target = $region17
  $region16: #{conv_block_forward.5} parent=0 // pred_region
    _
  $region17: #{conv_block_forward.5} parent=0 // pred_fallthru
    _
  // Predicated region
  $region18: #{conv_block_forward.5} parent=0 // pred_check
    _
  $region19: #{conv_block_forward.5} parent=0 // pred_check_branch
    %51 = sbr.rel (0) target = $region21
  $region20: #{conv_block_forward.5} parent=0 // pred_region
    _
  $region21: #{conv_block_forward.5} parent=0 // pred_fallthru
    _

// kernel: conv_block_forward.4
$region0: #{conv_block_forward.4}
  #allocation0 [shape = 'u32[]', space=smem, size = 0x4, offset = 0x4, fixed_abs, tag = 'smem constant byte address 0x4 - core index']
  #allocation1 [shape = 'u32[144,128]{1,0:T(1,128)}', space=vmem, size = 0x12000, scoped, tag = 'internal scratch']
  #allocation2 [shape = 'f32[18,18,8]{2,1,0:T(8,128)}', space=vmem, size = 0x36000, scoped, tag = 'scratch operand']
  #allocation3 [shape = 'bf16[256,72]{1,0:T(16,128)(2,1)}', space=vmem, size = 0x10000, scoped, tag = 'scratch operand']
  %s0 = inlined_call_operand.vmem [shape: bf16[2,16,16,8], index: 0, kind: input, shape index: {}]
  %s1 = inlined_call_operand.vmem [shape: bf16[2,1,2,16,8], index: 1, kind: input, shape index: {}]
  %s2 = inlined_call_operand.vmem [shape: bf16[72,8], index: 2, kind: input, shape index: {}]
  %s3 = inlined_call_operand.vmem [shape: f32[1,8], index: 3, kind: input, shape index: {}]
  %s4 = inlined_call_operand.vmem [shape: f32[1,8], index: 4, kind: input, shape index: {}]
  %s5 = inlined_call_operand.vmem [shape: f32[1,8], index: 5, kind: input, shape index: {}]
  %s6 = inlined_call_operand.vmem [shape: f32[2,16,16,8], index: 6, kind: output, shape index: {0}]
  %s7 = inlined_call_operand.vmem [shape: f32[2,1,1,8], index: 7, kind: output, shape index: {1}]
  %s8 = inlined_call_operand.vmem [shape: f32[2,1,1,8], index: 8, kind: output, shape index: {2}]
  %9 = xla_tuple %s6, %s7, %s8
  %s10 = sld [smem:[#allocation0]]
  $region73: #{conv_block_forward.4} parent=0
    _
  %s12 = ssub.s32 1, %s10
  %s13 = scalar_select 0, %s12, %s10
  loop: start=0, step=1, limit=4
  $region2: #{conv_block_forward.4} parent=0 // loop_pre_header
    _
  $region3: #{conv_block_forward.4} parent=0 // loop_header
    %s15 = sphi 0, %s19
    %p16 = scmp.ge.s32.totalorder %s15, 4
    %s22 = sphi 0, %s34
    %s23 = sphi 0, %s30
    %s24 = sphi 0, %s22
    %s25 = sphi 0, %s23
    %s26 = sphi 0, %s24
    %s27 = sphi 0, %s25
    %s39 = sphi 0, %s41
    %s42 = sphi 0, %s39
    %s43 = sphi 0, %s42
    %s59 = sphi 0, %s43
    %s67 = sphi 0, %s69
    %s70 = sphi 0, %s67
    %s71 = sphi 0, %s70
    %s87 = sphi 0, %s71
    %s91 = sphi 0, %s91
    %s93 = sphi 0, %s91
    %s94 = sphi 0, %s93
    %s108 = sphi 0, %s94
    %s112 = sphi 0, %s112
    %s114 = sphi 0, %s112
    %s115 = sphi 0, %s114
    %s129 = sphi 0, %s115
    %s133 = sphi 0, %s133
    %s135 = sphi 0, %s133
    %s136 = sphi 0, %s135
    %s150 = sphi 0, %s136
    %s154 = sphi 0, %s154
    %s156 = sphi 0, %s154
    %s157 = sphi 0, %s156
    %s171 = sphi 0, %s157
    %s179 = sphi 0, %s181
    %s182 = sphi 0, %s179
    %s183 = sphi 0, %s182
    %s199 = sphi 0, %s183
    %s207 = sphi 0, %s209
    %s210 = sphi 0, %s207
    %s211 = sphi 0, %s210
    %s227 = sphi 0, %s211
    %s235 = sphi 0, %s237
    %s238 = sphi 0, %s235
    %s239 = sphi 0, %s238
    %s255 = sphi 0, %s239
  $region4: #{conv_block_forward.4} parent=0 // loop_header_branch
    %18 = sbr.rel (%p16) target = $region8
  $region5: #{conv_block_forward.4} parent=0 // loop_body
    %s20 = ssub.s32 %s15, 1
    %s21 = ssub.s32 %s15, 2
    %s28 = sadd.s32 1, %s23
    %p29 = scmp.ge.s32.totalorder %s28, 1
    %s30 = scalar_select %p29, 0, %s28
    %s31 = sadd.s32 1, %s22
    %s32 = scalar_select %p29, %s31, %s22
    %p33 = scmp.ge.s32.totalorder %s32, 2
    %s34 = scalar_select %p33, 0, %s32
    %s35 = ssub.s32 %s22, %s34
    %s36 = ssub.s32 %s23, %s30
    %s37 = sor.u32 %s35, %s36
    %p38 = scmp.eq.s32.totalorder %s37, 0
    %s40 = sadd.s32 %s39, 1
    %s41 = scalar_select %p38, %s39, %s40
    %p44 = pneg %p38
    %p45 = scmp.eq.s32.totalorder %s15, 1
    %p46 = por %p44, %p45
    %p47 = scmp.ne.s32.totalorder %s39, %s42
    %p48 = scmp.eq.s32.totalorder %s15, 0
    %p49 = por %p47, %p48
    %p50 = scmp.ne.s32.totalorder %s39, %s42
    %p51 = scmp.eq.s32.totalorder %s20, 1
    %p52 = por %p50, %p51
    %p53 = scmp.ne.s32.totalorder %s42, %s43
    %p54 = scmp.eq.s32.totalorder %s20, 0
    %p55 = por %p53, %p54
    %p56 = scmp.ne.s32.totalorder %s42, %s43
    %p57 = scmp.eq.s32.totalorder %s21, 1
    %p58 = por %p56, %p57
    %p60 = scmp.ne.s32.totalorder %s43, %s59
    %p61 = scmp.eq.s32.totalorder %s21, 0
    %p62 = por %p60, %p61
    %s63 = ssub.s32 %s22, %s34
    %s64 = ssub.s32 %s23, %s30
    %s65 = sor.u32 %s63, %s64
    %p66 = scmp.eq.s32.totalorder %s65, 0
    %s68 = sadd.s32 %s67, 1
    %s69 = scalar_select %p66, %s67, %s68
    %p72 = pneg %p66
    %p73 = scmp.eq.s32.totalorder %s15, 1
    %p74 = por %p72, %p73
    %p75 = scmp.ne.s32.totalorder %s67, %s70
    %p76 = scmp.eq.s32.totalorder %s15, 0
    %p77 = por %p75, %p76
    %p78 = scmp.ne.s32.totalorder %s67, %s70
    %p79 = scmp.eq.s32.totalorder %s20, 1
    %p80 = por %p78, %p79
    %p81 = scmp.ne.s32.totalorder %s70, %s71
    %p82 = scmp.eq.s32.totalorder %s20, 0
    %p83 = por %p81, %p82
    %p84 = scmp.ne.s32.totalorder %s70, %s71
    %p85 = scmp.eq.s32.totalorder %s21, 1
    %p86 = por %p84, %p85
    %p88 = scmp.ne.s32.totalorder %s71, %s87
    %p89 = scmp.eq.s32.totalorder %s21, 0
    %p90 = por %p88, %p89
    %s92 = sadd.s32 %s91, 1
    %p95 = scmp.eq.s32.totalorder %s15, 1
    %p96 = scmp.ne.s32.totalorder %s91, %s93
    %p97 = scmp.eq.s32.totalorder %s15, 0
    %p98 = por %p96, %p97
    %p99 = scmp.ne.s32.totalorder %s91, %s93
    %p100 = scmp.eq.s32.totalorder %s20, 1
    %p101 = por %p99, %p100
    %p102 = scmp.ne.s32.totalorder %s93, %s94
    %p103 = scmp.eq.s32.totalorder %s20, 0
    %p104 = por %p102, %p103
    %p105 = scmp.ne.s32.totalorder %s93, %s94
    %p106 = scmp.eq.s32.totalorder %s21, 1
    %p107 = por %p105, %p106
    %p109 = scmp.ne.s32.totalorder %s94, %s108
    %p110 = scmp.eq.s32.totalorder %s21, 0
    %p111 = por %p109, %p110
    %s113 = sadd.s32 %s112, 1
    %p116 = scmp.eq.s32.totalorder %s15, 1
    %p117 = scmp.ne.s32.totalorder %s112, %s114
    %p118 = scmp.eq.s32.totalorder %s15, 0
    %p119 = por %p117, %p118
    %p120 = scmp.ne.s32.totalorder %s112, %s114
    %p121 = scmp.eq.s32.totalorder %s20, 1
    %p122 = por %p120, %p121
    %p123 = scmp.ne.s32.totalorder %s114, %s115
    %p124 = scmp.eq.s32.totalorder %s20, 0
    %p125 = por %p123, %p124
    %p126 = scmp.ne.s32.totalorder %s114, %s115
    %p127 = scmp.eq.s32.totalorder %s21, 1
    %p128 = por %p126, %p127
    %p130 = scmp.ne.s32.totalorder %s115, %s129
    %p131 = scmp.eq.s32.totalorder %s21, 0
    %p132 = por %p130, %p131
    %s134 = sadd.s32 %s133, 1
    %p137 = scmp.eq.s32.totalorder %s15, 1
    %p138 = scmp.ne.s32.totalorder %s133, %s135
    %p139 = scmp.eq.s32.totalorder %s15, 0
    %p140 = por %p138, %p139
    %p141 = scmp.ne.s32.totalorder %s133, %s135
    %p142 = scmp.eq.s32.totalorder %s20, 1
    %p143 = por %p141, %p142
    %p144 = scmp.ne.s32.totalorder %s135, %s136
    %p145 = scmp.eq.s32.totalorder %s20, 0
    %p146 = por %p144, %p145
    %p147 = scmp.ne.s32.totalorder %s135, %s136
    %p148 = scmp.eq.s32.totalorder %s21, 1
    %p149 = por %p147, %p148
    %p151 = scmp.ne.s32.totalorder %s136, %s150
    %p152 = scmp.eq.s32.totalorder %s21, 0
    %p153 = por %p151, %p152
    %s155 = sadd.s32 %s154, 1
    %p158 = scmp.eq.s32.totalorder %s15, 1
    %p159 = scmp.ne.s32.totalorder %s154, %s156
    %p160 = scmp.eq.s32.totalorder %s15, 0
    %p161 = por %p159, %p160
    %p162 = scmp.ne.s32.totalorder %s154, %s156
    %p163 = scmp.eq.s32.totalorder %s20, 1
    %p164 = por %p162, %p163
    %p165 = scmp.ne.s32.totalorder %s156, %s157
    %p166 = scmp.eq.s32.totalorder %s20, 0
    %p167 = por %p165, %p166
    %p168 = scmp.ne.s32.totalorder %s156, %s157
    %p169 = scmp.eq.s32.totalorder %s21, 1
    %p170 = por %p168, %p169
    %p172 = scmp.ne.s32.totalorder %s157, %s171
    %p173 = scmp.eq.s32.totalorder %s21, 0
    %p174 = por %p172, %p173
    %s175 = ssub.s32 %s22, %s34
    %s176 = ssub.s32 %s23, %s30
    %s177 = sor.u32 %s175, %s176
    %p178 = scmp.eq.s32.totalorder %s177, 0
    %s180 = sadd.s32 %s179, 1
    %s181 = scalar_select %p178, %s179, %s180
    %p184 = pneg %p178
    %p185 = scmp.eq.s32.totalorder %s15, 1
    %p186 = por %p184, %p185
    %p187 = scmp.ne.s32.totalorder %s179, %s182
    %p188 = scmp.eq.s32.totalorder %s15, 0
    %p189 = por %p187, %p188
    %p190 = scmp.ne.s32.totalorder %s179, %s182
    %p191 = scmp.eq.s32.totalorder %s20, 1
    %p192 = por %p190, %p191
    %p193 = scmp.ne.s32.totalorder %s182, %s183
    %p194 = scmp.eq.s32.totalorder %s20, 0
    %p195 = por %p193, %p194
    %p196 = scmp.ne.s32.totalorder %s182, %s183
    %p197 = scmp.eq.s32.totalorder %s21, 1
    %p198 = por %p196, %p197
    %p200 = scmp.ne.s32.totalorder %s183, %s199
    %p201 = scmp.eq.s32.totalorder %s21, 0
    %p202 = por %p200, %p201
    %s203 = ssub.s32 %s22, %s34
    %s204 = ssub.s32 %s23, %s30
    %s205 = sor.u32 %s203, %s204
    %p206 = scmp.eq.s32.totalorder %s205, 0
    %s208 = sadd.s32 %s207, 1
    %s209 = scalar_select %p206, %s207, %s208
    %p212 = pneg %p206
    %p213 = scmp.eq.s32.totalorder %s15, 1
    %p214 = por %p212, %p213
    %p215 = scmp.ne.s32.totalorder %s207, %s210
    %p216 = scmp.eq.s32.totalorder %s15, 0
    %p217 = por %p215, %p216
    %p218 = scmp.ne.s32.totalorder %s207, %s210
    %p219 = scmp.eq.s32.totalorder %s20, 1
    %p220 = por %p218, %p219
    %p221 = scmp.ne.s32.totalorder %s210, %s211
    %p222 = scmp.eq.s32.totalorder %s20, 0
    %p223 = por %p221, %p222
    %p224 = scmp.ne.s32.totalorder %s210, %s211
    %p225 = scmp.eq.s32.totalorder %s21, 1
    %p226 = por %p224, %p225
    %p228 = scmp.ne.s32.totalorder %s211, %s227
    %p229 = scmp.eq.s32.totalorder %s21, 0
    %p230 = por %p228, %p229
    %s231 = ssub.s32 %s22, %s34
    %s232 = ssub.s32 %s23, %s30
    %s233 = sor.u32 %s231, %s232
    %p234 = scmp.eq.s32.totalorder %s233, 0
    %s236 = sadd.s32 %s235, 1
    %s237 = scalar_select %p234, %s235, %s236
    %p240 = pneg %p234
    %p241 = scmp.eq.s32.totalorder %s15, 1
    %p242 = por %p240, %p241
    %p243 = scmp.ne.s32.totalorder %s235, %s238
    %p244 = scmp.eq.s32.totalorder %s15, 0
    %p245 = por %p243, %p244
    %p246 = scmp.ne.s32.totalorder %s235, %s238
    %p247 = scmp.eq.s32.totalorder %s20, 1
    %p248 = por %p246, %p247
    %p249 = scmp.ne.s32.totalorder %s238, %s239
    %p250 = scmp.eq.s32.totalorder %s20, 0
    %p251 = por %p249, %p250
    %p252 = scmp.ne.s32.totalorder %s238, %s239
    %p253 = scmp.eq.s32.totalorder %s21, 1
    %p254 = por %p252, %p253
    %p256 = scmp.ne.s32.totalorder %s239, %s255
    %p257 = scmp.eq.s32.totalorder %s21, 0
    %p258 = por %p256, %p257
    %p259 = scmp.le.s32.totalorder 1, %s15
    %p260 = scmp.lt.s32.totalorder %s15, 3
    %p261 = pnand %p259, %p260
    %p262 = pneg %p261
    // Predicated region
    $region9: #{conv_block_forward.4} parent=5 // pred_check
      _
    $region10: #{conv_block_forward.4} parent=5 // pred_check_branch
      %264 = sbr.rel (%p261) target = $region12
    $region11: #{conv_block_forward.4} parent=5 // pred_region
      %s265 = ssub.s32 %s15, 1
      // Predicated region
      $region13: #{conv_block_forward.4} parent=11 // pred_check
        %p266 = pneg %p104
      $region14: #{conv_block_forward.4} parent=11 // pred_check_branch
        %268 = sbr.rel (%p266) target = $region16
      $region15: #{conv_block_forward.4} parent=11 // pred_region
        _
      $region16: #{conv_block_forward.4} parent=11 // pred_fallthru
        _
      // Predicated region
      $region17: #{conv_block_forward.4} parent=11 // pred_check
        %p269 = pneg %p125
      $region18: #{conv_block_forward.4} parent=11 // pred_check_branch
        %271 = sbr.rel (%p269) target = $region20
      $region19: #{conv_block_forward.4} parent=11 // pred_region
        _
      $region20: #{conv_block_forward.4} parent=11 // pred_fallthru
        _
      // Predicated region
      $region21: #{conv_block_forward.4} parent=11 // pred_check
        %p272 = pneg %p146
      $region22: #{conv_block_forward.4} parent=11 // pred_check_branch
        %274 = sbr.rel (%p272) target = $region24
      $region23: #{conv_block_forward.4} parent=11 // pred_region
        _
      $region24: #{conv_block_forward.4} parent=11 // pred_fallthru
        _
      // Predicated region
      $region25: #{conv_block_forward.4} parent=11 // pred_check
        %p275 = pneg %p167
      $region26: #{conv_block_forward.4} parent=11 // pred_check_branch
        %277 = sbr.rel (%p275) target = $region28
      $region27: #{conv_block_forward.4} parent=11 // pred_region
        _
      $region28: #{conv_block_forward.4} parent=11 // pred_fallthru
        _
    $region12: #{conv_block_forward.4} parent=5 // pred_fallthru
      _
    %p278 = scmp.lt.s32.totalorder %s15, 2
    // Predicated region
    $region29: #{conv_block_forward.4} parent=5 // pred_check
      %p279 = pneg %p278
    $region30: #{conv_block_forward.4} parent=5 // pred_check_branch
      %281 = sbr.rel (%p279) target = $region32
    $region31: #{conv_block_forward.4} parent=5 // pred_region
      // Predicated region
      $region33: #{conv_block_forward.4} parent=31 // pred_check
        %p282 = pneg %p49
      $region34: #{conv_block_forward.4} parent=31 // pred_check_branch
        %284 = sbr.rel (%p282) target = $region36
      $region35: #{conv_block_forward.4} parent=31 // pred_region
        %s285 = smul.u32 16, %s23
        %p286 = scmp.lt.s32.totalorder %s22, 1
        %s287 = scalar_select %p286, %s22, 1
        %p288 = scmp.lt.s32.totalorder %s285, 15
        %s289 = scalar_select %p288, %s285, 15
        %s290 = smul.addr %s289, 2
        %s291 = smul.addr %s287, 32
        %s292 = sadd.s32 %s290, %s291
        %s293 = smul.addr %s292, 4
        %s294 = scalar_lea.vmem %s0, %s293
        %s295 = smul.u32 16, %s23
      $region36: #{conv_block_forward.4} parent=31 // pred_fallthru
        _
      // Predicated region
      $region37: #{conv_block_forward.4} parent=31 // pred_check
        %p296 = pneg %p77
      $region38: #{conv_block_forward.4} parent=31 // pred_check_branch
        %298 = sbr.rel (%p296) target = $region40
      $region39: #{conv_block_forward.4} parent=31 // pred_region
        %p299 = scmp.lt.s32.totalorder %s22, 1
        %s300 = scalar_select %p299, %s22, 1
        %p301 = scmp.lt.s32.totalorder %s23, 0
        %s302 = scalar_select %p301, %s23, 0
        %s303 = smul.addr %s302, 4
        %s304 = smul.addr %s300, 4
        %s305 = sadd.s32 %s303, %s304
        %s306 = smul.addr %s305, 4
        %s307 = scalar_lea.vmem %s1, %s306
      $region40: #{conv_block_forward.4} parent=31 // pred_fallthru
        _
    $region32: #{conv_block_forward.4} parent=5 // pred_fallthru
      _
    %p308 = scmp.le.s32.totalorder 1, %s15
    %p309 = scmp.lt.s32.totalorder %s15, 3
    %p310 = pnand %p308, %p309
    %p311 = pneg %p310
    // Predicated region
    $region41: #{conv_block_forward.4} parent=5 // pred_check
      _
    $region42: #{conv_block_forward.4} parent=5 // pred_check_branch
      %313 = sbr.rel (%p310) target = $region44
    $region43: #{conv_block_forward.4} parent=5 // pred_region
      %s314 = ssub.s32 %s15, 1
      %s315 = smul.u32 16, %s25
      %p316 = scmp.lt.s32.totalorder %s24, 1
      %s317 = scalar_select %p316, %s24, 1
      %p318 = scmp.lt.s32.totalorder %s315, 15
      %s319 = scalar_select %p318, %s315, 15
      %s320 = smul.addr %s319, 2
      %s321 = smul.addr %s317, 32
      %s322 = sadd.s32 %s320, %s321
      %s323 = smul.addr %s322, 4
      %s324 = scalar_lea.vmem %s0, %s323
      %p325 = pneg %p55
      %p326 = pneg %p52
      %p327 = scmp.lt.s32.totalorder %s24, 1
      %s328 = scalar_select %p327, %s24, 1
      %p329 = scmp.lt.s32.totalorder %s25, 0
      %s330 = scalar_select %p329, %s25, 0
      %s331 = smul.addr %s330, 4
      %s332 = smul.addr %s328, 4
      %s333 = sadd.s32 %s331, %s332
      %s334 = smul.addr %s333, 4
      %s335 = scalar_lea.vmem %s1, %s334
      %p336 = pneg %p83
      %p337 = pneg %p80
      %p338 = pneg %p104
      %p339 = pneg %p101
      %p340 = pneg %p125
      %p341 = pneg %p122
      %p342 = pneg %p146
      %p343 = pneg %p143
      %p344 = pneg %p167
      %p345 = pneg %p164
      %p346 = pneg %p195
      %p347 = pneg %p192
      %s348 = smul.u32 16, %s25
      %p349 = scmp.lt.s32.totalorder %s24, 1
      %s350 = scalar_select %p349, %s24, 1
      %p351 = scmp.lt.s32.totalorder %s348, 15
      %s352 = scalar_select %p351, %s348, 15
      %s353 = smul.addr %s352, 2
      %s354 = smul.addr %s350, 32
      %s355 = sadd.s32 %s353, %s354
      %s356 = smul.addr %s355, 8
      %s357 = scalar_lea.vmem %s6, %s356
      %p358 = pneg %p223
      %p359 = pneg %p220
      %p360 = scmp.lt.s32.totalorder %s24, 1
      %s361 = scalar_select %p360, %s24, 1
      %p362 = scmp.lt.s32.totalorder %s25, 0
      %s363 = scalar_select %p362, %s25, 0
      %s364 = sadd.s32 %s363, %s361
      %s365 = scalar_lea.vmem %s7, %s364
      %p366 = pneg %p251
      %p367 = pneg %p248
      %p368 = scmp.lt.s32.totalorder %s24, 1
      %s369 = scalar_select %p368, %s24, 1
      %p370 = scmp.lt.s32.totalorder %s25, 0
      %s371 = scalar_select %p370, %s25, 0
      %s372 = sadd.s32 %s371, %s369
      %s373 = scalar_lea.vmem %s8, %s372
      %s374 = smul.u32 16, %s25
      %p375 = scmp.lt.s32.totalorder %s24, 1
      %s376 = scalar_select %p375, %s24, 1
      %p377 = scmp.lt.s32.totalorder %s374, 15
      %s378 = scalar_select %p377, %s374, 15
      %s379 = smul.addr %s378, 2
      %s380 = smul.addr %s376, 32
      %s381 = sadd.s32 %s379, %s380
      %s382 = smul.addr %s381, 4
      %s383 = scalar_lea.vmem %s0, %s382
      %s384 = smul.u32 16, %s25
      %p385 = scmp.lt.s32.totalorder %s24, 1
      %s386 = scalar_select %p385, %s24, 1
      %p387 = scmp.lt.s32.totalorder %s25, 0
      %s388 = scalar_select %p387, %s25, 0
      %s389 = smul.addr %s388, 4
      %s390 = smul.addr %s386, 4
      %s391 = sadd.s32 %s389, %s390
      %s392 = smul.addr %s391, 4
      %s393 = scalar_lea.vmem %s1, %s392
      %s394 = smul.u32 16, %s25
      %p395 = scmp.lt.s32.totalorder %s24, 1
      %s396 = scalar_select %p395, %s24, 1
      %p397 = scmp.lt.s32.totalorder %s394, 15
      %s398 = scalar_select %p397, %s394, 15
      %s399 = smul.addr %s398, 2
      %s400 = smul.addr %s396, 32
      %s401 = sadd.s32 %s399, %s400
      %s402 = smul.addr %s401, 8
      %s403 = scalar_lea.vmem %s6, %s402
      %s404 = smul.u32 16, %s25
      %p405 = scmp.lt.s32.totalorder %s24, 1
      %s406 = scalar_select %p405, %s24, 1
      %p407 = scmp.lt.s32.totalorder %s25, 0
      %s408 = scalar_select %p407, %s25, 0
      %s409 = sadd.s32 %s408, %s406
      %s410 = scalar_lea.vmem %s7, %s409
      %p411 = scmp.lt.s32.totalorder %s24, 1
      %s412 = scalar_select %p411, %s24, 1
      %p413 = scmp.lt.s32.totalorder %s25, 0
      %s414 = scalar_select %p413, %s25, 0
      %s415 = sadd.s32 %s414, %s412
      %s416 = scalar_lea.vmem %s8, %s415
      %vm418 = vcmask 57344
      %419 = vst.msk [vmem:[#allocation2] sm:$0x1] %vm418, 0.0
      %420 = vst.msk [vmem:[#allocation2 + $0x18] sm:$0x1] %vm418, 0.0
      %421 = vst.msk [vmem:[#allocation2 + $0x30] sm:$0x1] %vm418, 0.0
      %422 = vst.msk [vmem:[#allocation2 + $0x48] sm:$0x1] %vm418, 0.0
      %423 = vst.msk [vmem:[#allocation2 + $0x60] sm:$0x1] %vm418, 0.0
      %424 = vst.msk [vmem:[#allocation2 + $0x78] sm:$0x1] %vm418, 0.0
      %425 = vst.msk [vmem:[#allocation2 + $0x90] sm:$0x1] %vm418, 0.0
      %426 = vst.msk [vmem:[#allocation2 + $0xa8] sm:$0x1] %vm418, 0.0
      %427 = vst.msk [vmem:[#allocation2 + $0xc0] sm:$0x1] %vm418, 0.0
      %428 = vst.msk [vmem:[#allocation2 + $0xd8] sm:$0x1] %vm418, 0.0
      %429 = vst.msk [vmem:[#allocation2 + $0xf0] sm:$0x1] %vm418, 0.0
      %430 = vst.msk [vmem:[#allocation2 + $0x108] sm:$0x1] %vm418, 0.0
      %431 = vst.msk [vmem:[#allocation2 + $0x120] sm:$0x1] %vm418, 0.0
      %432 = vst.msk [vmem:[#allocation2 + $0x138] sm:$0x1] %vm418, 0.0
      %433 = vst.msk [vmem:[#allocation2 + $0x150] sm:$0x1] %vm418, 0.0
      %434 = vst.msk [vmem:[#allocation2 + $0x168] sm:$0x1] %vm418, 0.0
      %435 = vst.msk [vmem:[#allocation2 + $0x180] sm:$0x1] %vm418, 0.0
      %436 = vst.msk [vmem:[#allocation2 + $0x198] sm:$0x1] %vm418, 0.0
      %437 = vst.msk [vmem:[#allocation2 + $0x11] sm:$0x1] %vm418, 0.0
      %438 = vst.msk [vmem:[#allocation2 + $0x29] sm:$0x1] %vm418, 0.0
      %439 = vst.msk [vmem:[#allocation2 + $0x41] sm:$0x1] %vm418, 0.0
      %440 = vst.msk [vmem:[#allocation2 + $0x59] sm:$0x1] %vm418, 0.0
      %441 = vst.msk [vmem:[#allocation2 + $0x71] sm:$0x1] %vm418, 0.0
      %442 = vst.msk [vmem:[#allocation2 + $0x89] sm:$0x1] %vm418, 0.0
      %443 = vst.msk [vmem:[#allocation2 + $0xa1] sm:$0x1] %vm418, 0.0
      %444 = vst.msk [vmem:[#allocation2 + $0xb9] sm:$0x1] %vm418, 0.0
      %445 = vst.msk [vmem:[#allocation2 + $0xd1] sm:$0x1] %vm418, 0.0
      %446 = vst.msk [vmem:[#allocation2 + $0xe9] sm:$0x1] %vm418, 0.0
      %447 = vst.msk [vmem:[#allocation2 + $0x101] sm:$0x1] %vm418, 0.0
      %448 = vst.msk [vmem:[#allocation2 + $0x119] sm:$0x1] %vm418, 0.0
      %449 = vst.msk [vmem:[#allocation2 + $0x131] sm:$0x1] %vm418, 0.0
      %450 = vst.msk [vmem:[#allocation2 + $0x149] sm:$0x1] %vm418, 0.0
      %451 = vst.msk [vmem:[#allocation2 + $0x161] sm:$0x1] %vm418, 0.0
      %452 = vst.msk [vmem:[#allocation2 + $0x179] sm:$0x1] %vm418, 0.0
      %453 = vst.msk [vmem:[#allocation2 + $0x191] sm:$0x1] %vm418, 0.0
      %454 = vst.msk [vmem:[#allocation2 + $0x1a9] sm:$0x1] %vm418, 0.0
      %v455 = vld [vmem:[%s393] sm:$0xf]
      %v456 = vld [vmem:[%s393 + $0x4] sm:$0xf]
      %v457 = vunpack.c.l.bf16 %v455
      %v458 = vunpack.c.l.bf16 %v456
      %v459 = vld [vmem:[%s4] sm:$0x1]
      %v461 = vlaneseq
      %v462 = vshrl.u32 %v461, 7
      %v463 = vsub.s32 0, %v462
      %v464 = vrot.slane %v459, %v463
      %v466 = vmul.f32 %v457, %v464
      %v467 = vmul.f32 %v458, %v464
      %v468 = vld [vmem:[%s5] sm:$0x1]
      %v470 = vlaneseq
      %v471 = vshrl.u32 %v470, 7
      %v472 = vsub.s32 0, %v471
      %v473 = vrot.slane %v468, %v472
      %v475 = vadd.f32 %v466, %v473
      %v476 = vadd.f32 %v467, %v473
      %v477 = vmax.f32 %v475, 0.0
      %v478 = vmax.f32 %v476, 0.0
      %s479 = scalar_lea.vmem %s393, 8
      %v480 = vld [vmem:[%s479] sm:$0xf]
      %v481 = vld [vmem:[%s479 + $0x4] sm:$0xf]
      %v482 = vunpack.c.l.bf16 %v480
      %v483 = vunpack.c.l.bf16 %v481
      %v484 = vmul.f32 %v482, %v464
      %v485 = vmul.f32 %v483, %v464
      %v486 = vadd.f32 %v484, %v473
      %v487 = vadd.f32 %v485, %v473
      %v488 = vmax.f32 %v486, 0.0
      %v489 = vmax.f32 %v487, 0.0
      %p490 = scmp.gt.s32.totalorder %s25, 0
      %s491 = scalar_select %p490, 1, 0
      %v492 = vstv %s491
      %vm493 = vcmp.eq.s32.totalorder %v492, 1
      %v494 = vsel %vm493, %v477, 0.0
      %v495 = vsel %vm493, %v478, 0.0
      %p496 = scmp.lt.s32.totalorder %s25, 0
      %s497 = scalar_select %p496, 1, 0
      %v498 = vstv %s497
      %vm499 = vcmp.eq.s32.totalorder %v498, 1
      %v500 = vsel %vm499, %v488, 0.0
      %v501 = vsel %vm499, %v489, 0.0
      %vm502 = vcmask 64512
      %503 = vst.msk [vmem:[#allocation2 + $0x1] sm:$0xff] %vm502, %v494
      %504 = vst.msk [vmem:[#allocation2 + $0x9] sm:$0xff] %vm502, %v495
      %s505 = scalar_lea.vmem [#allocation2], 408
      %506 = vst.msk [vmem:[%s505 + $0x1] sm:$0xff] %vm502, %v500
      %507 = vst.msk [vmem:[%s505 + $0x9] sm:$0xff] %vm502, %v501
      %v508 = vld [vmem:[%s383] sm:$0xf]
      %v509 = vld [vmem:[%s383 + $0x4] sm:$0xf]
      %v510 = vld [vmem:[%s383 + $0x8] sm:$0xf]
      %v511 = vld [vmem:[%s383 + $0xc] sm:$0xf]
      %v512 = vld [vmem:[%s383 + $0x10] sm:$0xf]
      %v513 = vld [vmem:[%s383 + $0x14] sm:$0xf]
      %v514 = vld [vmem:[%s383 + $0x18] sm:$0xf]
      %v515 = vld [vmem:[%s383 + $0x1c] sm:$0xf]
      %v516 = vld [vmem:[%s383 + $0x20] sm:$0xf]
      %v517 = vld [vmem:[%s383 + $0x24] sm:$0xf]
      %v518 = vld [vmem:[%s383 + $0x28] sm:$0xf]
      %v519 = vld [vmem:[%s383 + $0x2c] sm:$0xf]
      %v520 = vld [vmem:[%s383 + $0x30] sm:$0xf]
      %v521 = vld [vmem:[%s383 + $0x34] sm:$0xf]
      %v522 = vld [vmem:[%s383 + $0x38] sm:$0xf]
      %v523 = vld [vmem:[%s383 + $0x3c] sm:$0xf]
      %v524 = vld [vmem:[%s383 + $0x40] sm:$0xf]
      %v525 = vld [vmem:[%s383 + $0x44] sm:$0xf]
      %v526 = vld [vmem:[%s383 + $0x48] sm:$0xf]
      %v527 = vld [vmem:[%s383 + $0x4c] sm:$0xf]
      %v528 = vld [vmem:[%s383 + $0x50] sm:$0xf]
      %v529 = vld [vmem:[%s383 + $0x54] sm:$0xf]
      %v530 = vld [vmem:[%s383 + $0x58] sm:$0xf]
      %v531 = vld [vmem:[%s383 + $0x5c] sm:$0xf]
      %v532 = vld [vmem:[%s383 + $0x60] sm:$0xf]
      %v533 = vld [vmem:[%s383 + $0x64] sm:$0xf]
      %v534 = vld [vmem:[%s383 + $0x68] sm:$0xf]
      %v535 = vld [vmem:[%s383 + $0x6c] sm:$0xf]
      %v536 = vld [vmem:[%s383 + $0x70] sm:$0xf]
      %v537 = vld [vmem:[%s383 + $0x74] sm:$0xf]
      %v538 = vld [vmem:[%s383 + $0x78] sm:$0xf]
      %v539 = vld [vmem:[%s383 + $0x7c] sm:$0xf]
      %v540 = vunpack.c.l.bf16 %v508
      %v541 = vunpack.c.l.bf16 %v509
      %v542 = vunpack.c.l.bf16 %v510
      %v543 = vunpack.c.l.bf16 %v511
      %v544 = vunpack.c.l.bf16 %v512
      %v545 = vunpack.c.l.bf16 %v513
      %v546 = vunpack.c.l.bf16 %v514
      %v547 = vunpack.c.l.bf16 %v515
      %v548 = vunpack.c.l.bf16 %v516
      %v549 = vunpack.c.l.bf16 %v517
      %v550 = vunpack.c.l.bf16 %v518
      %v551 = vunpack.c.l.bf16 %v519
      %v552 = vunpack.c.l.bf16 %v520
      %v553 = vunpack.c.l.bf16 %v521
      %v554 = vunpack.c.l.bf16 %v522
      %v555 = vunpack.c.l.bf16 %v523
      %v556 = vunpack.c.l.bf16 %v524
      %v557 = vunpack.c.l.bf16 %v525
      %v558 = vunpack.c.l.bf16 %v526
      %v559 = vunpack.c.l.bf16 %v527
      %v560 = vunpack.c.l.bf16 %v528
      %v561 = vunpack.c.l.bf16 %v529
      %v562 = vunpack.c.l.bf16 %v530
      %v563 = vunpack.c.l.bf16 %v531
      %v564 = vunpack.c.l.bf16 %v532
      %v565 = vunpack.c.l.bf16 %v533
      %v566 = vunpack.c.l.bf16 %v534
      %v567 = vunpack.c.l.bf16 %v535
      %v568 = vunpack.c.l.bf16 %v536
      %v569 = vunpack.c.l.bf16 %v537
      %v570 = vunpack.c.l.bf16 %v538
      %v571 = vunpack.c.l.bf16 %v539
      %v572 = vld [vmem:[%s4] sm:$0x1]
      %v574 = vlaneseq
      %v575 = vshrl.u32 %v574, 7
      %v576 = vsub.s32 0, %v575
      %v577 = vrot.slane %v572, %v576
      %v579 = vmul.f32 %v540, %v577
      %v580 = vmul.f32 %v541, %v577
      %v581 = vmul.f32 %v542, %v577
      %v582 = vmul.f32 %v543, %v577
      %v583 = vmul.f32 %v544, %v577
      %v584 = vmul.f32 %v545, %v577
      %v585 = vmul.f32 %v546, %v577
      %v586 = vmul.f32 %v547, %v577
      %v587 = vmul.f32 %v548, %v577
      %v588 = vmul.f32 %v549, %v577
      %v589 = vmul.f32 %v550, %v577
      %v590 = vmul.f32 %v551, %v577
      %v591 = vmul.f32 %v552, %v577
      %v592 = vmul.f32 %v553, %v577
      %v593 = vmul.f32 %v554, %v577
      %v594 = vmul.f32 %v555, %v577
      %v595 = vmul.f32 %v556, %v577
      %v596 = vmul.f32 %v557, %v577
      %v597 = vmul.f32 %v558, %v577
      %v598 = vmul.f32 %v559, %v577
      %v599 = vmul.f32 %v560, %v577
      %v600 = vmul.f32 %v561, %v577
      %v601 = vmul.f32 %v562, %v577
      %v602 = vmul.f32 %v563, %v577
      %v603 = vmul.f32 %v564, %v577
      %v604 = vmul.f32 %v565, %v577
      %v605 = vmul.f32 %v566, %v577
      %v606 = vmul.f32 %v567, %v577
      %v607 = vmul.f32 %v568, %v577
      %v608 = vmul.f32 %v569, %v577
      %v609 = vmul.f32 %v570, %v577
      %v610 = vmul.f32 %v571, %v577
      %v611 = vld [vmem:[%s5] sm:$0x1]
      %v613 = vlaneseq
      %v614 = vshrl.u32 %v613, 7
      %v615 = vsub.s32 0, %v614
      %v616 = vrot.slane %v611, %v615
      %v618 = vadd.f32 %v579, %v616
      %v619 = vadd.f32 %v580, %v616
      %v620 = vadd.f32 %v581, %v616
      %v621 = vadd.f32 %v582, %v616
      %v622 = vadd.f32 %v583, %v616
      %v623 = vadd.f32 %v584, %v616
      %v624 = vadd.f32 %v585, %v616
      %v625 = vadd.f32 %v586, %v616
      %v626 = vadd.f32 %v587, %v616
      %v627 = vadd.f32 %v588, %v616
      %v628 = vadd.f32 %v589, %v616
      %v629 = vadd.f32 %v590, %v616
      %v630 = vadd.f32 %v591, %v616
      %v631 = vadd.f32 %v592, %v616
      %v632 = vadd.f32 %v593, %v616
      %v633 = vadd.f32 %v594, %v616
      %v634 = vadd.f32 %v595, %v616
      %v635 = vadd.f32 %v596, %v616
      %v636 = vadd.f32 %v597, %v616
      %v637 = vadd.f32 %v598, %v616
      %v638 = vadd.f32 %v599, %v616
      %v639 = vadd.f32 %v600, %v616
      %v640 = vadd.f32 %v601, %v616
      %v641 = vadd.f32 %v602, %v616
      %v642 = vadd.f32 %v603, %v616
      %v643 = vadd.f32 %v604, %v616
      %v644 = vadd.f32 %v605, %v616
      %v645 = vadd.f32 %v606, %v616
      %v646 = vadd.f32 %v607, %v616
      %v647 = vadd.f32 %v608, %v616
      %v648 = vadd.f32 %v609, %v616
      %v649 = vadd.f32 %v610, %v616
      %v650 = vmax.f32 %v618, 0.0
      %v651 = vmax.f32 %v619, 0.0
      %v652 = vmax.f32 %v620, 0.0
      %v653 = vmax.f32 %v621, 0.0
      %v654 = vmax.f32 %v622, 0.0
      %v655 = vmax.f32 %v623, 0.0
      %v656 = vmax.f32 %v624, 0.0
      %v657 = vmax.f32 %v625, 0.0
      %v658 = vmax.f32 %v626, 0.0
      %v659 = vmax.f32 %v627, 0.0
      %v660 = vmax.f32 %v628, 0.0
      %v661 = vmax.f32 %v629, 0.0
      %v662 = vmax.f32 %v630, 0.0
      %v663 = vmax.f32 %v631, 0.0
      %v664 = vmax.f32 %v632, 0.0
      %v665 = vmax.f32 %v633, 0.0
      %v666 = vmax.f32 %v634, 0.0
      %v667 = vmax.f32 %v635, 0.0
      %v668 = vmax.f32 %v636, 0.0
      %v669 = vmax.f32 %v637, 0.0
      %v670 = vmax.f32 %v638, 0.0
      %v671 = vmax.f32 %v639, 0.0
      %v672 = vmax.f32 %v640, 0.0
      %v673 = vmax.f32 %v641, 0.0
      %v674 = vmax.f32 %v642, 0.0
      %v675 = vmax.f32 %v643, 0.0
      %v676 = vmax.f32 %v644, 0.0
      %v677 = vmax.f32 %v645, 0.0
      %v678 = vmax.f32 %v646, 0.0
      %v679 = vmax.f32 %v647, 0.0
      %v680 = vmax.f32 %v648, 0.0
      %v681 = vmax.f32 %v649, 0.0
      %s682 = scalar_lea.vmem [#allocation2], 24
      %683 = vst.msk [vmem:[%s682 + $0x1] sm:$0xff] %vm502, %v650
      %684 = vst.msk [vmem:[%s682 + $0x9] sm:$0xff] %vm502, %v651
      %685 = vst.msk [vmem:[%s682 + $0x19] sm:$0xff] %vm502, %v652
      %686 = vst.msk [vmem:[%s682 + $0x21] sm:$0xff] %vm502, %v653
      %687 = vst.msk [vmem:[%s682 + $0x31] sm:$0xff] %vm502, %v654
      %688 = vst.msk [vmem:[%s682 + $0x39] sm:$0xff] %vm502, %v655
      %689 = vst.msk [vmem:[%s682 + $0x49] sm:$0xff] %vm502, %v656
      %690 = vst.msk [vmem:[%s682 + $0x51] sm:$0xff] %vm502, %v657
      %691 = vst.msk [vmem:[%s682 + $0x61] sm:$0xff] %vm502, %v658
      %692 = vst.msk [vmem:[%s682 + $0x69] sm:$0xff] %vm502, %v659
      %693 = vst.msk [vmem:[%s682 + $0x79] sm:$0xff] %vm502, %v660
      %694 = vst.msk [vmem:[%s682 + $0x81] sm:$0xff] %vm502, %v661
      %695 = vst.msk [vmem:[%s682 + $0x91] sm:$0xff] %vm502, %v662
      %696 = vst.msk [vmem:[%s682 + $0x99] sm:$0xff] %vm502, %v663
      %697 = vst.msk [vmem:[%s682 + $0xa9] sm:$0xff] %vm502, %v664
      %698 = vst.msk [vmem:[%s682 + $0xb1] sm:$0xff] %vm502, %v665
      %699 = vst.msk [vmem:[%s682 + $0xc1] sm:$0xff] %vm502, %v666
      %700 = vst.msk [vmem:[%s682 + $0xc9] sm:$0xff] %vm502, %v667
      %701 = vst.msk [vmem:[%s682 + $0xd9] sm:$0xff] %vm502, %v668
      %702 = vst.msk [vmem:[%s682 + $0xe1] sm:$0xff] %vm502, %v669
      %703 = vst.msk [vmem:[%s682 + $0xf1] sm:$0xff] %vm502, %v670
      %704 = vst.msk [vmem:[%s682 + $0xf9] sm:$0xff] %vm502, %v671
      %705 = vst.msk [vmem:[%s682 + $0x109] sm:$0xff] %vm502, %v672
      %706 = vst.msk [vmem:[%s682 + $0x111] sm:$0xff] %vm502, %v673
      %707 = vst.msk [vmem:[%s682 + $0x121] sm:$0xff] %vm502, %v674
      %708 = vst.msk [vmem:[%s682 + $0x129] sm:$0xff] %vm502, %v675
      %709 = vst.msk [vmem:[%s682 + $0x139] sm:$0xff] %vm502, %v676
      %710 = vst.msk [vmem:[%s682 + $0x141] sm:$0xff] %vm502, %v677
      %711 = vst.msk [vmem:[%s682 + $0x151] sm:$0xff] %vm502, %v678
      %712 = vst.msk [vmem:[%s682 + $0x159] sm:$0xff] %vm502, %v679
      %713 = vst.msk [vmem:[%s682 + $0x169] sm:$0xff] %vm502, %v680
      %714 = vst.msk [vmem:[%s682 + $0x171] sm:$0xff] %vm502, %v681
      %v715 = vld [vmem:[#allocation2] sm:$0xff]
      %v716 = vld [vmem:[#allocation2 + $0x8] sm:$0xff]
      %v717 = vld [vmem:[#allocation2 + $0x18] sm:$0xff]
      %v718 = vld [vmem:[#allocation2 + $0x20] sm:$0xff]
      %v719 = vld [vmem:[#allocation2 + $0x30] sm:$0xff]
      %v720 = vld [vmem:[#allocation2 + $0x38] sm:$0xff]
      %v721 = vld [vmem:[#allocation2 + $0x48] sm:$0xff]
      %v722 = vld [vmem:[#allocation2 + $0x50] sm:$0xff]
      %v723 = vld [vmem:[#allocation2 + $0x60] sm:$0xff]
      %v724 = vld [vmem:[#allocation2 + $0x68] sm:$0xff]
      %v725 = vld [vmem:[#allocation2 + $0x78] sm:$0xff]
      %v726 = vld [vmem:[#allocation2 + $0x80] sm:$0xff]
      %v727 = vld [vmem:[#allocation2 + $0x90] sm:$0xff]
      %v728 = vld [vmem:[#allocation2 + $0x98] sm:$0xff]
      %v729 = vld [vmem:[#allocation2 + $0xa8] sm:$0xff]
      %v730 = vld [vmem:[#allocation2 + $0xb0] sm:$0xff]
      %v731 = vld [vmem:[#allocation2 + $0xc0] sm:$0xff]
      %v732 = vld [vmem:[#allocation2 + $0xc8] sm:$0xff]
      %v733 = vld [vmem:[#allocation2 + $0xd8] sm:$0xff]
      %v734 = vld [vmem:[#allocation2 + $0xe0] sm:$0xff]
      %v735 = vld [vmem:[#allocation2 + $0xf0] sm:$0xff]
      %v736 = vld [vmem:[#allocation2 + $0xf8] sm:$0xff]
      %v737 = vld [vmem:[#allocation2 + $0x108] sm:$0xff]
      %v738 = vld [vmem:[#allocation2 + $0x110] sm:$0xff]
      %v739 = vld [vmem:[#allocation2 + $0x120] sm:$0xff]
      %v740 = vld [vmem:[#allocation2 + $0x128] sm:$0xff]
      %v741 = vld [vmem:[#allocation2 + $0x138] sm:$0xff]
      %v742 = vld [vmem:[#allocation2 + $0x140] sm:$0xff]
      %v743 = vld [vmem:[#allocation2 + $0x150] sm:$0xff]
      %v744 = vld [vmem:[#allocation2 + $0x158] sm:$0xff]
      %v745 = vld [vmem:[#allocation2 + $0x168] sm:$0xff]
      %v746 = vld [vmem:[#allocation2 + $0x170] sm:$0xff]
      %v747 = vpack.c.bf16 %v716, %v715
      %v748 = vpack.c.bf16 %v718, %v717
      %v749 = vpack.c.bf16 %v720, %v719
      %v750 = vpack.c.bf16 %v722, %v721
      %v751 = vpack.c.bf16 %v724, %v723
      %v752 = vpack.c.bf16 %v726, %v725
      %v753 = vpack.c.bf16 %v728, %v727
      %v754 = vpack.c.bf16 %v730, %v729
      %v755 = vpack.c.bf16 %v732, %v731
      %v756 = vpack.c.bf16 %v734, %v733
      %v757 = vpack.c.bf16 %v736, %v735
      %v758 = vpack.c.bf16 %v738, %v737
      %v759 = vpack.c.bf16 %v740, %v739
      %v760 = vpack.c.bf16 %v742, %v741
      %v761 = vpack.c.bf16 %v744, %v743
      %v762 = vpack.c.bf16 %v746, %v745
      %763 = vst.msk [vmem:[#allocation3] sm:$0xff] %vm502, %v747
      %764 = vst.msk [vmem:[#allocation3 + $0x8] sm:$0xff] %vm502, %v748
      %765 = vst.msk [vmem:[#allocation3 + $0x10] sm:$0xff] %vm502, %v749
      %766 = vst.msk [vmem:[#allocation3 + $0x18] sm:$0xff] %vm502, %v750
      %767 = vst.msk [vmem:[#allocation3 + $0x20] sm:$0xff] %vm502, %v751
      %768 = vst.msk [vmem:[#allocation3 + $0x28] sm:$0xff] %vm502, %v752
      %769 = vst.msk [vmem:[#allocation3 + $0x30] sm:$0xff] %vm502, %v753
      %770 = vst.msk [vmem:[#allocation3 + $0x38] sm:$0xff] %vm502, %v754
      %771 = vst.msk [vmem:[#allocation3 + $0x40] sm:$0xff] %vm502, %v755
      %772 = vst.msk [vmem:[#allocation3 + $0x48] sm:$0xff] %vm502, %v756
      %773 = vst.msk [vmem:[#allocation3 + $0x50] sm:$0xff] %vm502, %v757
      %774 = vst.msk [vmem:[#allocation3 + $0x58] sm:$0xff] %vm502, %v758
      %775 = vst.msk [vmem:[#allocation3 + $0x60] sm:$0xff] %vm502, %v759
      %776 = vst.msk [vmem:[#allocation3 + $0x68] sm:$0xff] %vm502, %v760
      %777 = vst.msk [vmem:[#allocation3 + $0x70] sm:$0xff] %vm502, %v761
      %778 = vst.msk [vmem:[#allocation3 + $0x78] sm:$0xff] %vm502, %v762
      %v779 = vld [vmem:[#allocation2 + $0x1] sm:$0xff]
      %v780 = vld [vmem:[#allocation2 + $0x9] sm:$0xff]
      %v781 = vld [vmem:[#allocation2 + $0x19] sm:$0xff]
      %v782 = vld [vmem:[#allocation2 + $0x21] sm:$0xff]
      %v783 = vld [vmem:[#allocation2 + $0x31] sm:$0xff]
      %v784 = vld [vmem:[#allocation2 + $0x39] sm:$0xff]
      %v785 = vld [vmem:[#allocation2 + $0x49] sm:$0xff]
      %v786 = vld [vmem:[#allocation2 + $0x51] sm:$0xff]
      %v787 = vld [vmem:[#allocation2 + $0x61] sm:$0xff]
      %v788 = vld [vmem:[#allocation2 + $0x69] sm:$0xff]
      %v789 = vld [vmem:[#allocation2 + $0x79] sm:$0xff]
      %v790 = vld [vmem:[#allocation2 + $0x81] sm:$0xff]
      %v791 = vld [vmem:[#allocation2 + $0x91] sm:$0xff]
      %v792 = vld [vmem:[#allocation2 + $0x99] sm:$0xff]
      %v793 = vld [vmem:[#allocation2 + $0xa9] sm:$0xff]
      %v794 = vld [vmem:[#allocation2 + $0xb1] sm:$0xff]
      %v795 = vld [vmem:[#allocation2 + $0xc1] sm:$0xff]
      %v796 = vld [vmem:[#allocation2 + $0xc9] sm:$0xff]
      %v797 = vld [vmem:[#allocation2 + $0xd9] sm:$0xff]
      %v798 = vld [vmem:[#allocation2 + $0xe1] sm:$0xff]
      %v799 = vld [vmem:[#allocation2 + $0xf1] sm:$0xff]
      %v800 = vld [vmem:[#allocation2 + $0xf9] sm:$0xff]
      %v801 = vld [vmem:[#allocation2 + $0x109] sm:$0xff]
      %v802 = vld [vmem:[#allocation2 + $0x111] sm:$0xff]
      %v803 = vld [vmem:[#allocation2 + $0x121] sm:$0xff]
      %v804 = vld [vmem:[#allocation2 + $0x129] sm:$0xff]
      %v805 = vld [vmem:[#allocation2 + $0x139] sm:$0xff]
      %v806 = vld [vmem:[#allocation2 + $0x141] sm:$0xff]
      %v807 = vld [vmem:[#allocation2 + $0x151] sm:$0xff]
      %v808 = vld [vmem:[#allocation2 + $0x159] sm:$0xff]
      %v809 = vld [vmem:[#allocation2 + $0x169] sm:$0xff]
      %v810 = vld [vmem:[#allocation2 + $0x171] sm:$0xff]
      %v811 = vpack.c.bf16 %v780, %v779
      %v812 = vpack.c.bf16 %v782, %v781
      %v813 = vpack.c.bf16 %v784, %v783
      %v814 = vpack.c.bf16 %v786, %v785
      %v815 = vpack.c.bf16 %v788, %v787
      %v816 = vpack.c.bf16 %v790, %v789
      %v817 = vpack.c.bf16 %v792, %v791
      %v818 = vpack.c.bf16 %v794, %v793
      %v819 = vpack.c.bf16 %v796, %v795
      %v820 = vpack.c.bf16 %v798, %v797
      %v821 = vpack.c.bf16 %v800, %v799
      %v822 = vpack.c.bf16 %v802, %v801
      %v823 = vpack.c.bf16 %v804, %v803
      %v824 = vpack.c.bf16 %v806, %v805
      %v825 = vpack.c.bf16 %v808, %v807
      %v826 = vpack.c.bf16 %v810, %v809
      %843 = vrot.lane.b32.xlu0 %v811, 8
      %v844 = vpop.permute.xlu0 %843
      %845 = vrot.lane.b32.xlu0 %v812, 8
      %v846 = vpop.permute.xlu0 %845
      %847 = vrot.lane.b32.xlu0 %v813, 8
      %v848 = vpop.permute.xlu0 %847
      %849 = vrot.lane.b32.xlu0 %v814, 8
      %v850 = vpop.permute.xlu0 %849
      %851 = vrot.lane.b32.xlu0 %v815, 8
      %v852 = vpop.permute.xlu0 %851
      %853 = vrot.lane.b32.xlu0 %v816, 8
      %v854 = vpop.permute.xlu0 %853
      %855 = vrot.lane.b32.xlu0 %v817, 8
      %v856 = vpop.permute.xlu0 %855
      %857 = vrot.lane.b32.xlu0 %v818, 8
      %v858 = vpop.permute.xlu0 %857
      %859 = vrot.lane.b32.xlu0 %v819, 8
      %v860 = vpop.permute.xlu0 %859
      %861 = vrot.lane.b32.xlu0 %v820, 8
      %v862 = vpop.permute.xlu0 %861
      %863 = vrot.lane.b32.xlu0 %v821, 8
      %v864 = vpop.permute.xlu0 %863
      %865 = vrot.lane.b32.xlu0 %v822, 8
      %v866 = vpop.permute.xlu0 %865
      %867 = vrot.lane.b32.xlu0 %v823, 8
      %v868 = vpop.permute.xlu0 %867
      %869 = vrot.lane.b32.xlu0 %v824, 8
      %v870 = vpop.permute.xlu0 %869
      %871 = vrot.lane.b32.xlu0 %v825, 8
      %v872 = vpop.permute.xlu0 %871
      %873 = vrot.lane.b32.xlu0 %v826, 8
      %v874 = vpop.permute.xlu0 %873
      %vm891 = vcmask 130112
      %892 = vst.msk [vmem:[#allocation3] sm:$0xff] %vm891, %v844
      %893 = vst.msk [vmem:[#allocation3 + $0x8] sm:$0xff] %vm891, %v846
      %894 = vst.msk [vmem:[#allocation3 + $0x10] sm:$0xff] %vm891, %v848
      %895 = vst.msk [vmem:[#allocation3 + $0x18] sm:$0xff] %vm891, %v850
      %896 = vst.msk [vmem:[#allocation3 + $0x20] sm:$0xff] %vm891, %v852
      %897 = vst.msk [vmem:[#allocation3 + $0x28] sm:$0xff] %vm891, %v854
      %898 = vst.msk [vmem:[#allocation3 + $0x30] sm:$0xff] %vm891, %v856
      %899 = vst.msk [vmem:[#allocation3 + $0x38] sm:$0xff] %vm891, %v858
      %900 = vst.msk [vmem:[#allocation3 + $0x40] sm:$0xff] %vm891, %v860
      %901 = vst.msk [vmem:[#allocation3 + $0x48] sm:$0xff] %vm891, %v862
      %902 = vst.msk [vmem:[#allocation3 + $0x50] sm:$0xff] %vm891, %v864
      %903 = vst.msk [vmem:[#allocation3 + $0x58] sm:$0xff] %vm891, %v866
      %904 = vst.msk [vmem:[#allocation3 + $0x60] sm:$0xff] %vm891, %v868
      %905 = vst.msk [vmem:[#allocation3 + $0x68] sm:$0xff] %vm891, %v870
      %906 = vst.msk [vmem:[#allocation3 + $0x70] sm:$0xff] %vm891, %v872
      %907 = vst.msk [vmem:[#allocation3 + $0x78] sm:$0xff] %vm891, %v874
      %v908 = vld [vmem:[#allocation2 + $0x2] sm:$0xff]
      %v909 = vld [vmem:[#allocation2 + $0xa] sm:$0xff]
      %v910 = vld [vmem:[#allocation2 + $0x1a] sm:$0xff]
      %v911 = vld [vmem:[#allocation2 + $0x22] sm:$0xff]
      %v912 = vld [vmem:[#allocation2 + $0x32] sm:$0xff]
      %v913 = vld [vmem:[#allocation2 + $0x3a] sm:$0xff]
      %v914 = vld [vmem:[#allocation2 + $0x4a] sm:$0xff]
      %v915 = vld [vmem:[#allocation2 + $0x52] sm:$0xff]
      %v916 = vld [vmem:[#allocation2 + $0x62] sm:$0xff]
      %v917 = vld [vmem:[#allocation2 + $0x6a] sm:$0xff]
      %v918 = vld [vmem:[#allocation2 + $0x7a] sm:$0xff]
      %v919 = vld [vmem:[#allocation2 + $0x82] sm:$0xff]
      %v920 = vld [vmem:[#allocation2 + $0x92] sm:$0xff]
      %v921 = vld [vmem:[#allocation2 + $0x9a] sm:$0xff]
      %v922 = vld [vmem:[#allocation2 + $0xaa] sm:$0xff]
      %v923 = vld [vmem:[#allocation2 + $0xb2] sm:$0xff]
      %v924 = vld [vmem:[#allocation2 + $0xc2] sm:$0xff]
      %v925 = vld [vmem:[#allocation2 + $0xca] sm:$0xff]
      %v926 = vld [vmem:[#allocation2 + $0xda] sm:$0xff]
      %v927 = vld [vmem:[#allocation2 + $0xe2] sm:$0xff]
      %v928 = vld [vmem:[#allocation2 + $0xf2] sm:$0xff]
      %v929 = vld [vmem:[#allocation2 + $0xfa] sm:$0xff]
      %v930 = vld [vmem:[#allocation2 + $0x10a] sm:$0xff]
      %v931 = vld [vmem:[#allocation2 + $0x112] sm:$0xff]
      %v932 = vld [vmem:[#allocation2 + $0x122] sm:$0xff]
      %v933 = vld [vmem:[#allocation2 + $0x12a] sm:$0xff]
      %v934 = vld [vmem:[#allocation2 + $0x13a] sm:$0xff]
      %v935 = vld [vmem:[#allocation2 + $0x142] sm:$0xff]
      %v936 = vld [vmem:[#allocation2 + $0x152] sm:$0xff]
      %v937 = vld [vmem:[#allocation2 + $0x15a] sm:$0xff]
      %v938 = vld [vmem:[#allocation2 + $0x16a] sm:$0xff]
      %v939 = vld [vmem:[#allocation2 + $0x172] sm:$0xff]
      %v940 = vpack.c.bf16 %v909, %v908
      %v941 = vpack.c.bf16 %v911, %v910
      %v942 = vpack.c.bf16 %v913, %v912
      %v943 = vpack.c.bf16 %v915, %v914
      %v944 = vpack.c.bf16 %v917, %v916
      %v945 = vpack.c.bf16 %v919, %v918
      %v946 = vpack.c.bf16 %v921, %v920
      %v947 = vpack.c.bf16 %v923, %v922
      %v948 = vpack.c.bf16 %v925, %v924
      %v949 = vpack.c.bf16 %v927, %v926
      %v950 = vpack.c.bf16 %v929, %v928
      %v951 = vpack.c.bf16 %v931, %v930
      %v952 = vpack.c.bf16 %v933, %v932
      %v953 = vpack.c.bf16 %v935, %v934
      %v954 = vpack.c.bf16 %v937, %v936
      %v955 = vpack.c.bf16 %v939, %v938
      %972 = vrot.lane.b32.xlu0 %v940, 16
      %v973 = vpop.permute.xlu0 %972
      %974 = vrot.lane.b32.xlu0 %v941, 16
      %v975 = vpop.permute.xlu0 %974
      %976 = vrot.lane.b32.xlu0 %v942, 16
      %v977 = vpop.permute.xlu0 %976
      %978 = vrot.lane.b32.xlu0 %v943, 16
      %v979 = vpop.permute.xlu0 %978
      %980 = vrot.lane.b32.xlu0 %v944, 16
      %v981 = vpop.permute.xlu0 %980
      %982 = vrot.lane.b32.xlu0 %v945, 16
      %v983 = vpop.permute.xlu0 %982
      %984 = vrot.lane.b32.xlu0 %v946, 16
      %v985 = vpop.permute.xlu0 %984
      %986 = vrot.lane.b32.xlu0 %v947, 16
      %v987 = vpop.permute.xlu0 %986
      %988 = vrot.lane.b32.xlu0 %v948, 16
      %v989 = vpop.permute.xlu0 %988
      %990 = vrot.lane.b32.xlu0 %v949, 16
      %v991 = vpop.permute.xlu0 %990
      %992 = vrot.lane.b32.xlu0 %v950, 16
      %v993 = vpop.permute.xlu0 %992
      %994 = vrot.lane.b32.xlu0 %v951, 16
      %v995 = vpop.permute.xlu0 %994
      %996 = vrot.lane.b32.xlu0 %v952, 16
      %v997 = vpop.permute.xlu0 %996
      %998 = vrot.lane.b32.xlu0 %v953, 16
      %v999 = vpop.permute.xlu0 %998
      %1000 = vrot.lane.b32.xlu0 %v954, 16
      %v1001 = vpop.permute.xlu0 %1000
      %1002 = vrot.lane.b32.xlu0 %v955, 16
      %v1003 = vpop.permute.xlu0 %1002
      %vm1020 = vcmask 195712
      %1021 = vst.msk [vmem:[#allocation3] sm:$0xff] %vm1020, %v973
      %1022 = vst.msk [vmem:[#allocation3 + $0x8] sm:$0xff] %vm1020, %v975
      %1023 = vst.msk [vmem:[#allocation3 + $0x10] sm:$0xff] %vm1020, %v977
      %1024 = vst.msk [vmem:[#allocation3 + $0x18] sm:$0xff] %vm1020, %v979
      %1025 = vst.msk [vmem:[#allocation3 + $0x20] sm:$0xff] %vm1020, %v981
      %1026 = vst.msk [vmem:[#allocation3 + $0x28] sm:$0xff] %vm1020, %v983
      %1027 = vst.msk [vmem:[#allocation3 + $0x30] sm:$0xff] %vm1020, %v985
      %1028 = vst.msk [vmem:[#allocation3 + $0x38] sm:$0xff] %vm1020, %v987
      %1029 = vst.msk [vmem:[#allocation3 + $0x40] sm:$0xff] %vm1020, %v989
      %1030 = vst.msk [vmem:[#allocation3 + $0x48] sm:$0xff] %vm1020, %v991
      %1031 = vst.msk [vmem:[#allocation3 + $0x50] sm:$0xff] %vm1020, %v993
      %1032 = vst.msk [vmem:[#allocation3 + $0x58] sm:$0xff] %vm1020, %v995
      %1033 = vst.msk [vmem:[#allocation3 + $0x60] sm:$0xff] %vm1020, %v997
      %1034 = vst.msk [vmem:[#allocation3 + $0x68] sm:$0xff] %vm1020, %v999
      %1035 = vst.msk [vmem:[#allocation3 + $0x70] sm:$0xff] %vm1020, %v1001
      %1036 = vst.msk [vmem:[#allocation3 + $0x78] sm:$0xff] %vm1020, %v1003
      %v1037 = vld [vmem:[%s682] sm:$0xff]
      %v1038 = vld [vmem:[%s682 + $0x8] sm:$0xff]
      %v1039 = vld [vmem:[%s682 + $0x18] sm:$0xff]
      %v1040 = vld [vmem:[%s682 + $0x20] sm:$0xff]
      %v1041 = vld [vmem:[%s682 + $0x30] sm:$0xff]
      %v1042 = vld [vmem:[%s682 + $0x38] sm:$0xff]
      %v1043 = vld [vmem:[%s682 + $0x48] sm:$0xff]
      %v1044 = vld [vmem:[%s682 + $0x50] sm:$0xff]
      %v1045 = vld [vmem:[%s682 + $0x60] sm:$0xff]
      %v1046 = vld [vmem:[%s682 + $0x68] sm:$0xff]
      %v1047 = vld [vmem:[%s682 + $0x78] sm:$0xff]
      %v1048 = vld [vmem:[%s682 + $0x80] sm:$0xff]
      %v1049 = vld [vmem:[%s682 + $0x90] sm:$0xff]
      %v1050 = vld [vmem:[%s682 + $0x98] sm:$0xff]
      %v1051 = vld [vmem:[%s682 + $0xa8] sm:$0xff]
      %v1052 = vld [vmem:[%s682 + $0xb0] sm:$0xff]
      %v1053 = vld [vmem:[%s682 + $0xc0] sm:$0xff]
      %v1054 = vld [vmem:[%s682 + $0xc8] sm:$0xff]
      %v1055 = vld [vmem:[%s682 + $0xd8] sm:$0xff]
      %v1056 = vld [vmem:[%s682 + $0xe0] sm:$0xff]
      %v1057 = vld [vmem:[%s682 + $0xf0] sm:$0xff]
      %v1058 = vld [vmem:[%s682 + $0xf8] sm:$0xff]
      %v1059 = vld [vmem:[%s682 + $0x108] sm:$0xff]
      %v1060 = vld [vmem:[%s682 + $0x110] sm:$0xff]
      %v1061 = vld [vmem:[%s682 + $0x120] sm:$0xff]
      %v1062 = vld [vmem:[%s682 + $0x128] sm:$0xff]
      %v1063 = vld [vmem:[%s682 + $0x138] sm:$0xff]
      %v1064 = vld [vmem:[%s682 + $0x140] sm:$0xff]
      %v1065 = vld [vmem:[%s682 + $0x150] sm:$0xff]
      %v1066 = vld [vmem:[%s682 + $0x158] sm:$0xff]
      %v1067 = vld [vmem:[%s682 + $0x168] sm:$0xff]
      %v1068 = vld [vmem:[%s682 + $0x170] sm:$0xff]
      %v1069 = vpack.c.bf16 %v1038, %v1037
      %v1070 = vpack.c.bf16 %v1040, %v1039
      %v1071 = vpack.c.bf16 %v1042, %v1041
      %v1072 = vpack.c.bf16 %v1044, %v1043
      %v1073 = vpack.c.bf16 %v1046, %v1045
      %v1074 = vpack.c.bf16 %v1048, %v1047
      %v1075 = vpack.c.bf16 %v1050, %v1049
      %v1076 = vpack.c.bf16 %v1052, %v1051
      %v1077 = vpack.c.bf16 %v1054, %v1053
      %v1078 = vpack.c.bf16 %v1056, %v1055
      %v1079 = vpack.c.bf16 %v1058, %v1057
      %v1080 = vpack.c.bf16 %v1060, %v1059
      %v1081 = vpack.c.bf16 %v1062, %v1061
      %v1082 = vpack.c.bf16 %v1064, %v1063
      %v1083 = vpack.c.bf16 %v1066, %v1065
      %v1084 = vpack.c.bf16 %v1068, %v1067
      %1101 = vrot.lane.b32.xlu0 %v1069, 24
      %v1102 = vpop.permute.xlu0 %1101
      %1103 = vrot.lane.b32.xlu0 %v1070, 24
      %v1104 = vpop.permute.xlu0 %1103
      %1105 = vrot.lane.b32.xlu0 %v1071, 24
      %v1106 = vpop.permute.xlu0 %1105
      %1107 = vrot.lane.b32.xlu0 %v1072, 24
      %v1108 = vpop.permute.xlu0 %1107
      %1109 = vrot.lane.b32.xlu0 %v1073, 24
      %v1110 = vpop.permute.xlu0 %1109
      %1111 = vrot.lane.b32.xlu0 %v1074, 24
      %v1112 = vpop.permute.xlu0 %1111
      %1113 = vrot.lane.b32.xlu0 %v1075, 24
      %v1114 = vpop.permute.xlu0 %1113
      %1115 = vrot.lane.b32.xlu0 %v1076, 24
      %v1116 = vpop.permute.xlu0 %1115
      %1117 = vrot.lane.b32.xlu0 %v1077, 24
      %v1118 = vpop.permute.xlu0 %1117
      %1119 = vrot.lane.b32.xlu0 %v1078, 24
      %v1120 = vpop.permute.xlu0 %1119
      %1121 = vrot.lane.b32.xlu0 %v1079, 24
      %v1122 = vpop.permute.xlu0 %1121
      %1123 = vrot.lane.b32.xlu0 %v1080, 24
      %v1124 = vpop.permute.xlu0 %1123
      %1125 = vrot.lane.b32.xlu0 %v1081, 24
      %v1126 = vpop.permute.xlu0 %1125
      %1127 = vrot.lane.b32.xlu0 %v1082, 24
      %v1128 = vpop.permute.xlu0 %1127
      %1129 = vrot.lane.b32.xlu0 %v1083, 24
      %v1130 = vpop.permute.xlu0 %1129
      %1131 = vrot.lane.b32.xlu0 %v1084, 24
      %v1132 = vpop.permute.xlu0 %1131
      %vm1149 = vcmask 261312
      %1150 = vst.msk [vmem:[#allocation3] sm:$0xff] %vm1149, %v1102
      %1151 = vst.msk [vmem:[#allocation3 + $0x8] sm:$0xff] %vm1149, %v1104
      %1152 = vst.msk [vmem:[#allocation3 + $0x10] sm:$0xff] %vm1149, %v1106
      %1153 = vst.msk [vmem:[#allocation3 + $0x18] sm:$0xff] %vm1149, %v1108
      %1154 = vst.msk [vmem:[#allocation3 + $0x20] sm:$0xff] %vm1149, %v1110
      %1155 = vst.msk [vmem:[#allocation3 + $0x28] sm:$0xff] %vm1149, %v1112
      %1156 = vst.msk [vmem:[#allocation3 + $0x30] sm:$0xff] %vm1149, %v1114
      %1157 = vst.msk [vmem:[#allocation3 + $0x38] sm:$0xff] %vm1149, %v1116
      %1158 = vst.msk [vmem:[#allocation3 + $0x40] sm:$0xff] %vm1149, %v1118
      %1159 = vst.msk [vmem:[#allocation3 + $0x48] sm:$0xff] %vm1149, %v1120
      %1160 = vst.msk [vmem:[#allocation3 + $0x50] sm:$0xff] %vm1149, %v1122
      %1161 = vst.msk [vmem:[#allocation3 + $0x58] sm:$0xff] %vm1149, %v1124
      %1162 = vst.msk [vmem:[#allocation3 + $0x60] sm:$0xff] %vm1149, %v1126
      %1163 = vst.msk [vmem:[#allocation3 + $0x68] sm:$0xff] %vm1149, %v1128
      %1164 = vst.msk [vmem:[#allocation3 + $0x70] sm:$0xff] %vm1149, %v1130
      %1165 = vst.msk [vmem:[#allocation3 + $0x78] sm:$0xff] %vm1149, %v1132
      %v1166 = vld [vmem:[%s682 + $0x1] sm:$0xff]
      %v1167 = vld [vmem:[%s682 + $0x9] sm:$0xff]
      %v1168 = vld [vmem:[%s682 + $0x19] sm:$0xff]
      %v1169 = vld [vmem:[%s682 + $0x21] sm:$0xff]
      %v1170 = vld [vmem:[%s682 + $0x31] sm:$0xff]
      %v1171 = vld [vmem:[%s682 + $0x39] sm:$0xff]
      %v1172 = vld [vmem:[%s682 + $0x49] sm:$0xff]
      %v1173 = vld [vmem:[%s682 + $0x51] sm:$0xff]
      %v1174 = vld [vmem:[%s682 + $0x61] sm:$0xff]
      %v1175 = vld [vmem:[%s682 + $0x69] sm:$0xff]
      %v1176 = vld [vmem:[%s682 + $0x79] sm:$0xff]
      %v1177 = vld [vmem:[%s682 + $0x81] sm:$0xff]
      %v1178 = vld [vmem:[%s682 + $0x91] sm:$0xff]
      %v1179 = vld [vmem:[%s682 + $0x99] sm:$0xff]
      %v1180 = vld [vmem:[%s682 + $0xa9] sm:$0xff]
      %v1181 = vld [vmem:[%s682 + $0xb1] sm:$0xff]
      %v1182 = vld [vmem:[%s682 + $0xc1] sm:$0xff]
      %v1183 = vld [vmem:[%s682 + $0xc9] sm:$0xff]
      %v1184 = vld [vmem:[%s682 + $0xd9] sm:$0xff]
      %v1185 = vld [vmem:[%s682 + $0xe1] sm:$0xff]
      %v1186 = vld [vmem:[%s682 + $0xf1] sm:$0xff]
      %v1187 = vld [vmem:[%s682 + $0xf9] sm:$0xff]
      %v1188 = vld [vmem:[%s682 + $0x109] sm:$0xff]
      %v1189 = vld [vmem:[%s682 + $0x111] sm:$0xff]
      %v1190 = vld [vmem:[%s682 + $0x121] sm:$0xff]
      %v1191 = vld [vmem:[%s682 + $0x129] sm:$0xff]
      %v1192 = vld [vmem:[%s682 + $0x139] sm:$0xff]
      %v1193 = vld [vmem:[%s682 + $0x141] sm:$0xff]
      %v1194 = vld [vmem:[%s682 + $0x151] sm:$0xff]
      %v1195 = vld [vmem:[%s682 + $0x159] sm:$0xff]
      %v1196 = vld [vmem:[%s682 + $0x169] sm:$0xff]
      %v1197 = vld [vmem:[%s682 + $0x171] sm:$0xff]
      %v1198 = vpack.c.bf16 %v1167, %v1166
      %v1199 = vpack.c.bf16 %v1169, %v1168
      %v1200 = vpack.c.bf16 %v1171, %v1170
      %v1201 = vpack.c.bf16 %v1173, %v1172
      %v1202 = vpack.c.bf16 %v1175, %v1174
      %v1203 = vpack.c.bf16 %v1177, %v1176
      %v1204 = vpack.c.bf16 %v1179, %v1178
      %v1205 = vpack.c.bf16 %v1181, %v1180
      %v1206 = vpack.c.bf16 %v1183, %v1182
      %v1207 = vpack.c.bf16 %v1185, %v1184
      %v1208 = vpack.c.bf16 %v1187, %v1186
      %v1209 = vpack.c.bf16 %v1189, %v1188
      %v1210 = vpack.c.bf16 %v1191, %v1190
      %v1211 = vpack.c.bf16 %v1193, %v1192
      %v1212 = vpack.c.bf16 %v1195, %v1194
      %v1213 = vpack.c.bf16 %v1197, %v1196
      %1230 = vrot.lane.b32.xlu0 %v1198, 32
      %v1231 = vpop.permute.xlu0 %1230
      %1232 = vrot.lane.b32.xlu0 %v1199, 32
      %v1233 = vpop.permute.xlu0 %1232
      %1234 = vrot.lane.b32.xlu0 %v1200, 32
      %v1235 = vpop.permute.xlu0 %1234
      %1236 = vrot.lane.b32.xlu0 %v1201, 32
      %v1237 = vpop.permute.xlu0 %1236
      %1238 = vrot.lane.b32.xlu0 %v1202, 32
      %v1239 = vpop.permute.xlu0 %1238
      %1240 = vrot.lane.b32.xlu0 %v1203, 32
      %v1241 = vpop.permute.xlu0 %1240
      %1242 = vrot.lane.b32.xlu0 %v1204, 32
      %v1243 = vpop.permute.xlu0 %1242
      %1244 = vrot.lane.b32.xlu0 %v1205, 32
      %v1245 = vpop.permute.xlu0 %1244
      %1246 = vrot.lane.b32.xlu0 %v1206, 32
      %v1247 = vpop.permute.xlu0 %1246
      %1248 = vrot.lane.b32.xlu0 %v1207, 32
      %v1249 = vpop.permute.xlu0 %1248
      %1250 = vrot.lane.b32.xlu0 %v1208, 32
      %v1251 = vpop.permute.xlu0 %1250
      %1252 = vrot.lane.b32.xlu0 %v1209, 32
      %v1253 = vpop.permute.xlu0 %1252
      %1254 = vrot.lane.b32.xlu0 %v1210, 32
      %v1255 = vpop.permute.xlu0 %1254
      %1256 = vrot.lane.b32.xlu0 %v1211, 32
      %v1257 = vpop.permute.xlu0 %1256
      %1258 = vrot.lane.b32.xlu0 %v1212, 32
      %v1259 = vpop.permute.xlu0 %1258
      %1260 = vrot.lane.b32.xlu0 %v1213, 32
      %v1261 = vpop.permute.xlu0 %1260
      %vm1278 = vcmask 326912
      %1279 = vst.msk [vmem:[#allocation3] sm:$0xff] %vm1278, %v1231
      %1280 = vst.msk [vmem:[#allocation3 + $0x8] sm:$0xff] %vm1278, %v1233
      %1281 = vst.msk [vmem:[#allocation3 + $0x10] sm:$0xff] %vm1278, %v1235
      %1282 = vst.msk [vmem:[#allocation3 + $0x18] sm:$0xff] %vm1278, %v1237
      %1283 = vst.msk [vmem:[#allocation3 + $0x20] sm:$0xff] %vm1278, %v1239
      %1284 = vst.msk [vmem:[#allocation3 + $0x28] sm:$0xff] %vm1278, %v1241
      %1285 = vst.msk [vmem:[#allocation3 + $0x30] sm:$0xff] %vm1278, %v1243
      %1286 = vst.msk [vmem:[#allocation3 + $0x38] sm:$0xff] %vm1278, %v1245
      %1287 = vst.msk [vmem:[#allocation3 + $0x40] sm:$0xff] %vm1278, %v1247
      %1288 = vst.msk [vmem:[#allocation3 + $0x48] sm:$0xff] %vm1278, %v1249
      %1289 = vst.msk [vmem:[#allocation3 + $0x50] sm:$0xff] %vm1278, %v1251
      %1290 = vst.msk [vmem:[#allocation3 + $0x58] sm:$0xff] %vm1278, %v1253
      %1291 = vst.msk [vmem:[#allocation3 + $0x60] sm:$0xff] %vm1278, %v1255
      %1292 = vst.msk [vmem:[#allocation3 + $0x68] sm:$0xff] %vm1278, %v1257
      %1293 = vst.msk [vmem:[#allocation3 + $0x70] sm:$0xff] %vm1278, %v1259
      %1294 = vst.msk [vmem:[#allocation3 + $0x78] sm:$0xff] %vm1278, %v1261
      %v1295 = vld [vmem:[%s682 + $0x2] sm:$0xff]
      %v1296 = vld [vmem:[%s682 + $0xa] sm:$0xff]
      %v1297 = vld [vmem:[%s682 + $0x1a] sm:$0xff]
      %v1298 = vld [vmem:[%s682 + $0x22] sm:$0xff]
      %v1299 = vld [vmem:[%s682 + $0x32] sm:$0xff]
      %v1300 = vld [vmem:[%s682 + $0x3a] sm:$0xff]
      %v1301 = vld [vmem:[%s682 + $0x4a] sm:$0xff]
      %v1302 = vld [vmem:[%s682 + $0x52] sm:$0xff]
      %v1303 = vld [vmem:[%s682 + $0x62] sm:$0xff]
      %v1304 = vld [vmem:[%s682 + $0x6a] sm:$0xff]
      %v1305 = vld [vmem:[%s682 + $0x7a] sm:$0xff]
      %v1306 = vld [vmem:[%s682 + $0x82] sm:$0xff]
      %v1307 = vld [vmem:[%s682 + $0x92] sm:$0xff]
      %v1308 = vld [vmem:[%s682 + $0x9a] sm:$0xff]
      %v1309 = vld [vmem:[%s682 + $0xaa] sm:$0xff]
      %v1310 = vld [vmem:[%s682 + $0xb2] sm:$0xff]
      %v1311 = vld [vmem:[%s682 + $0xc2] sm:$0xff]
      %v1312 = vld [vmem:[%s682 + $0xca] sm:$0xff]
      %v1313 = vld [vmem:[%s682 + $0xda] sm:$0xff]
      %v1314 = vld [vmem:[%s682 + $0xe2] sm:$0xff]
      %v1315 = vld [vmem:[%s682 + $0xf2] sm:$0xff]
      %v1316 = vld [vmem:[%s682 + $0xfa] sm:$0xff]
      %v1317 = vld [vmem:[%s682 + $0x10a] sm:$0xff]
      %v1318 = vld [vmem:[%s682 + $0x112] sm:$0xff]
      %v1319 = vld [vmem:[%s682 + $0x122] sm:$0xff]
      %v1320 = vld [vmem:[%s682 + $0x12a] sm:$0xff]
      %v1321 = vld [vmem:[%s682 + $0x13a] sm:$0xff]
      %v1322 = vld [vmem:[%s682 + $0x142] sm:$0xff]
      %v1323 = vld [vmem:[%s682 + $0x152] sm:$0xff]
      %v1324 = vld [vmem:[%s682 + $0x15a] sm:$0xff]
      %v1325 = vld [vmem:[%s682 + $0x16a] sm:$0xff]
      %v1326 = vld [vmem:[%s682 + $0x172] sm:$0xff]
      %v1327 = vpack.c.bf16 %v1296, %v1295
      %v1328 = vpack.c.bf16 %v1298, %v1297
      %v1329 = vpack.c.bf16 %v1300, %v1299
      %v1330 = vpack.c.bf16 %v1302, %v1301
      %v1331 = vpack.c.bf16 %v1304, %v1303
      %v1332 = vpack.c.bf16 %v1306, %v1305
      %v1333 = vpack.c.bf16 %v1308, %v1307
      %v1334 = vpack.c.bf16 %v1310, %v1309
      %v1335 = vpack.c.bf16 %v1312, %v1311
      %v1336 = vpack.c.bf16 %v1314, %v1313
      %v1337 = vpack.c.bf16 %v1316, %v1315
      %v1338 = vpack.c.bf16 %v1318, %v1317
      %v1339 = vpack.c.bf16 %v1320, %v1319
      %v1340 = vpack.c.bf16 %v1322, %v1321
      %v1341 = vpack.c.bf16 %v1324, %v1323
      %v1342 = vpack.c.bf16 %v1326, %v1325
      %1359 = vrot.lane.b32.xlu0 %v1327, 40
      %v1360 = vpop.permute.xlu0 %1359
      %1361 = vrot.lane.b32.xlu0 %v1328, 40
      %v1362 = vpop.permute.xlu0 %1361
      %1363 = vrot.lane.b32.xlu0 %v1329, 40
      %v1364 = vpop.permute.xlu0 %1363
      %1365 = vrot.lane.b32.xlu0 %v1330, 40
      %v1366 = vpop.permute.xlu0 %1365
      %1367 = vrot.lane.b32.xlu0 %v1331, 40
      %v1368 = vpop.permute.xlu0 %1367
      %1369 = vrot.lane.b32.xlu0 %v1332, 40
      %v1370 = vpop.permute.xlu0 %1369
      %1371 = vrot.lane.b32.xlu0 %v1333, 40
      %v1372 = vpop.permute.xlu0 %1371
      %1373 = vrot.lane.b32.xlu0 %v1334, 40
      %v1374 = vpop.permute.xlu0 %1373
      %1375 = vrot.lane.b32.xlu0 %v1335, 40
      %v1376 = vpop.permute.xlu0 %1375
      %1377 = vrot.lane.b32.xlu0 %v1336, 40
      %v1378 = vpop.permute.xlu0 %1377
      %1379 = vrot.lane.b32.xlu0 %v1337, 40
      %v1380 = vpop.permute.xlu0 %1379
      %1381 = vrot.lane.b32.xlu0 %v1338, 40
      %v1382 = vpop.permute.xlu0 %1381
      %1383 = vrot.lane.b32.xlu0 %v1339, 40
      %v1384 = vpop.permute.xlu0 %1383
      %1385 = vrot.lane.b32.xlu0 %v1340, 40
      %v1386 = vpop.permute.xlu0 %1385
      %1387 = vrot.lane.b32.xlu0 %v1341, 40
      %v1388 = vpop.permute.xlu0 %1387
      %1389 = vrot.lane.b32.xlu0 %v1342, 40
      %v1390 = vpop.permute.xlu0 %1389
      %vm1407 = vcmask 392512
      %1408 = vst.msk [vmem:[#allocation3] sm:$0xff] %vm1407, %v1360
      %1409 = vst.msk [vmem:[#allocation3 + $0x8] sm:$0xff] %vm1407, %v1362
      %1410 = vst.msk [vmem:[#allocation3 + $0x10] sm:$0xff] %vm1407, %v1364
      %1411 = vst.msk [vmem:[#allocation3 + $0x18] sm:$0xff] %vm1407, %v1366
      %1412 = vst.msk [vmem:[#allocation3 + $0x20] sm:$0xff] %vm1407, %v1368
      %1413 = vst.msk [vmem:[#allocation3 + $0x28] sm:$0xff] %vm1407, %v1370
      %1414 = vst.msk [vmem:[#allocation3 + $0x30] sm:$0xff] %vm1407, %v1372
      %1415 = vst.msk [vmem:[#allocation3 + $0x38] sm:$0xff] %vm1407, %v1374
      %1416 = vst.msk [vmem:[#allocation3 + $0x40] sm:$0xff] %vm1407, %v1376
      %1417 = vst.msk [vmem:[#allocation3 + $0x48] sm:$0xff] %vm1407, %v1378
      %1418 = vst.msk [vmem:[#allocation3 + $0x50] sm:$0xff] %vm1407, %v1380
      %1419 = vst.msk [vmem:[#allocation3 + $0x58] sm:$0xff] %vm1407, %v1382
      %1420 = vst.msk [vmem:[#allocation3 + $0x60] sm:$0xff] %vm1407, %v1384
      %1421 = vst.msk [vmem:[#allocation3 + $0x68] sm:$0xff] %vm1407, %v1386
      %1422 = vst.msk [vmem:[#allocation3 + $0x70] sm:$0xff] %vm1407, %v1388
      %1423 = vst.msk [vmem:[#allocation3 + $0x78] sm:$0xff] %vm1407, %v1390
      %s1424 = scalar_lea.vmem [#allocation2], 48
      %v1425 = vld [vmem:[%s1424] sm:$0xff]
      %v1426 = vld [vmem:[%s1424 + $0x8] sm:$0xff]
      %v1427 = vld [vmem:[%s1424 + $0x18] sm:$0xff]
      %v1428 = vld [vmem:[%s1424 + $0x20] sm:$0xff]
      %v1429 = vld [vmem:[%s1424 + $0x30] sm:$0xff]
      %v1430 = vld [vmem:[%s1424 + $0x38] sm:$0xff]
      %v1431 = vld [vmem:[%s1424 + $0x48] sm:$0xff]
      %v1432 = vld [vmem:[%s1424 + $0x50] sm:$0xff]
      %v1433 = vld [vmem:[%s1424 + $0x60] sm:$0xff]
      %v1434 = vld [vmem:[%s1424 + $0x68] sm:$0xff]
      %v1435 = vld [vmem:[%s1424 + $0x78] sm:$0xff]
      %v1436 = vld [vmem:[%s1424 + $0x80] sm:$0xff]
      %v1437 = vld [vmem:[%s1424 + $0x90] sm:$0xff]
      %v1438 = vld [vmem:[%s1424 + $0x98] sm:$0xff]
      %v1439 = vld [vmem:[%s1424 + $0xa8] sm:$0xff]
      %v1440 = vld [vmem:[%s1424 + $0xb0] sm:$0xff]
      %v1441 = vld [vmem:[%s1424 + $0xc0] sm:$0xff]
      %v1442 = vld [vmem:[%s1424 + $0xc8] sm:$0xff]
      %v1443 = vld [vmem:[%s1424 + $0xd8] sm:$0xff]
      %v1444 = vld [vmem:[%s1424 + $0xe0] sm:$0xff]
      %v1445 = vld [vmem:[%s1424 + $0xf0] sm:$0xff]
      %v1446 = vld [vmem:[%s1424 + $0xf8] sm:$0xff]
      %v1447 = vld [vmem:[%s1424 + $0x108] sm:$0xff]
      %v1448 = vld [vmem:[%s1424 + $0x110] sm:$0xff]
      %v1449 = vld [vmem:[%s1424 + $0x120] sm:$0xff]
      %v1450 = vld [vmem:[%s1424 + $0x128] sm:$0xff]
      %v1451 = vld [vmem:[%s1424 + $0x138] sm:$0xff]
      %v1452 = vld [vmem:[%s1424 + $0x140] sm:$0xff]
      %v1453 = vld [vmem:[%s1424 + $0x150] sm:$0xff]
      %v1454 = vld [vmem:[%s1424 + $0x158] sm:$0xff]
      %v1455 = vld [vmem:[%s1424 + $0x168] sm:$0xff]
      %v1456 = vld [vmem:[%s1424 + $0x170] sm:$0xff]
      %v1457 = vpack.c.bf16 %v1426, %v1425
      %v1458 = vpack.c.bf16 %v1428, %v1427
      %v1459 = vpack.c.bf16 %v1430, %v1429
      %v1460 = vpack.c.bf16 %v1432, %v1431
      %v1461 = vpack.c.bf16 %v1434, %v1433
      %v1462 = vpack.c.bf16 %v1436, %v1435
      %v1463 = vpack.c.bf16 %v1438, %v1437
      %v1464 = vpack.c.bf16 %v1440, %v1439
      %v1465 = vpack.c.bf16 %v1442, %v1441
      %v1466 = vpack.c.bf16 %v1444, %v1443
      %v1467 = vpack.c.bf16 %v1446, %v1445
      %v1468 = vpack.c.bf16 %v1448, %v1447
      %v1469 = vpack.c.bf16 %v1450, %v1449
      %v1470 = vpack.c.bf16 %v1452, %v1451
      %v1471 = vpack.c.bf16 %v1454, %v1453
      %v1472 = vpack.c.bf16 %v1456, %v1455
      %1489 = vrot.lane.b32.xlu0 %v1457, 48
      %v1490 = vpop.permute.xlu0 %1489
      %1491 = vrot.lane.b32.xlu0 %v1458, 48
      %v1492 = vpop.permute.xlu0 %1491
      %1493 = vrot.lane.b32.xlu0 %v1459, 48
      %v1494 = vpop.permute.xlu0 %1493
      %1495 = vrot.lane.b32.xlu0 %v1460, 48
      %v1496 = vpop.permute.xlu0 %1495
      %1497 = vrot.lane.b32.xlu0 %v1461, 48
      %v1498 = vpop.permute.xlu0 %1497
      %1499 = vrot.lane.b32.xlu0 %v1462, 48
      %v1500 = vpop.permute.xlu0 %1499
      %1501 = vrot.lane.b32.xlu0 %v1463, 48
      %v1502 = vpop.permute.xlu0 %1501
      %1503 = vrot.lane.b32.xlu0 %v1464, 48
      %v1504 = vpop.permute.xlu0 %1503
      %1505 = vrot.lane.b32.xlu0 %v1465, 48
      %v1506 = vpop.permute.xlu0 %1505
      %1507 = vrot.lane.b32.xlu0 %v1466, 48
      %v1508 = vpop.permute.xlu0 %1507
      %1509 = vrot.lane.b32.xlu0 %v1467, 48
      %v1510 = vpop.permute.xlu0 %1509
      %1511 = vrot.lane.b32.xlu0 %v1468, 48
      %v1512 = vpop.permute.xlu0 %1511
      %1513 = vrot.lane.b32.xlu0 %v1469, 48
      %v1514 = vpop.permute.xlu0 %1513
      %1515 = vrot.lane.b32.xlu0 %v1470, 48
      %v1516 = vpop.permute.xlu0 %1515
      %1517 = vrot.lane.b32.xlu0 %v1471, 48
      %v1518 = vpop.permute.xlu0 %1517
      %1519 = vrot.lane.b32.xlu0 %v1472, 48
      %v1520 = vpop.permute.xlu0 %1519
      %vm1537 = vcmask 458112
      %1538 = vst.msk [vmem:[#allocation3] sm:$0xff] %vm1537, %v1490
      %1539 = vst.msk [vmem:[#allocation3 + $0x8] sm:$0xff] %vm1537, %v1492
      %1540 = vst.msk [vmem:[#allocation3 + $0x10] sm:$0xff] %vm1537, %v1494
      %1541 = vst.msk [vmem:[#allocation3 + $0x18] sm:$0xff] %vm1537, %v1496
      %1542 = vst.msk [vmem:[#allocation3 + $0x20] sm:$0xff] %vm1537, %v1498
      %1543 = vst.msk [vmem:[#allocation3 + $0x28] sm:$0xff] %vm1537, %v1500
      %1544 = vst.msk [vmem:[#allocation3 + $0x30] sm:$0xff] %vm1537, %v1502
      %1545 = vst.msk [vmem:[#allocation3 + $0x38] sm:$0xff] %vm1537, %v1504
      %1546 = vst.msk [vmem:[#allocation3 + $0x40] sm:$0xff] %vm1537, %v1506
      %1547 = vst.msk [vmem:[#allocation3 + $0x48] sm:$0xff] %vm1537, %v1508
      %1548 = vst.msk [vmem:[#allocation3 + $0x50] sm:$0xff] %vm1537, %v1510
      %1549 = vst.msk [vmem:[#allocation3 + $0x58] sm:$0xff] %vm1537, %v1512
      %1550 = vst.msk [vmem:[#allocation3 + $0x60] sm:$0xff] %vm1537, %v1514
      %1551 = vst.msk [vmem:[#allocation3 + $0x68] sm:$0xff] %vm1537, %v1516
      %1552 = vst.msk [vmem:[#allocation3 + $0x70] sm:$0xff] %vm1537, %v1518
      %1553 = vst.msk [vmem:[#allocation3 + $0x78] sm:$0xff] %vm1537, %v1520
      %v1554 = vld [vmem:[%s1424 + $0x1] sm:$0xff]
      %v1555 = vld [vmem:[%s1424 + $0x9] sm:$0xff]
      %v1556 = vld [vmem:[%s1424 + $0x19] sm:$0xff]
      %v1557 = vld [vmem:[%s1424 + $0x21] sm:$0xff]
      %v1558 = vld [vmem:[%s1424 + $0x31] sm:$0xff]
      %v1559 = vld [vmem:[%s1424 + $0x39] sm:$0xff]
      %v1560 = vld [vmem:[%s1424 + $0x49] sm:$0xff]
      %v1561 = vld [vmem:[%s1424 + $0x51] sm:$0xff]
      %v1562 = vld [vmem:[%s1424 + $0x61] sm:$0xff]
      %v1563 = vld [vmem:[%s1424 + $0x69] sm:$0xff]
      %v1564 = vld [vmem:[%s1424 + $0x79] sm:$0xff]
      %v1565 = vld [vmem:[%s1424 + $0x81] sm:$0xff]
      %v1566 = vld [vmem:[%s1424 + $0x91] sm:$0xff]
      %v1567 = vld [vmem:[%s1424 + $0x99] sm:$0xff]
      %v1568 = vld [vmem:[%s1424 + $0xa9] sm:$0xff]
      %v1569 = vld [vmem:[%s1424 + $0xb1] sm:$0xff]
      %v1570 = vld [vmem:[%s1424 + $0xc1] sm:$0xff]
      %v1571 = vld [vmem:[%s1424 + $0xc9] sm:$0xff]
      %v1572 = vld [vmem:[%s1424 + $0xd9] sm:$0xff]
      %v1573 = vld [vmem:[%s1424 + $0xe1] sm:$0xff]
      %v1574 = vld [vmem:[%s1424 + $0xf1] sm:$0xff]
      %v1575 = vld [vmem:[%s1424 + $0xf9] sm:$0xff]
      %v1576 = vld [vmem:[%s1424 + $0x109] sm:$0xff]
      %v1577 = vld [vmem:[%s1424 + $0x111] sm:$0xff]
      %v1578 = vld [vmem:[%s1424 + $0x121] sm:$0xff]
      %v1579 = vld [vmem:[%s1424 + $0x129] sm:$0xff]
      %v1580 = vld [vmem:[%s1424 + $0x139] sm:$0xff]
      %v1581 = vld [vmem:[%s1424 + $0x141] sm:$0xff]
      %v1582 = vld [vmem:[%s1424 + $0x151] sm:$0xff]
      %v1583 = vld [vmem:[%s1424 + $0x159] sm:$0xff]
      %v1584 = vld [vmem:[%s1424 + $0x169] sm:$0xff]
      %v1585 = vld [vmem:[%s1424 + $0x171] sm:$0xff]
      %v1586 = vpack.c.bf16 %v1555, %v1554
      %v1587 = vpack.c.bf16 %v1557, %v1556
      %v1588 = vpack.c.bf16 %v1559, %v1558
      %v1589 = vpack.c.bf16 %v1561, %v1560
      %v1590 = vpack.c.bf16 %v1563, %v1562
      %v1591 = vpack.c.bf16 %v1565, %v1564
      %v1592 = vpack.c.bf16 %v1567, %v1566
      %v1593 = vpack.c.bf16 %v1569, %v1568
      %v1594 = vpack.c.bf16 %v1571, %v1570
      %v1595 = vpack.c.bf16 %v1573, %v1572
      %v1596 = vpack.c.bf16 %v1575, %v1574
      %v1597 = vpack.c.bf16 %v1577, %v1576
      %v1598 = vpack.c.bf16 %v1579, %v1578
      %v1599 = vpack.c.bf16 %v1581, %v1580
      %v1600 = vpack.c.bf16 %v1583, %v1582
      %v1601 = vpack.c.bf16 %v1585, %v1584
      %1618 = vrot.lane.b32.xlu0 %v1586, 56
      %v1619 = vpop.permute.xlu0 %1618
      %1620 = vrot.lane.b32.xlu0 %v1587, 56
      %v1621 = vpop.permute.xlu0 %1620
      %1622 = vrot.lane.b32.xlu0 %v1588, 56
      %v1623 = vpop.permute.xlu0 %1622
      %1624 = vrot.lane.b32.xlu0 %v1589, 56
      %v1625 = vpop.permute.xlu0 %1624
      %1626 = vrot.lane.b32.xlu0 %v1590, 56
      %v1627 = vpop.permute.xlu0 %1626
      %1628 = vrot.lane.b32.xlu0 %v1591, 56
      %v1629 = vpop.permute.xlu0 %1628
      %1630 = vrot.lane.b32.xlu0 %v1592, 56
      %v1631 = vpop.permute.xlu0 %1630
      %1632 = vrot.lane.b32.xlu0 %v1593, 56
      %v1633 = vpop.permute.xlu0 %1632
      %1634 = vrot.lane.b32.xlu0 %v1594, 56
      %v1635 = vpop.permute.xlu0 %1634
      %1636 = vrot.lane.b32.xlu0 %v1595, 56
      %v1637 = vpop.permute.xlu0 %1636
      %1638 = vrot.lane.b32.xlu0 %v1596, 56
      %v1639 = vpop.permute.xlu0 %1638
      %1640 = vrot.lane.b32.xlu0 %v1597, 56
      %v1641 = vpop.permute.xlu0 %1640
      %1642 = vrot.lane.b32.xlu0 %v1598, 56
      %v1643 = vpop.permute.xlu0 %1642
      %1644 = vrot.lane.b32.xlu0 %v1599, 56
      %v1645 = vpop.permute.xlu0 %1644
      %1646 = vrot.lane.b32.xlu0 %v1600, 56
      %v1647 = vpop.permute.xlu0 %1646
      %1648 = vrot.lane.b32.xlu0 %v1601, 56
      %v1649 = vpop.permute.xlu0 %1648
      %vm1666 = vcmask 523712
      %1667 = vst.msk [vmem:[#allocation3] sm:$0xff] %vm1666, %v1619
      %1668 = vst.msk [vmem:[#allocation3 + $0x8] sm:$0xff] %vm1666, %v1621
      %1669 = vst.msk [vmem:[#allocation3 + $0x10] sm:$0xff] %vm1666, %v1623
      %1670 = vst.msk [vmem:[#allocation3 + $0x18] sm:$0xff] %vm1666, %v1625
      %1671 = vst.msk [vmem:[#allocation3 + $0x20] sm:$0xff] %vm1666, %v1627
      %1672 = vst.msk [vmem:[#allocation3 + $0x28] sm:$0xff] %vm1666, %v1629
      %1673 = vst.msk [vmem:[#allocation3 + $0x30] sm:$0xff] %vm1666, %v1631
      %1674 = vst.msk [vmem:[#allocation3 + $0x38] sm:$0xff] %vm1666, %v1633
      %1675 = vst.msk [vmem:[#allocation3 + $0x40] sm:$0xff] %vm1666, %v1635
      %1676 = vst.msk [vmem:[#allocation3 + $0x48] sm:$0xff] %vm1666, %v1637
      %1677 = vst.msk [vmem:[#allocation3 + $0x50] sm:$0xff] %vm1666, %v1639
      %1678 = vst.msk [vmem:[#allocation3 + $0x58] sm:$0xff] %vm1666, %v1641
      %1679 = vst.msk [vmem:[#allocation3 + $0x60] sm:$0xff] %vm1666, %v1643
      %1680 = vst.msk [vmem:[#allocation3 + $0x68] sm:$0xff] %vm1666, %v1645
      %1681 = vst.msk [vmem:[#allocation3 + $0x70] sm:$0xff] %vm1666, %v1647
      %1682 = vst.msk [vmem:[#allocation3 + $0x78] sm:$0xff] %vm1666, %v1649
      %v1683 = vld [vmem:[%s1424 + $0x2] sm:$0xff]
      %v1684 = vld [vmem:[%s1424 + $0xa] sm:$0xff]
      %v1685 = vld [vmem:[%s1424 + $0x1a] sm:$0xff]
      %v1686 = vld [vmem:[%s1424 + $0x22] sm:$0xff]
      %v1687 = vld [vmem:[%s1424 + $0x32] sm:$0xff]
      %v1688 = vld [vmem:[%s1424 + $0x3a] sm:$0xff]
      %v1689 = vld [vmem:[%s1424 + $0x4a] sm:$0xff]
      %v1690 = vld [vmem:[%s1424 + $0x52] sm:$0xff]
      %v1691 = vld [vmem:[%s1424 + $0x62] sm:$0xff]
      %v1692 = vld [vmem:[%s1424 + $0x6a] sm:$0xff]
      %v1693 = vld [vmem:[%s1424 + $0x7a] sm:$0xff]
      %v1694 = vld [vmem:[%s1424 + $0x82] sm:$0xff]
      %v1695 = vld [vmem:[%s1424 + $0x92] sm:$0xff]
      %v1696 = vld [vmem:[%s1424 + $0x9a] sm:$0xff]
      %v1697 = vld [vmem:[%s1424 + $0xaa] sm:$0xff]
      %v1698 = vld [vmem:[%s1424 + $0xb2] sm:$0xff]
      %v1699 = vld [vmem:[%s1424 + $0xc2] sm:$0xff]
      %v1700 = vld [vmem:[%s1424 + $0xca] sm:$0xff]
      %v1701 = vld [vmem:[%s1424 + $0xda] sm:$0xff]
      %v1702 = vld [vmem:[%s1424 + $0xe2] sm:$0xff]
      %v1703 = vld [vmem:[%s1424 + $0xf2] sm:$0xff]
      %v1704 = vld [vmem:[%s1424 + $0xfa] sm:$0xff]
      %v1705 = vld [vmem:[%s1424 + $0x10a] sm:$0xff]
      %v1706 = vld [vmem:[%s1424 + $0x112] sm:$0xff]
      %v1707 = vld [vmem:[%s1424 + $0x122] sm:$0xff]
      %v1708 = vld [vmem:[%s1424 + $0x12a] sm:$0xff]
      %v1709 = vld [vmem:[%s1424 + $0x13a] sm:$0xff]
      %v1710 = vld [vmem:[%s1424 + $0x142] sm:$0xff]
      %v1711 = vld [vmem:[%s1424 + $0x152] sm:$0xff]
      %v1712 = vld [vmem:[%s1424 + $0x15a] sm:$0xff]
      %v1713 = vld [vmem:[%s1424 + $0x16a] sm:$0xff]
      %v1714 = vld [vmem:[%s1424 + $0x172] sm:$0xff]
      %v1715 = vpack.c.bf16 %v1684, %v1683
      %v1716 = vpack.c.bf16 %v1686, %v1685
      %v1717 = vpack.c.bf16 %v1688, %v1687
      %v1718 = vpack.c.bf16 %v1690, %v1689
      %v1719 = vpack.c.bf16 %v1692, %v1691
      %v1720 = vpack.c.bf16 %v1694, %v1693
      %v1721 = vpack.c.bf16 %v1696, %v1695
      %v1722 = vpack.c.bf16 %v1698, %v1697
      %v1723 = vpack.c.bf16 %v1700, %v1699
      %v1724 = vpack.c.bf16 %v1702, %v1701
      %v1725 = vpack.c.bf16 %v1704, %v1703
      %v1726 = vpack.c.bf16 %v1706, %v1705
      %v1727 = vpack.c.bf16 %v1708, %v1707
      %v1728 = vpack.c.bf16 %v1710, %v1709
      %v1729 = vpack.c.bf16 %v1712, %v1711
      %v1730 = vpack.c.bf16 %v1714, %v1713
      %1747 = vrot.lane.b32.xlu0 %v1715, 64
      %v1748 = vpop.permute.xlu0 %1747
      %1749 = vrot.lane.b32.xlu0 %v1716, 64
      %v1750 = vpop.permute.xlu0 %1749
      %1751 = vrot.lane.b32.xlu0 %v1717, 64
      %v1752 = vpop.permute.xlu0 %1751
      %1753 = vrot.lane.b32.xlu0 %v1718, 64
      %v1754 = vpop.permute.xlu0 %1753
      %1755 = vrot.lane.b32.xlu0 %v1719, 64
      %v1756 = vpop.permute.xlu0 %1755
      %1757 = vrot.lane.b32.xlu0 %v1720, 64
      %v1758 = vpop.permute.xlu0 %1757
      %1759 = vrot.lane.b32.xlu0 %v1721, 64
      %v1760 = vpop.permute.xlu0 %1759
      %1761 = vrot.lane.b32.xlu0 %v1722, 64
      %v1762 = vpop.permute.xlu0 %1761
      %1763 = vrot.lane.b32.xlu0 %v1723, 64
      %v1764 = vpop.permute.xlu0 %1763
      %1765 = vrot.lane.b32.xlu0 %v1724, 64
      %v1766 = vpop.permute.xlu0 %1765
      %1767 = vrot.lane.b32.xlu0 %v1725, 64
      %v1768 = vpop.permute.xlu0 %1767
      %1769 = vrot.lane.b32.xlu0 %v1726, 64
      %v1770 = vpop.permute.xlu0 %1769
      %1771 = vrot.lane.b32.xlu0 %v1727, 64
      %v1772 = vpop.permute.xlu0 %1771
      %1773 = vrot.lane.b32.xlu0 %v1728, 64
      %v1774 = vpop.permute.xlu0 %1773
      %1775 = vrot.lane.b32.xlu0 %v1729, 64
      %v1776 = vpop.permute.xlu0 %1775
      %1777 = vrot.lane.b32.xlu0 %v1730, 64
      %v1778 = vpop.permute.xlu0 %1777
      %vm1795 = vcmask 589312
      %1796 = vst.msk [vmem:[#allocation3] sm:$0xff] %vm1795, %v1748
      %1797 = vst.msk [vmem:[#allocation3 + $0x8] sm:$0xff] %vm1795, %v1750
      %1798 = vst.msk [vmem:[#allocation3 + $0x10] sm:$0xff] %vm1795, %v1752
      %1799 = vst.msk [vmem:[#allocation3 + $0x18] sm:$0xff] %vm1795, %v1754
      %1800 = vst.msk [vmem:[#allocation3 + $0x20] sm:$0xff] %vm1795, %v1756
      %1801 = vst.msk [vmem:[#allocation3 + $0x28] sm:$0xff] %vm1795, %v1758
      %1802 = vst.msk [vmem:[#allocation3 + $0x30] sm:$0xff] %vm1795, %v1760
      %1803 = vst.msk [vmem:[#allocation3 + $0x38] sm:$0xff] %vm1795, %v1762
      %1804 = vst.msk [vmem:[#allocation3 + $0x40] sm:$0xff] %vm1795, %v1764
      %1805 = vst.msk [vmem:[#allocation3 + $0x48] sm:$0xff] %vm1795, %v1766
      %1806 = vst.msk [vmem:[#allocation3 + $0x50] sm:$0xff] %vm1795, %v1768
      %1807 = vst.msk [vmem:[#allocation3 + $0x58] sm:$0xff] %vm1795, %v1770
      %1808 = vst.msk [vmem:[#allocation3 + $0x60] sm:$0xff] %vm1795, %v1772
      %1809 = vst.msk [vmem:[#allocation3 + $0x68] sm:$0xff] %vm1795, %v1774
      %1810 = vst.msk [vmem:[#allocation3 + $0x70] sm:$0xff] %vm1795, %v1776
      %1811 = vst.msk [vmem:[#allocation3 + $0x78] sm:$0xff] %vm1795, %v1778
      %v1812 = vld [vmem:[%s2] sm:$0xf]
      %v1813 = vld [vmem:[%s2 + $0x4] sm:$0xf]
      %v1814 = vld [vmem:[%s2 + $0x8] sm:$0xf]
      %v1815 = vld [vmem:[%s2 + $0xc] sm:$0xf]
      %v1816 = vld [vmem:[%s2 + $0x10] sm:$0xf]
      %v1817 = vld [vmem:[%s2 + $0x14] sm:$0xf]
      %v1818 = vld [vmem:[%s2 + $0x18] sm:$0xf]
      %v1819 = vld [vmem:[%s2 + $0x1c] sm:$0xf]
      %v1820 = vld [vmem:[%s2 + $0x20] sm:$0xf]
      %v1821 = vld [vmem:[#allocation3] sm:$0xff]
      %v1822 = vld [vmem:[#allocation3 + $0x8] sm:$0xff]
      %v1823 = vld [vmem:[#allocation3 + $0x10] sm:$0xff]
      %v1824 = vld [vmem:[#allocation3 + $0x18] sm:$0xff]
      %v1825 = vld [vmem:[#allocation3 + $0x20] sm:$0xff]
      %v1826 = vld [vmem:[#allocation3 + $0x28] sm:$0xff]
      %v1827 = vld [vmem:[#allocation3 + $0x30] sm:$0xff]
      %v1828 = vld [vmem:[#allocation3 + $0x38] sm:$0xff]
      %v1829 = vld [vmem:[#allocation3 + $0x40] sm:$0xff]
      %v1830 = vld [vmem:[#allocation3 + $0x48] sm:$0xff]
      %v1831 = vld [vmem:[#allocation3 + $0x50] sm:$0xff]
      %v1832 = vld [vmem:[#allocation3 + $0x58] sm:$0xff]
      %v1833 = vld [vmem:[#allocation3 + $0x60] sm:$0xff]
      %v1834 = vld [vmem:[#allocation3 + $0x68] sm:$0xff]
      %v1835 = vld [vmem:[#allocation3 + $0x70] sm:$0xff]
      %v1836 = vld [vmem:[#allocation3 + $0x78] sm:$0xff]
      %v1837 = vld [vmem:[%s3] sm:$0x1]
      %v1839 = vlaneseq
      %v1840 = vshrl.u32 %v1839, 7
      %v1841 = vsub.s32 0, %v1840
      %v1842 = vrot.slane %v1837, %v1841
      %v1853 = vunpack.c.l.b16 %v1812
      %v1854 = vunpack.c.l.b16 %v1813
      %v1855 = vunpack.c.l.b16 %v1814
      %v1856 = vunpack.c.l.b16 %v1815
      %v1857 = vunpack.c.l.b16 %v1816
      %v1858 = vunpack.c.l.b16 %v1817
      %v1859 = vunpack.c.l.b16 %v1818
      %v1860 = vunpack.c.l.b16 %v1819
      %v1861 = vunpack.c.l.b16 %v1820
      %v1862 = vpack.c.b16 %v1854, %v1853
      %v1863 = vpack.c.b16 %v1856, %v1855
      %v1864 = vpack.c.b16 %v1858, %v1857
      %v1865 = vpack.c.b16 %v1860, %v1859
      %v1866 = vpack.c.b16 %v1861, %v1861
      %vm1871 = vcmask 588800
      %v1873 = vsel %vm1871, %v1821, 0
      %v1876 = vsel %vm1871, %v1822, 0
      %v1879 = vsel %vm1871, %v1823, 0
      %v1882 = vsel %vm1871, %v1824, 0
      %v1885 = vsel %vm1871, %v1825, 0
      %v1888 = vsel %vm1871, %v1826, 0
      %v1891 = vsel %vm1871, %v1827, 0
      %v1894 = vsel %vm1871, %v1828, 0
      %v1897 = vsel %vm1871, %v1829, 0
      %v1900 = vsel %vm1871, %v1830, 0
      %v1903 = vsel %vm1871, %v1831, 0
      %v1906 = vsel %vm1871, %v1832, 0
      %v1909 = vsel %vm1871, %v1833, 0
      %v1912 = vsel %vm1871, %v1834, 0
      %v1915 = vsel %vm1871, %v1835, 0
      %v1918 = vsel %vm1871, %v1836, 0
      %vm1920 = vcmask 1043456
      %v1922 = vsel %vm1920, %v1866, 0
      %1924 = vmatprep.subr.bf16.mxu0 0
      %1925 = vmatpush1.bf16.msra.mxu0 %v1862
      %1926 = vmatprep.subr.bf16.mxu0 0
      %1927 = vmatpush1.bf16.msra.mxu0 %v1863
      %1928 = vmatprep.subr.bf16.mxu0 0
      %1929 = vmatpush1.bf16.msra.mxu0 %v1864
      %1930 = vmatprep.subr.bf16.mxu0 0
      %1931 = vmatpush1.bf16.msra.mxu0 %v1865
      %1932 = vmatprep.subr.bf16.mxu0 0
      %1933 = vmatpush1.bf16.msra.mxu0 %v1922
      %1934 = vmatprep.subr.bf16.mxu0 0
      %1935 = vmatpush1.bf16.msra.mxu0 0
      %1936 = vmatprep.subr.bf16.mxu0 0
      %1937 = vmatpush1.bf16.msra.mxu0 0
      %1938 = vmatprep.subr.bf16.mxu0 0
      %1939 = vmatpush1.bf16.msra.mxu0 0
      %1940 = vmatprep.subr.bf16.mxu0 0
      %1941 = vmatpush1.bf16.msra.mxu0 0
      %1942 = vmatprep.subr.bf16.mxu0 0
      %1943 = vmatpush1.bf16.msra.mxu0 0
      %1944 = vmatprep.subr.bf16.mxu0 0
      %1945 = vmatpush1.bf16.msra.mxu0 0
      %1946 = vmatprep.subr.bf16.mxu0 0
      %1947 = vmatpush1.bf16.msra.mxu0 0
      %1948 = vmatprep.subr.bf16.mxu0 0
      %1949 = vmatpush1.bf16.msra.mxu0 0
      %1950 = vmatprep.subr.bf16.mxu0 0
      %1951 = vmatpush1.bf16.msra.mxu0 0
      %1952 = vmatprep.subr.bf16.mxu0 0
      %1953 = vmatpush1.bf16.msra.mxu0 0
      %1954 = vmatprep.subr.bf16.mxu0 0
      %1955 = vmatpush1.bf16.msra.mxu0 0
      %1956 = vmatprep.mubr.bf16.mxu0 0
      %1957 = vmatmul.mubr.bf16.gmra.mrb[0].mxu0 %v1873
      %v1958 = vpop.f32.mrb[0].mxu0
      %v1959 = vadd.f32 %v1842, %v1958
      %v1960 = vpop.f32.mrb[0].mxu0
      %v1961 = vpop.f32.mrb[0].mxu0
      %v1962 = vadd.f32 %v1842, %v1961
      %v1963 = vpop.f32.mrb[0].mxu0
      %1964 = vmatprep.mubr.bf16.mxu0 0
      %1965 = vmatmul.mubr.bf16.gmra.mrb[0].mxu0 %v1876
      %v1966 = vpop.f32.mrb[0].mxu0
      %v1967 = vadd.f32 %v1842, %v1966
      %v1968 = vpop.f32.mrb[0].mxu0
      %v1969 = vpop.f32.mrb[0].mxu0
      %v1970 = vadd.f32 %v1842, %v1969
      %v1971 = vpop.f32.mrb[0].mxu0
      %1972 = vmatprep.mubr.bf16.mxu0 0
      %1973 = vmatmul.mubr.bf16.gmra.mrb[0].mxu0 %v1879
      %v1974 = vpop.f32.mrb[0].mxu0
      %v1975 = vadd.f32 %v1842, %v1974
      %v1976 = vpop.f32.mrb[0].mxu0
      %v1977 = vpop.f32.mrb[0].mxu0
      %v1978 = vadd.f32 %v1842, %v1977
      %v1979 = vpop.f32.mrb[0].mxu0
      %1980 = vmatprep.mubr.bf16.mxu0 0
      %1981 = vmatmul.mubr.bf16.gmra.mrb[0].mxu0 %v1882
      %v1982 = vpop.f32.mrb[0].mxu0
      %v1983 = vadd.f32 %v1842, %v1982
      %v1984 = vpop.f32.mrb[0].mxu0
      %v1985 = vpop.f32.mrb[0].mxu0
      %v1986 = vadd.f32 %v1842, %v1985
      %v1987 = vpop.f32.mrb[0].mxu0
      %1988 = vmatprep.mubr.bf16.mxu0 0
      %1989 = vmatmul.mubr.bf16.gmra.mrb[0].mxu0 %v1885
      %v1990 = vpop.f32.mrb[0].mxu0
      %v1991 = vadd.f32 %v1842, %v1990
      %v1992 = vpop.f32.mrb[0].mxu0
      %v1993 = vpop.f32.mrb[0].mxu0
      %v1994 = vadd.f32 %v1842, %v1993
      %v1995 = vpop.f32.mrb[0].mxu0
      %1996 = vmatprep.mubr.bf16.mxu0 0
      %1997 = vmatmul.mubr.bf16.gmra.mrb[0].mxu0 %v1888
      %v1998 = vpop.f32.mrb[0].mxu0
      %v1999 = vadd.f32 %v1842, %v1998
      %v2000 = vpop.f32.mrb[0].mxu0
      %v2001 = vpop.f32.mrb[0].mxu0
      %v2002 = vadd.f32 %v1842, %v2001
      %v2003 = vpop.f32.mrb[0].mxu0
      %2004 = vmatprep.mubr.bf16.mxu0 0
      %2005 = vmatmul.mubr.bf16.gmra.mrb[0].mxu0 %v1891
      %v2006 = vpop.f32.mrb[0].mxu0
      %v2007 = vadd.f32 %v1842, %v2006
      %v2008 = vpop.f32.mrb[0].mxu0
      %v2009 = vpop.f32.mrb[0].mxu0
      %v2010 = vadd.f32 %v1842, %v2009
      %v2011 = vpop.f32.mrb[0].mxu0
      %2012 = vmatprep.mubr.bf16.mxu0 0
      %2013 = vmatmul.mubr.bf16.gmra.mrb[0].mxu0 %v1894
      %v2014 = vpop.f32.mrb[0].mxu0
      %v2015 = vadd.f32 %v1842, %v2014
      %v2016 = vpop.f32.mrb[0].mxu0
      %v2017 = vpop.f32.mrb[0].mxu0
      %v2018 = vadd.f32 %v1842, %v2017
      %v2019 = vpop.f32.mrb[0].mxu0
      %2020 = vmatprep.mubr.bf16.mxu0 0
      %2021 = vmatmul.mubr.bf16.gmra.mrb[0].mxu0 %v1897
      %v2022 = vpop.f32.mrb[0].mxu0
      %v2023 = vadd.f32 %v1842, %v2022
      %v2024 = vpop.f32.mrb[0].mxu0
      %v2025 = vpop.f32.mrb[0].mxu0
      %v2026 = vadd.f32 %v1842, %v2025
      %v2027 = vpop.f32.mrb[0].mxu0
      %2028 = vmatprep.mubr.bf16.mxu0 0
      %2029 = vmatmul.mubr.bf16.gmra.mrb[0].mxu0 %v1900
      %v2030 = vpop.f32.mrb[0].mxu0
      %v2031 = vadd.f32 %v1842, %v2030
      %v2032 = vpop.f32.mrb[0].mxu0
      %v2033 = vpop.f32.mrb[0].mxu0
      %v2034 = vadd.f32 %v1842, %v2033
      %v2035 = vpop.f32.mrb[0].mxu0
      %2036 = vmatprep.mubr.bf16.mxu0 0
      %2037 = vmatmul.mubr.bf16.gmra.mrb[0].mxu0 %v1903
      %v2038 = vpop.f32.mrb[0].mxu0
      %v2039 = vadd.f32 %v1842, %v2038
      %v2040 = vpop.f32.mrb[0].mxu0
      %v2041 = vpop.f32.mrb[0].mxu0
      %v2042 = vadd.f32 %v1842, %v2041
      %v2043 = vpop.f32.mrb[0].mxu0
      %2044 = vmatprep.mubr.bf16.mxu0 0
      %2045 = vmatmul.mubr.bf16.gmra.mrb[0].mxu0 %v1906
      %v2046 = vpop.f32.mrb[0].mxu0
      %v2047 = vadd.f32 %v1842, %v2046
      %v2048 = vpop.f32.mrb[0].mxu0
      %v2049 = vpop.f32.mrb[0].mxu0
      %v2050 = vadd.f32 %v1842, %v2049
      %v2051 = vpop.f32.mrb[0].mxu0
      %2052 = vmatprep.mubr.bf16.mxu0 0
      %2053 = vmatmul.mubr.bf16.gmra.mrb[0].mxu0 %v1909
      %v2054 = vpop.f32.mrb[0].mxu0
      %v2055 = vadd.f32 %v1842, %v2054
      %v2056 = vpop.f32.mrb[0].mxu0
      %v2057 = vpop.f32.mrb[0].mxu0
      %v2058 = vadd.f32 %v1842, %v2057
      %v2059 = vpop.f32.mrb[0].mxu0
      %2060 = vmatprep.mubr.bf16.mxu0 0
      %2061 = vmatmul.mubr.bf16.gmra.mrb[0].mxu0 %v1912
      %v2062 = vpop.f32.mrb[0].mxu0
      %v2063 = vadd.f32 %v1842, %v2062
      %v2064 = vpop.f32.mrb[0].mxu0
      %v2065 = vpop.f32.mrb[0].mxu0
      %v2066 = vadd.f32 %v1842, %v2065
      %v2067 = vpop.f32.mrb[0].mxu0
      %2068 = vmatprep.mubr.bf16.mxu0 0
      %2069 = vmatmul.mubr.bf16.gmra.mrb[0].mxu0 %v1915
      %v2070 = vpop.f32.mrb[0].mxu0
      %v2071 = vadd.f32 %v1842, %v2070
      %v2072 = vpop.f32.mrb[0].mxu0
      %v2073 = vpop.f32.mrb[0].mxu0
      %v2074 = vadd.f32 %v1842, %v2073
      %v2075 = vpop.f32.mrb[0].mxu0
      %2076 = vmatprep.mubr.bf16.mxu0 0
      %2077 = vmatmul.mubr.bf16.gmra.mrb[0].mxu0 %v1918
      %v2078 = vpop.f32.mrb[0].mxu0
      %v2079 = vadd.f32 %v1842, %v2078
      %v2080 = vpop.f32.mrb[0].mxu0
      %v2081 = vpop.f32.mrb[0].mxu0
      %v2082 = vadd.f32 %v1842, %v2081
      %v2083 = vpop.f32.mrb[0].mxu0
      %2084 = vdwg.mxu0
      %2085 = vst.msk [vmem:[%s403] sm:$0xff] %vm502, %v1959
      %2086 = vst.msk [vmem:[%s403 + $0x8] sm:$0xff] %vm502, %v1962
      %2087 = vst.msk [vmem:[%s403 + $0x10] sm:$0xff] %vm502, %v1967
      %2088 = vst.msk [vmem:[%s403 + $0x18] sm:$0xff] %vm502, %v1970
      %2089 = vst.msk [vmem:[%s403 + $0x20] sm:$0xff] %vm502, %v1975
      %2090 = vst.msk [vmem:[%s403 + $0x28] sm:$0xff] %vm502, %v1978
      %2091 = vst.msk [vmem:[%s403 + $0x30] sm:$0xff] %vm502, %v1983
      %2092 = vst.msk [vmem:[%s403 + $0x38] sm:$0xff] %vm502, %v1986
      %2093 = vst.msk [vmem:[%s403 + $0x40] sm:$0xff] %vm502, %v1991
      %2094 = vst.msk [vmem:[%s403 + $0x48] sm:$0xff] %vm502, %v1994
      %2095 = vst.msk [vmem:[%s403 + $0x50] sm:$0xff] %vm502, %v1999
      %2096 = vst.msk [vmem:[%s403 + $0x58] sm:$0xff] %vm502, %v2002
      %2097 = vst.msk [vmem:[%s403 + $0x60] sm:$0xff] %vm502, %v2007
      %2098 = vst.msk [vmem:[%s403 + $0x68] sm:$0xff] %vm502, %v2010
      %2099 = vst.msk [vmem:[%s403 + $0x70] sm:$0xff] %vm502, %v2015
      %2100 = vst.msk [vmem:[%s403 + $0x78] sm:$0xff] %vm502, %v2018
      %2101 = vst.msk [vmem:[%s403 + $0x80] sm:$0xff] %vm502, %v2023
      %2102 = vst.msk [vmem:[%s403 + $0x88] sm:$0xff] %vm502, %v2026
      %2103 = vst.msk [vmem:[%s403 + $0x90] sm:$0xff] %vm502, %v2031
      %2104 = vst.msk [vmem:[%s403 + $0x98] sm:$0xff] %vm502, %v2034
      %2105 = vst.msk [vmem:[%s403 + $0xa0] sm:$0xff] %vm502, %v2039
      %2106 = vst.msk [vmem:[%s403 + $0xa8] sm:$0xff] %vm502, %v2042
      %2107 = vst.msk [vmem:[%s403 + $0xb0] sm:$0xff] %vm502, %v2047
      %2108 = vst.msk [vmem:[%s403 + $0xb8] sm:$0xff] %vm502, %v2050
      %2109 = vst.msk [vmem:[%s403 + $0xc0] sm:$0xff] %vm502, %v2055
      %2110 = vst.msk [vmem:[%s403 + $0xc8] sm:$0xff] %vm502, %v2058
      %2111 = vst.msk [vmem:[%s403 + $0xd0] sm:$0xff] %vm502, %v2063
      %2112 = vst.msk [vmem:[%s403 + $0xd8] sm:$0xff] %vm502, %v2066
      %2113 = vst.msk [vmem:[%s403 + $0xe0] sm:$0xff] %vm502, %v2071
      %2114 = vst.msk [vmem:[%s403 + $0xe8] sm:$0xff] %vm502, %v2074
      %2115 = vst.msk [vmem:[%s403 + $0xf0] sm:$0xff] %vm502, %v2079
      %2116 = vst.msk [vmem:[%s403 + $0xf8] sm:$0xff] %vm502, %v2082
      %v2117 = vsel %vm502, %v1959, 0.0
      %v2118 = vsel %vm502, %v1962, 0.0
      %v2119 = vadd.f32 %v2117, %v2118
      %v2120 = vsel %vm502, %v1967, 0.0
      %v2121 = vadd.f32 %v2119, %v2120
      %v2122 = vsel %vm502, %v1970, 0.0
      %v2123 = vadd.f32 %v2121, %v2122
      %v2124 = vsel %vm502, %v1975, 0.0
      %v2125 = vadd.f32 %v2123, %v2124
      %v2126 = vsel %vm502, %v1978, 0.0
      %v2127 = vadd.f32 %v2125, %v2126
      %v2128 = vsel %vm502, %v1983, 0.0
      %v2129 = vadd.f32 %v2127, %v2128
      %v2130 = vsel %vm502, %v1986, 0.0
      %v2131 = vadd.f32 %v2129, %v2130
      %v2132 = vsel %vm502, %v1991, 0.0
      %v2133 = vadd.f32 %v2131, %v2132
      %v2134 = vsel %vm502, %v1994, 0.0
      %v2135 = vadd.f32 %v2133, %v2134
      %v2136 = vsel %vm502, %v1999, 0.0
      %v2137 = vadd.f32 %v2135, %v2136
      %v2138 = vsel %vm502, %v2002, 0.0
      %v2139 = vadd.f32 %v2137, %v2138
      %v2140 = vsel %vm502, %v2007, 0.0
      %v2141 = vadd.f32 %v2139, %v2140
      %v2142 = vsel %vm502, %v2010, 0.0
      %v2143 = vadd.f32 %v2141, %v2142
      %v2144 = vsel %vm502, %v2015, 0.0
      %v2145 = vadd.f32 %v2143, %v2144
      %v2146 = vsel %vm502, %v2018, 0.0
      %v2147 = vadd.f32 %v2145, %v2146
      %v2148 = vsel %vm502, %v2023, 0.0
      %v2149 = vadd.f32 %v2147, %v2148
      %v2150 = vsel %vm502, %v2026, 0.0
      %v2151 = vadd.f32 %v2149, %v2150
      %v2152 = vsel %vm502, %v2031, 0.0
      %v2153 = vadd.f32 %v2151, %v2152
      %v2154 = vsel %vm502, %v2034, 0.0
      %v2155 = vadd.f32 %v2153, %v2154
      %v2156 = vsel %vm502, %v2039, 0.0
      %v2157 = vadd.f32 %v2155, %v2156
      %v2158 = vsel %vm502, %v2042, 0.0
      %v2159 = vadd.f32 %v2157, %v2158
      %v2160 = vsel %vm502, %v2047, 0.0
      %v2161 = vadd.f32 %v2159, %v2160
      %v2162 = vsel %vm502, %v2050, 0.0
      %v2163 = vadd.f32 %v2161, %v2162
      %v2164 = vsel %vm502, %v2055, 0.0
      %v2165 = vadd.f32 %v2163, %v2164
      %v2166 = vsel %vm502, %v2058, 0.0
      %v2167 = vadd.f32 %v2165, %v2166
      %v2168 = vsel %vm502, %v2063, 0.0
      %v2169 = vadd.f32 %v2167, %v2168
      %v2170 = vsel %vm502, %v2066, 0.0
      %v2171 = vadd.f32 %v2169, %v2170
      %v2172 = vsel %vm502, %v2071, 0.0
      %v2173 = vadd.f32 %v2171, %v2172
      %v2174 = vsel %vm502, %v2074, 0.0
      %v2175 = vadd.f32 %v2173, %v2174
      %v2176 = vsel %vm502, %v2079, 0.0
      %v2177 = vadd.f32 %v2175, %v2176
      %v2178 = vsel %vm502, %v2082, 0.0
      %v2179 = vadd.f32 %v2177, %v2178
      %v2180 = vrot.slane %v2179, 4
      %v2181 = vadd.f32 %v2179, %v2180
      %v2182 = vrot.slane %v2181, 2
      %v2183 = vadd.f32 %v2181, %v2182
      %v2184 = vrot.slane %v2183, 1
      %v2185 = vadd.f32 %v2183, %v2184
      %2186 = vst.msk [vmem:[%s410] sm:$0x1] %vm418, %v2185
      %v2187 = vmul.f32 %v1959, %v1959
      %v2188 = vmul.f32 %v1962, %v1962
      %v2189 = vmul.f32 %v1967, %v1967
      %v2190 = vmul.f32 %v1970, %v1970
      %v2191 = vmul.f32 %v1975, %v1975
      %v2192 = vmul.f32 %v1978, %v1978
      %v2193 = vmul.f32 %v1983, %v1983
      %v2194 = vmul.f32 %v1986, %v1986
      %v2195 = vmul.f32 %v1991, %v1991
      %v2196 = vmul.f32 %v1994, %v1994
      %v2197 = vmul.f32 %v1999, %v1999
      %v2198 = vmul.f32 %v2002, %v2002
      %v2199 = vmul.f32 %v2007, %v2007
      %v2200 = vmul.f32 %v2010, %v2010
      %v2201 = vmul.f32 %v2015, %v2015
      %v2202 = vmul.f32 %v2018, %v2018
      %v2203 = vmul.f32 %v2023, %v2023
      %v2204 = vmul.f32 %v2026, %v2026
      %v2205 = vmul.f32 %v2031, %v2031
      %v2206 = vmul.f32 %v2034, %v2034
      %v2207 = vmul.f32 %v2039, %v2039
      %v2208 = vmul.f32 %v2042, %v2042
      %v2209 = vmul.f32 %v2047, %v2047
      %v2210 = vmul.f32 %v2050, %v2050
      %v2211 = vmul.f32 %v2055, %v2055
      %v2212 = vmul.f32 %v2058, %v2058
      %v2213 = vmul.f32 %v2063, %v2063
      %v2214 = vmul.f32 %v2066, %v2066
      %v2215 = vmul.f32 %v2071, %v2071
      %v2216 = vmul.f32 %v2074, %v2074
      %v2217 = vmul.f32 %v2079, %v2079
      %v2218 = vmul.f32 %v2082, %v2082
      %v2219 = vsel %vm502, %v2187, 0.0
      %v2220 = vsel %vm502, %v2188, 0.0
      %v2221 = vadd.f32 %v2219, %v2220
      %v2222 = vsel %vm502, %v2189, 0.0
      %v2223 = vadd.f32 %v2221, %v2222
      %v2224 = vsel %vm502, %v2190, 0.0
      %v2225 = vadd.f32 %v2223, %v2224
      %v2226 = vsel %vm502, %v2191, 0.0
      %v2227 = vadd.f32 %v2225, %v2226
      %v2228 = vsel %vm502, %v2192, 0.0
      %v2229 = vadd.f32 %v2227, %v2228
      %v2230 = vsel %vm502, %v2193, 0.0
      %v2231 = vadd.f32 %v2229, %v2230
      %v2232 = vsel %vm502, %v2194, 0.0
      %v2233 = vadd.f32 %v2231, %v2232
      %v2234 = vsel %vm502, %v2195, 0.0
      %v2235 = vadd.f32 %v2233, %v2234
      %v2236 = vsel %vm502, %v2196, 0.0
      %v2237 = vadd.f32 %v2235, %v2236
      %v2238 = vsel %vm502, %v2197, 0.0
      %v2239 = vadd.f32 %v2237, %v2238
      %v2240 = vsel %vm502, %v2198, 0.0
      %v2241 = vadd.f32 %v2239, %v2240
      %v2242 = vsel %vm502, %v2199, 0.0
      %v2243 = vadd.f32 %v2241, %v2242
      %v2244 = vsel %vm502, %v2200, 0.0
      %v2245 = vadd.f32 %v2243, %v2244
      %v2246 = vsel %vm502, %v2201, 0.0
      %v2247 = vadd.f32 %v2245, %v2246
      %v2248 = vsel %vm502, %v2202, 0.0
      %v2249 = vadd.f32 %v2247, %v2248
      %v2250 = vsel %vm502, %v2203, 0.0
      %v2251 = vadd.f32 %v2249, %v2250
      %v2252 = vsel %vm502, %v2204, 0.0
      %v2253 = vadd.f32 %v2251, %v2252
      %v2254 = vsel %vm502, %v2205, 0.0
      %v2255 = vadd.f32 %v2253, %v2254
      %v2256 = vsel %vm502, %v2206, 0.0
      %v2257 = vadd.f32 %v2255, %v2256
      %v2258 = vsel %vm502, %v2207, 0.0
      %v2259 = vadd.f32 %v2257, %v2258
      %v2260 = vsel %vm502, %v2208, 0.0
      %v2261 = vadd.f32 %v2259, %v2260
      %v2262 = vsel %vm502, %v2209, 0.0
      %v2263 = vadd.f32 %v2261, %v2262
      %v2264 = vsel %vm502, %v2210, 0.0
      %v2265 = vadd.f32 %v2263, %v2264
      %v2266 = vsel %vm502, %v2211, 0.0
      %v2267 = vadd.f32 %v2265, %v2266
      %v2268 = vsel %vm502, %v2212, 0.0
      %v2269 = vadd.f32 %v2267, %v2268
      %v2270 = vsel %vm502, %v2213, 0.0
      %v2271 = vadd.f32 %v2269, %v2270
      %v2272 = vsel %vm502, %v2214, 0.0
      %v2273 = vadd.f32 %v2271, %v2272
      %v2274 = vsel %vm502, %v2215, 0.0
      %v2275 = vadd.f32 %v2273, %v2274
      %v2276 = vsel %vm502, %v2216, 0.0
      %v2277 = vadd.f32 %v2275, %v2276
      %v2278 = vsel %vm502, %v2217, 0.0
      %v2279 = vadd.f32 %v2277, %v2278
      %v2280 = vsel %vm502, %v2218, 0.0
      %v2281 = vadd.f32 %v2279, %v2280
      %v2282 = vrot.slane %v2281, 4
      %v2283 = vadd.f32 %v2281, %v2282
      %v2284 = vrot.slane %v2283, 2
      %v2285 = vadd.f32 %v2283, %v2284
      %v2286 = vrot.slane %v2285, 1
      %v2287 = vadd.f32 %v2285, %v2286
      %2288 = vst.msk [vmem:[%s416] sm:$0x1] %vm418, %v2287
      %s2289 = smul.u32 16, %s25
      %p2290 = scmp.lt.s32.totalorder %s24, 1
      %s2291 = scalar_select %p2290, %s24, 1
      %p2292 = scmp.lt.s32.totalorder %s2289, 15
      %s2293 = scalar_select %p2292, %s2289, 15
      %s2294 = smul.addr %s2293, 2
      %s2295 = smul.addr %s2291, 32
      %s2296 = sadd.s32 %s2294, %s2295
      %s2297 = smul.addr %s2296, 8
      %s2298 = scalar_lea.vmem %s6, %s2297
      %p2299 = scmp.lt.s32.totalorder %s24, 1
      %s2300 = scalar_select %p2299, %s24, 1
      %p2301 = scmp.lt.s32.totalorder %s25, 0
      %s2302 = scalar_select %p2301, %s25, 0
      %s2303 = sadd.s32 %s2302, %s2300
      %s2304 = scalar_lea.vmem %s7, %s2303
      %p2305 = scmp.lt.s32.totalorder %s24, 1
      %s2306 = scalar_select %p2305, %s24, 1
      %p2307 = scmp.lt.s32.totalorder %s25, 0
      %s2308 = scalar_select %p2307, %s25, 0
      %s2309 = sadd.s32 %s2308, %s2306
      %s2310 = scalar_lea.vmem %s8, %s2309
      // Predicated region
      $region45: #{conv_block_forward.4} parent=43 // pred_check
        %p2311 = pneg %p192
      $region46: #{conv_block_forward.4} parent=43 // pred_check_branch
        %2313 = sbr.rel (%p2311) target = $region48
      $region47: #{conv_block_forward.4} parent=43 // pred_region
        %s2314 = smul.u32 16, %s25
      $region48: #{conv_block_forward.4} parent=43 // pred_fallthru
        _
      // Predicated region
      $region49: #{conv_block_forward.4} parent=43 // pred_check
        %p2315 = pneg %p220
      $region50: #{conv_block_forward.4} parent=43 // pred_check_branch
        %2317 = sbr.rel (%p2315) target = $region52
      $region51: #{conv_block_forward.4} parent=43 // pred_region
        _
      $region52: #{conv_block_forward.4} parent=43 // pred_fallthru
        _
      // Predicated region
      $region53: #{conv_block_forward.4} parent=43 // pred_check
        %p2318 = pneg %p248
      $region54: #{conv_block_forward.4} parent=43 // pred_check_branch
        %2320 = sbr.rel (%p2318) target = $region56
      $region55: #{conv_block_forward.4} parent=43 // pred_region
        _
      $region56: #{conv_block_forward.4} parent=43 // pred_fallthru
        _
    $region44: #{conv_block_forward.4} parent=5 // pred_fallthru
      _
    %p2321 = scmp.le.s32.totalorder 2, %s15
    // Predicated region
    $region57: #{conv_block_forward.4} parent=5 // pred_check
      %p2322 = pneg %p2321
    $region58: #{conv_block_forward.4} parent=5 // pred_check_branch
      %2324 = sbr.rel (%p2322) target = $region60
    $region59: #{conv_block_forward.4} parent=5 // pred_region
      %s2325 = ssub.s32 %s15, 2
      // Predicated region
      $region61: #{conv_block_forward.4} parent=59 // pred_check
        %p2326 = pneg %p198
      $region62: #{conv_block_forward.4} parent=59 // pred_check_branch
        %2328 = sbr.rel (%p2326) target = $region64
      $region63: #{conv_block_forward.4} parent=59 // pred_region
        %s2329 = smul.u32 16, %s27
        %p2330 = scmp.lt.s32.totalorder %s26, 1
        %s2331 = scalar_select %p2330, %s26, 1
        %p2332 = scmp.lt.s32.totalorder %s2329, 15
        %s2333 = scalar_select %p2332, %s2329, 15
        %s2334 = smul.addr %s2333, 2
        %s2335 = smul.addr %s2331, 32
        %s2336 = sadd.s32 %s2334, %s2335
        %s2337 = smul.addr %s2336, 8
        %s2338 = scalar_lea.vmem %s6, %s2337
      $region64: #{conv_block_forward.4} parent=59 // pred_fallthru
        _
      // Predicated region
      $region65: #{conv_block_forward.4} parent=59 // pred_check
        %p2339 = pneg %p226
      $region66: #{conv_block_forward.4} parent=59 // pred_check_branch
        %2341 = sbr.rel (%p2339) target = $region68
      $region67: #{conv_block_forward.4} parent=59 // pred_region
        %p2342 = scmp.lt.s32.totalorder %s26, 1
        %s2343 = scalar_select %p2342, %s26, 1
        %p2344 = scmp.lt.s32.totalorder %s27, 0
        %s2345 = scalar_select %p2344, %s27, 0
        %s2346 = sadd.s32 %s2345, %s2343
        %s2347 = scalar_lea.vmem %s7, %s2346
      $region68: #{conv_block_forward.4} parent=59 // pred_fallthru
        _
      // Predicated region
      $region69: #{conv_block_forward.4} parent=59 // pred_check
        %p2348 = pneg %p254
      $region70: #{conv_block_forward.4} parent=59 // pred_check_branch
        %2350 = sbr.rel (%p2348) target = $region72
      $region71: #{conv_block_forward.4} parent=59 // pred_region
        %p2351 = scmp.lt.s32.totalorder %s26, 1
        %s2352 = scalar_select %p2351, %s26, 1
        %p2353 = scmp.lt.s32.totalorder %s27, 0
        %s2354 = scalar_select %p2353, %s27, 0
        %s2355 = sadd.s32 %s2354, %s2352
        %s2356 = scalar_lea.vmem %s8, %s2355
      $region72: #{conv_block_forward.4} parent=59 // pred_fallthru
        _
    $region60: #{conv_block_forward.4} parent=5 // pred_fallthru
      _
  $region6: #{conv_block_forward.4} parent=0 // loop_footer
    %s19 = sadd.s32 1, %s15
  $region7: #{conv_block_forward.4} parent=0 // loop_footer_branch
    %14 = sbr.rel target = $region3
  $region8: #{conv_block_forward.4} parent=0 // loop_exit
    _

// kernel: conv_block_forward.3
$region0: #{conv_block_forward.3}
  #allocation0 [shape = 'u32[]', space=smem, size = 0x4, offset = 0x4, fixed_abs, tag = 'smem constant byte address 0x4 - core index']
  #allocation1 [shape = 'u32[144,128]{1,0:T(1,128)}', space=vmem, size = 0x12000, scoped, tag = 'internal scratch']
  #allocation2 [shape = 'f32[18,18,4]{2,1,0:T(8,128)}', space=vmem, size = 0x36000, scoped, tag = 'scratch operand']
  #allocation3 [shape = 'bf16[256,36]{1,0:T(16,128)(2,1)}', space=vmem, size = 0x10000, scoped, tag = 'scratch operand']
  %s0 = inlined_call_operand.vmem [shape: f32[2,16,16,4], index: 0, kind: input, shape index: {}]
  %s1 = inlined_call_operand.vmem [shape: f32[2,1,2,16,4], index: 1, kind: input, shape index: {}]
  %s2 = inlined_call_operand.vmem [shape: bf16[36,8], index: 2, kind: input, shape index: {}]
  %s3 = inlined_call_operand.vmem [shape: f32[1,8], index: 3, kind: input, shape index: {}]
  %s4 = inlined_call_operand.vmem [shape: f32[1,4], index: 4, kind: input, shape index: {}]
  %s5 = inlined_call_operand.vmem [shape: f32[1,4], index: 5, kind: input, shape index: {}]
  %s6 = inlined_call_operand.vmem [shape: bf16[2,16,16,8], index: 6, kind: output, shape index: {0}]
  %s7 = inlined_call_operand.vmem [shape: f32[2,1,1,8], index: 7, kind: output, shape index: {1}]
  %s8 = inlined_call_operand.vmem [shape: f32[2,1,1,8], index: 8, kind: output, shape index: {2}]
  %9 = xla_tuple %s6, %s7, %s8
  %s10 = sld [smem:[#allocation0]]
  $region73: #{conv_block_forward.3} parent=0
    _
  %s12 = ssub.s32 1, %s10
  %s13 = scalar_select 0, %s12, %s10
  loop: start=0, step=1, limit=4
  $region2: #{conv_block_forward.3} parent=0 // loop_pre_header
    _
  $region3: #{conv_block_forward.3} parent=0 // loop_header
    %s15 = sphi 0, %s19
    %p16 = scmp.ge.s32.totalorder %s15, 4
    %s22 = sphi 0, %s34
    %s23 = sphi 0, %s30
    %s24 = sphi 0, %s22
    %s25 = sphi 0, %s23
    %s26 = sphi 0, %s24
    %s27 = sphi 0, %s25
    %s39 = sphi 0, %s41
    %s42 = sphi 0, %s39
    %s43 = sphi 0, %s42
    %s59 = sphi 0, %s43
    %s67 = sphi 0, %s69
    %s70 = sphi 0, %s67
    %s71 = sphi 0, %s70
    %s87 = sphi 0, %s71
    %s91 = sphi 0, %s91
    %s93 = sphi 0, %s91
    %s94 = sphi 0, %s93
    %s108 = sphi 0, %s94
    %s112 = sphi 0, %s112
    %s114 = sphi 0, %s112
    %s115 = sphi 0, %s114
    %s129 = sphi 0, %s115
    %s133 = sphi 0, %s133
    %s135 = sphi 0, %s133
    %s136 = sphi 0, %s135
    %s150 = sphi 0, %s136
    %s154 = sphi 0, %s154
    %s156 = sphi 0, %s154
    %s157 = sphi 0, %s156
    %s171 = sphi 0, %s157
    %s179 = sphi 0, %s181
    %s182 = sphi 0, %s179
    %s183 = sphi 0, %s182
    %s199 = sphi 0, %s183
    %s207 = sphi 0, %s209
    %s210 = sphi 0, %s207
    %s211 = sphi 0, %s210
    %s227 = sphi 0, %s211
    %s235 = sphi 0, %s237
    %s238 = sphi 0, %s235
    %s239 = sphi 0, %s238
    %s255 = sphi 0, %s239
  $region4: #{conv_block_forward.3} parent=0 // loop_header_branch
    %18 = sbr.rel (%p16) target = $region8
  $region5: #{conv_block_forward.3} parent=0 // loop_body
    %s20 = ssub.s32 %s15, 1
    %s21 = ssub.s32 %s15, 2
    %s28 = sadd.s32 1, %s23
    %p29 = scmp.ge.s32.totalorder %s28, 1
    %s30 = scalar_select %p29, 0, %s28
    %s31 = sadd.s32 1, %s22
    %s32 = scalar_select %p29, %s31, %s22
    %p33 = scmp.ge.s32.totalorder %s32, 2
    %s34 = scalar_select %p33, 0, %s32
    %s35 = ssub.s32 %s22, %s34
    %s36 = ssub.s32 %s23, %s30
    %s37 = sor.u32 %s35, %s36
    %p38 = scmp.eq.s32.totalorder %s37, 0
    %s40 = sadd.s32 %s39, 1
    %s41 = scalar_select %p38, %s39, %s40
    %p44 = pneg %p38
    %p45 = scmp.eq.s32.totalorder %s15, 1
    %p46 = por %p44, %p45
    %p47 = scmp.ne.s32.totalorder %s39, %s42
    %p48 = scmp.eq.s32.totalorder %s15, 0
    %p49 = por %p47, %p48
    %p50 = scmp.ne.s32.totalorder %s39, %s42
    %p51 = scmp.eq.s32.totalorder %s20, 1
    %p52 = por %p50, %p51
    %p53 = scmp.ne.s32.totalorder %s42, %s43
    %p54 = scmp.eq.s32.totalorder %s20, 0
    %p55 = por %p53, %p54
    %p56 = scmp.ne.s32.totalorder %s42, %s43
    %p57 = scmp.eq.s32.totalorder %s21, 1
    %p58 = por %p56, %p57
    %p60 = scmp.ne.s32.totalorder %s43, %s59
    %p61 = scmp.eq.s32.totalorder %s21, 0
    %p62 = por %p60, %p61
    %s63 = ssub.s32 %s22, %s34
    %s64 = ssub.s32 %s23, %s30
    %s65 = sor.u32 %s63, %s64
    %p66 = scmp.eq.s32.totalorder %s65, 0
    %s68 = sadd.s32 %s67, 1
    %s69 = scalar_select %p66, %s67, %s68
    %p72 = pneg %p66
    %p73 = scmp.eq.s32.totalorder %s15, 1
    %p74 = por %p72, %p73
    %p75 = scmp.ne.s32.totalorder %s67, %s70
    %p76 = scmp.eq.s32.totalorder %s15, 0
    %p77 = por %p75, %p76
    %p78 = scmp.ne.s32.totalorder %s67, %s70
    %p79 = scmp.eq.s32.totalorder %s20, 1
    %p80 = por %p78, %p79
    %p81 = scmp.ne.s32.totalorder %s70, %s71
    %p82 = scmp.eq.s32.totalorder %s20, 0
    %p83 = por %p81, %p82
    %p84 = scmp.ne.s32.totalorder %s70, %s71
    %p85 = scmp.eq.s32.totalorder %s21, 1
    %p86 = por %p84, %p85
    %p88 = scmp.ne.s32.totalorder %s71, %s87
    %p89 = scmp.eq.s32.totalorder %s21, 0
    %p90 = por %p88, %p89
    %s92 = sadd.s32 %s91, 1
    %p95 = scmp.eq.s32.totalorder %s15, 1
    %p96 = scmp.ne.s32.totalorder %s91, %s93
    %p97 = scmp.eq.s32.totalorder %s15, 0
    %p98 = por %p96, %p97
    %p99 = scmp.ne.s32.totalorder %s91, %s93
    %p100 = scmp.eq.s32.totalorder %s20, 1
    %p101 = por %p99, %p100
    %p102 = scmp.ne.s32.totalorder %s93, %s94
    %p103 = scmp.eq.s32.totalorder %s20, 0
    %p104 = por %p102, %p103
    %p105 = scmp.ne.s32.totalorder %s93, %s94
    %p106 = scmp.eq.s32.totalorder %s21, 1
    %p107 = por %p105, %p106
    %p109 = scmp.ne.s32.totalorder %s94, %s108
    %p110 = scmp.eq.s32.totalorder %s21, 0
    %p111 = por %p109, %p110
    %s113 = sadd.s32 %s112, 1
    %p116 = scmp.eq.s32.totalorder %s15, 1
    %p117 = scmp.ne.s32.totalorder %s112, %s114
    %p118 = scmp.eq.s32.totalorder %s15, 0
    %p119 = por %p117, %p118
    %p120 = scmp.ne.s32.totalorder %s112, %s114
    %p121 = scmp.eq.s32.totalorder %s20, 1
    %p122 = por %p120, %p121
    %p123 = scmp.ne.s32.totalorder %s114, %s115
    %p124 = scmp.eq.s32.totalorder %s20, 0
    %p125 = por %p123, %p124
    %p126 = scmp.ne.s32.totalorder %s114, %s115
    %p127 = scmp.eq.s32.totalorder %s21, 1
    %p128 = por %p126, %p127
    %p130 = scmp.ne.s32.totalorder %s115, %s129
    %p131 = scmp.eq.s32.totalorder %s21, 0
    %p132 = por %p130, %p131
    %s134 = sadd.s32 %s133, 1
    %p137 = scmp.eq.s32.totalorder %s15, 1
    %p138 = scmp.ne.s32.totalorder %s133, %s135
    %p139 = scmp.eq.s32.totalorder %s15, 0
    %p140 = por %p138, %p139
    %p141 = scmp.ne.s32.totalorder %s133, %s135
    %p142 = scmp.eq.s32.totalorder %s20, 1
    %p143 = por %p141, %p142
    %p144 = scmp.ne.s32.totalorder %s135, %s136
    %p145 = scmp.eq.s32.totalorder %s20, 0
    %p146 = por %p144, %p145
    %p147 = scmp.ne.s32.totalorder %s135, %s136
    %p148 = scmp.eq.s32.totalorder %s21, 1
    %p149 = por %p147, %p148
    %p151 = scmp.ne.s32.totalorder %s136, %s150
    %p152 = scmp.eq.s32.totalorder %s21, 0
    %p153 = por %p151, %p152
    %s155 = sadd.s32 %s154, 1
    %p158 = scmp.eq.s32.totalorder %s15, 1
    %p159 = scmp.ne.s32.totalorder %s154, %s156
    %p160 = scmp.eq.s32.totalorder %s15, 0
    %p161 = por %p159, %p160
    %p162 = scmp.ne.s32.totalorder %s154, %s156
    %p163 = scmp.eq.s32.totalorder %s20, 1
    %p164 = por %p162, %p163
    %p165 = scmp.ne.s32.totalorder %s156, %s157
    %p166 = scmp.eq.s32.totalorder %s20, 0
    %p167 = por %p165, %p166
    %p168 = scmp.ne.s32.totalorder %s156, %s157
    %p169 = scmp.eq.s32.totalorder %s21, 1
    %p170 = por %p168, %p169
    %p172 = scmp.ne.s32.totalorder %s157, %s171
    %p173 = scmp.eq.s32.totalorder %s21, 0
    %p174 = por %p172, %p173
    %s175 = ssub.s32 %s22, %s34
    %s176 = ssub.s32 %s23, %s30
    %s177 = sor.u32 %s175, %s176
    %p178 = scmp.eq.s32.totalorder %s177, 0
    %s180 = sadd.s32 %s179, 1
    %s181 = scalar_select %p178, %s179, %s180
    %p184 = pneg %p178
    %p185 = scmp.eq.s32.totalorder %s15, 1
    %p186 = por %p184, %p185
    %p187 = scmp.ne.s32.totalorder %s179, %s182
    %p188 = scmp.eq.s32.totalorder %s15, 0
    %p189 = por %p187, %p188
    %p190 = scmp.ne.s32.totalorder %s179, %s182
    %p191 = scmp.eq.s32.totalorder %s20, 1
    %p192 = por %p190, %p191
    %p193 = scmp.ne.s32.totalorder %s182, %s183
    %p194 = scmp.eq.s32.totalorder %s20, 0
    %p195 = por %p193, %p194
    %p196 = scmp.ne.s32.totalorder %s182, %s183
    %p197 = scmp.eq.s32.totalorder %s21, 1
    %p198 = por %p196, %p197
    %p200 = scmp.ne.s32.totalorder %s183, %s199
    %p201 = scmp.eq.s32.totalorder %s21, 0
    %p202 = por %p200, %p201
    %s203 = ssub.s32 %s22, %s34
    %s204 = ssub.s32 %s23, %s30
    %s205 = sor.u32 %s203, %s204
    %p206 = scmp.eq.s32.totalorder %s205, 0
    %s208 = sadd.s32 %s207, 1
    %s209 = scalar_select %p206, %s207, %s208
    %p212 = pneg %p206
    %p213 = scmp.eq.s32.totalorder %s15, 1
    %p214 = por %p212, %p213
    %p215 = scmp.ne.s32.totalorder %s207, %s210
    %p216 = scmp.eq.s32.totalorder %s15, 0
    %p217 = por %p215, %p216
    %p218 = scmp.ne.s32.totalorder %s207, %s210
    %p219 = scmp.eq.s32.totalorder %s20, 1
    %p220 = por %p218, %p219
    %p221 = scmp.ne.s32.totalorder %s210, %s211
    %p222 = scmp.eq.s32.totalorder %s20, 0
    %p223 = por %p221, %p222
    %p224 = scmp.ne.s32.totalorder %s210, %s211
    %p225 = scmp.eq.s32.totalorder %s21, 1
    %p226 = por %p224, %p225
    %p228 = scmp.ne.s32.totalorder %s211, %s227
    %p229 = scmp.eq.s32.totalorder %s21, 0
    %p230 = por %p228, %p229
    %s231 = ssub.s32 %s22, %s34
    %s232 = ssub.s32 %s23, %s30
    %s233 = sor.u32 %s231, %s232
    %p234 = scmp.eq.s32.totalorder %s233, 0
    %s236 = sadd.s32 %s235, 1
    %s237 = scalar_select %p234, %s235, %s236
    %p240 = pneg %p234
    %p241 = scmp.eq.s32.totalorder %s15, 1
    %p242 = por %p240, %p241
    %p243 = scmp.ne.s32.totalorder %s235, %s238
    %p244 = scmp.eq.s32.totalorder %s15, 0
    %p245 = por %p243, %p244
    %p246 = scmp.ne.s32.totalorder %s235, %s238
    %p247 = scmp.eq.s32.totalorder %s20, 1
    %p248 = por %p246, %p247
    %p249 = scmp.ne.s32.totalorder %s238, %s239
    %p250 = scmp.eq.s32.totalorder %s20, 0
    %p251 = por %p249, %p250
    %p252 = scmp.ne.s32.totalorder %s238, %s239
    %p253 = scmp.eq.s32.totalorder %s21, 1
    %p254 = por %p252, %p253
    %p256 = scmp.ne.s32.totalorder %s239, %s255
    %p257 = scmp.eq.s32.totalorder %s21, 0
    %p258 = por %p256, %p257
    %p259 = scmp.le.s32.totalorder 1, %s15
    %p260 = scmp.lt.s32.totalorder %s15, 3
    %p261 = pnand %p259, %p260
    %p262 = pneg %p261
    // Predicated region
    $region9: #{conv_block_forward.3} parent=5 // pred_check
      _
    $region10: #{conv_block_forward.3} parent=5 // pred_check_branch
      %264 = sbr.rel (%p261) target = $region12
    $region11: #{conv_block_forward.3} parent=5 // pred_region
      %s265 = ssub.s32 %s15, 1
      // Predicated region
      $region13: #{conv_block_forward.3} parent=11 // pred_check
        %p266 = pneg %p104
      $region14: #{conv_block_forward.3} parent=11 // pred_check_branch
        %268 = sbr.rel (%p266) target = $region16
      $region15: #{conv_block_forward.3} parent=11 // pred_region
        _
      $region16: #{conv_block_forward.3} parent=11 // pred_fallthru
        _
      // Predicated region
      $region17: #{conv_block_forward.3} parent=11 // pred_check
        %p269 = pneg %p125
      $region18: #{conv_block_forward.3} parent=11 // pred_check_branch
        %271 = sbr.rel (%p269) target = $region20
      $region19: #{conv_block_forward.3} parent=11 // pred_region
        _
      $region20: #{conv_block_forward.3} parent=11 // pred_fallthru
        _
      // Predicated region
      $region21: #{conv_block_forward.3} parent=11 // pred_check
        %p272 = pneg %p146
      $region22: #{conv_block_forward.3} parent=11 // pred_check_branch
        %274 = sbr.rel (%p272) target = $region24
      $region23: #{conv_block_forward.3} parent=11 // pred_region
        _
      $region24: #{conv_block_forward.3} parent=11 // pred_fallthru
        _
      // Predicated region
      $region25: #{conv_block_forward.3} parent=11 // pred_check
        %p275 = pneg %p167
      $region26: #{conv_block_forward.3} parent=11 // pred_check_branch
        %277 = sbr.rel (%p275) target = $region28
      $region27: #{conv_block_forward.3} parent=11 // pred_region
        _
      $region28: #{conv_block_forward.3} parent=11 // pred_fallthru
        _
    $region12: #{conv_block_forward.3} parent=5 // pred_fallthru
      _
    %p278 = scmp.lt.s32.totalorder %s15, 2
    // Predicated region
    $region29: #{conv_block_forward.3} parent=5 // pred_check
      %p279 = pneg %p278
    $region30: #{conv_block_forward.3} parent=5 // pred_check_branch
      %281 = sbr.rel (%p279) target = $region32
    $region31: #{conv_block_forward.3} parent=5 // pred_region
      // Predicated region
      $region33: #{conv_block_forward.3} parent=31 // pred_check
        %p282 = pneg %p49
      $region34: #{conv_block_forward.3} parent=31 // pred_check_branch
        %284 = sbr.rel (%p282) target = $region36
      $region35: #{conv_block_forward.3} parent=31 // pred_region
        %s285 = smul.u32 16, %s23
        %p286 = scmp.lt.s32.totalorder %s22, 1
        %s287 = scalar_select %p286, %s22, 1
        %p288 = scmp.lt.s32.totalorder %s285, 15
        %s289 = scalar_select %p288, %s285, 15
        %s290 = smul.addr %s289, 2
        %s291 = smul.addr %s287, 32
        %s292 = sadd.s32 %s290, %s291
        %s293 = smul.addr %s292, 8
        %s294 = scalar_lea.vmem %s0, %s293
        %s295 = smul.u32 16, %s23
      $region36: #{conv_block_forward.3} parent=31 // pred_fallthru
        _
      // Predicated region
      $region37: #{conv_block_forward.3} parent=31 // pred_check
        %p296 = pneg %p77
      $region38: #{conv_block_forward.3} parent=31 // pred_check_branch
        %298 = sbr.rel (%p296) target = $region40
      $region39: #{conv_block_forward.3} parent=31 // pred_region
        %p299 = scmp.lt.s32.totalorder %s22, 1
        %s300 = scalar_select %p299, %s22, 1
        %p301 = scmp.lt.s32.totalorder %s23, 0
        %s302 = scalar_select %p301, %s23, 0
        %s303 = smul.addr %s302, 4
        %s304 = smul.addr %s300, 4
        %s305 = sadd.s32 %s303, %s304
        %s306 = smul.addr %s305, 8
        %s307 = scalar_lea.vmem %s1, %s306
      $region40: #{conv_block_forward.3} parent=31 // pred_fallthru
        _
    $region32: #{conv_block_forward.3} parent=5 // pred_fallthru
      _
    %p308 = scmp.le.s32.totalorder 1, %s15
    %p309 = scmp.lt.s32.totalorder %s15, 3
    %p310 = pnand %p308, %p309
    %p311 = pneg %p310
    // Predicated region
    $region41: #{conv_block_forward.3} parent=5 // pred_check
      _
    $region42: #{conv_block_forward.3} parent=5 // pred_check_branch
      %313 = sbr.rel (%p310) target = $region44
    $region43: #{conv_block_forward.3} parent=5 // pred_region
      %s314 = ssub.s32 %s15, 1
      %s315 = smul.u32 16, %s25
      %p316 = scmp.lt.s32.totalorder %s24, 1
      %s317 = scalar_select %p316, %s24, 1
      %p318 = scmp.lt.s32.totalorder %s315, 15
      %s319 = scalar_select %p318, %s315, 15
      %s320 = smul.addr %s319, 2
      %s321 = smul.addr %s317, 32
      %s322 = sadd.s32 %s320, %s321
      %s323 = smul.addr %s322, 8
      %s324 = scalar_lea.vmem %s0, %s323
      %p325 = pneg %p55
      %p326 = pneg %p52
      %p327 = scmp.lt.s32.totalorder %s24, 1
      %s328 = scalar_select %p327, %s24, 1
      %p329 = scmp.lt.s32.totalorder %s25, 0
      %s330 = scalar_select %p329, %s25, 0
      %s331 = smul.addr %s330, 4
      %s332 = smul.addr %s328, 4
      %s333 = sadd.s32 %s331, %s332
      %s334 = smul.addr %s333, 8
      %s335 = scalar_lea.vmem %s1, %s334
      %p336 = pneg %p83
      %p337 = pneg %p80
      %p338 = pneg %p104
      %p339 = pneg %p101
      %p340 = pneg %p125
      %p341 = pneg %p122
      %p342 = pneg %p146
      %p343 = pneg %p143
      %p344 = pneg %p167
      %p345 = pneg %p164
      %p346 = pneg %p195
      %p347 = pneg %p192
      %s348 = smul.u32 16, %s25
      %p349 = scmp.lt.s32.totalorder %s24, 1
      %s350 = scalar_select %p349, %s24, 1
      %p351 = scmp.lt.s32.totalorder %s348, 15
      %s352 = scalar_select %p351, %s348, 15
      %s353 = smul.addr %s352, 2
      %s354 = smul.addr %s350, 32
      %s355 = sadd.s32 %s353, %s354
      %s356 = smul.addr %s355, 4
      %s357 = scalar_lea.vmem %s6, %s356
      %p358 = pneg %p223
      %p359 = pneg %p220
      %p360 = scmp.lt.s32.totalorder %s24, 1
      %s361 = scalar_select %p360, %s24, 1
      %p362 = scmp.lt.s32.totalorder %s25, 0
      %s363 = scalar_select %p362, %s25, 0
      %s364 = sadd.s32 %s363, %s361
      %s365 = scalar_lea.vmem %s7, %s364
      %p366 = pneg %p251
      %p367 = pneg %p248
      %p368 = scmp.lt.s32.totalorder %s24, 1
      %s369 = scalar_select %p368, %s24, 1
      %p370 = scmp.lt.s32.totalorder %s25, 0
      %s371 = scalar_select %p370, %s25, 0
      %s372 = sadd.s32 %s371, %s369
      %s373 = scalar_lea.vmem %s8, %s372
      %s374 = smul.u32 16, %s25
      %p375 = scmp.lt.s32.totalorder %s24, 1
      %s376 = scalar_select %p375, %s24, 1
      %p377 = scmp.lt.s32.totalorder %s374, 15
      %s378 = scalar_select %p377, %s374, 15
      %s379 = smul.addr %s378, 2
      %s380 = smul.addr %s376, 32
      %s381 = sadd.s32 %s379, %s380
      %s382 = smul.addr %s381, 8
      %s383 = scalar_lea.vmem %s0, %s382
      %s384 = smul.u32 16, %s25
      %p385 = scmp.lt.s32.totalorder %s24, 1
      %s386 = scalar_select %p385, %s24, 1
      %p387 = scmp.lt.s32.totalorder %s25, 0
      %s388 = scalar_select %p387, %s25, 0
      %s389 = smul.addr %s388, 4
      %s390 = smul.addr %s386, 4
      %s391 = sadd.s32 %s389, %s390
      %s392 = smul.addr %s391, 8
      %s393 = scalar_lea.vmem %s1, %s392
      %s394 = smul.u32 16, %s25
      %p395 = scmp.lt.s32.totalorder %s24, 1
      %s396 = scalar_select %p395, %s24, 1
      %p397 = scmp.lt.s32.totalorder %s394, 15
      %s398 = scalar_select %p397, %s394, 15
      %s399 = smul.addr %s398, 2
      %s400 = smul.addr %s396, 32
      %s401 = sadd.s32 %s399, %s400
      %s402 = smul.addr %s401, 4
      %s403 = scalar_lea.vmem %s6, %s402
      %s404 = smul.u32 16, %s25
      %p405 = scmp.lt.s32.totalorder %s24, 1
      %s406 = scalar_select %p405, %s24, 1
      %p407 = scmp.lt.s32.totalorder %s25, 0
      %s408 = scalar_select %p407, %s25, 0
      %s409 = sadd.s32 %s408, %s406
      %s410 = scalar_lea.vmem %s7, %s409
      %p411 = scmp.lt.s32.totalorder %s24, 1
      %s412 = scalar_select %p411, %s24, 1
      %p413 = scmp.lt.s32.totalorder %s25, 0
      %s414 = scalar_select %p413, %s25, 0
      %s415 = sadd.s32 %s414, %s412
      %s416 = scalar_lea.vmem %s8, %s415
      %vm418 = vcmask 24576
      %419 = vst.msk [vmem:[#allocation2] sm:$0x1] %vm418, 0.0
      %420 = vst.msk [vmem:[#allocation2 + $0x18] sm:$0x1] %vm418, 0.0
      %421 = vst.msk [vmem:[#allocation2 + $0x30] sm:$0x1] %vm418, 0.0
      %422 = vst.msk [vmem:[#allocation2 + $0x48] sm:$0x1] %vm418, 0.0
      %423 = vst.msk [vmem:[#allocation2 + $0x60] sm:$0x1] %vm418, 0.0
      %424 = vst.msk [vmem:[#allocation2 + $0x78] sm:$0x1] %vm418, 0.0
      %425 = vst.msk [vmem:[#allocation2 + $0x90] sm:$0x1] %vm418, 0.0
      %426 = vst.msk [vmem:[#allocation2 + $0xa8] sm:$0x1] %vm418, 0.0
      %427 = vst.msk [vmem:[#allocation2 + $0xc0] sm:$0x1] %vm418, 0.0
      %428 = vst.msk [vmem:[#allocation2 + $0xd8] sm:$0x1] %vm418, 0.0
      %429 = vst.msk [vmem:[#allocation2 + $0xf0] sm:$0x1] %vm418, 0.0
      %430 = vst.msk [vmem:[#allocation2 + $0x108] sm:$0x1] %vm418, 0.0
      %431 = vst.msk [vmem:[#allocation2 + $0x120] sm:$0x1] %vm418, 0.0
      %432 = vst.msk [vmem:[#allocation2 + $0x138] sm:$0x1] %vm418, 0.0
      %433 = vst.msk [vmem:[#allocation2 + $0x150] sm:$0x1] %vm418, 0.0
      %434 = vst.msk [vmem:[#allocation2 + $0x168] sm:$0x1] %vm418, 0.0
      %435 = vst.msk [vmem:[#allocation2 + $0x180] sm:$0x1] %vm418, 0.0
      %436 = vst.msk [vmem:[#allocation2 + $0x198] sm:$0x1] %vm418, 0.0
      %437 = vst.msk [vmem:[#allocation2 + $0x11] sm:$0x1] %vm418, 0.0
      %438 = vst.msk [vmem:[#allocation2 + $0x29] sm:$0x1] %vm418, 0.0
      %439 = vst.msk [vmem:[#allocation2 + $0x41] sm:$0x1] %vm418, 0.0
      %440 = vst.msk [vmem:[#allocation2 + $0x59] sm:$0x1] %vm418, 0.0
      %441 = vst.msk [vmem:[#allocation2 + $0x71] sm:$0x1] %vm418, 0.0
      %442 = vst.msk [vmem:[#allocation2 + $0x89] sm:$0x1] %vm418, 0.0
      %443 = vst.msk [vmem:[#allocation2 + $0xa1] sm:$0x1] %vm418, 0.0
      %444 = vst.msk [vmem:[#allocation2 + $0xb9] sm:$0x1] %vm418, 0.0
      %445 = vst.msk [vmem:[#allocation2 + $0xd1] sm:$0x1] %vm418, 0.0
      %446 = vst.msk [vmem:[#allocation2 + $0xe9] sm:$0x1] %vm418, 0.0
      %447 = vst.msk [vmem:[#allocation2 + $0x101] sm:$0x1] %vm418, 0.0
      %448 = vst.msk [vmem:[#allocation2 + $0x119] sm:$0x1] %vm418, 0.0
      %449 = vst.msk [vmem:[#allocation2 + $0x131] sm:$0x1] %vm418, 0.0
      %450 = vst.msk [vmem:[#allocation2 + $0x149] sm:$0x1] %vm418, 0.0
      %451 = vst.msk [vmem:[#allocation2 + $0x161] sm:$0x1] %vm418, 0.0
      %452 = vst.msk [vmem:[#allocation2 + $0x179] sm:$0x1] %vm418, 0.0
      %453 = vst.msk [vmem:[#allocation2 + $0x191] sm:$0x1] %vm418, 0.0
      %454 = vst.msk [vmem:[#allocation2 + $0x1a9] sm:$0x1] %vm418, 0.0
      %v455 = vld [vmem:[%s393] sm:$0xff]
      %v456 = vld [vmem:[%s393 + $0x8] sm:$0xff]
      %s457 = scalar_lea.vmem %s393, 16
      %v458 = vld [vmem:[%s457] sm:$0xff]
      %v459 = vld [vmem:[%s457 + $0x8] sm:$0xff]
      %p460 = scmp.gt.s32.totalorder %s25, 0
      %s461 = scalar_select %p460, 1, 0
      %v462 = vstv %s461
      %vm463 = vcmp.eq.s32.totalorder %v462, 1
      %v464 = vsel %vm463, %v455, 0.0
      %v465 = vsel %vm463, %v456, 0.0
      %p466 = scmp.lt.s32.totalorder %s25, 0
      %s467 = scalar_select %p466, 1, 0
      %v468 = vstv %s467
      %vm469 = vcmp.eq.s32.totalorder %v468, 1
      %v470 = vsel %vm469, %v458, 0.0
      %v471 = vsel %vm469, %v459, 0.0
      %vm472 = vcmask 31744
      %473 = vst.msk [vmem:[#allocation2 + $0x1] sm:$0xff] %vm472, %v464
      %474 = vst.msk [vmem:[#allocation2 + $0x9] sm:$0xff] %vm472, %v465
      %s475 = scalar_lea.vmem [#allocation2], 408
      %476 = vst.msk [vmem:[%s475 + $0x1] sm:$0xff] %vm472, %v470
      %477 = vst.msk [vmem:[%s475 + $0x9] sm:$0xff] %vm472, %v471
      %v478 = vld [vmem:[%s383] sm:$0xff]
      %v479 = vld [vmem:[%s383 + $0x8] sm:$0xff]
      %v480 = vld [vmem:[%s383 + $0x10] sm:$0xff]
      %v481 = vld [vmem:[%s383 + $0x18] sm:$0xff]
      %v482 = vld [vmem:[%s383 + $0x20] sm:$0xff]
      %v483 = vld [vmem:[%s383 + $0x28] sm:$0xff]
      %v484 = vld [vmem:[%s383 + $0x30] sm:$0xff]
      %v485 = vld [vmem:[%s383 + $0x38] sm:$0xff]
      %v486 = vld [vmem:[%s383 + $0x40] sm:$0xff]
      %v487 = vld [vmem:[%s383 + $0x48] sm:$0xff]
      %v488 = vld [vmem:[%s383 + $0x50] sm:$0xff]
      %v489 = vld [vmem:[%s383 + $0x58] sm:$0xff]
      %v490 = vld [vmem:[%s383 + $0x60] sm:$0xff]
      %v491 = vld [vmem:[%s383 + $0x68] sm:$0xff]
      %v492 = vld [vmem:[%s383 + $0x70] sm:$0xff]
      %v493 = vld [vmem:[%s383 + $0x78] sm:$0xff]
      %v494 = vld [vmem:[%s383 + $0x80] sm:$0xff]
      %v495 = vld [vmem:[%s383 + $0x88] sm:$0xff]
      %v496 = vld [vmem:[%s383 + $0x90] sm:$0xff]
      %v497 = vld [vmem:[%s383 + $0x98] sm:$0xff]
      %v498 = vld [vmem:[%s383 + $0xa0] sm:$0xff]
      %v499 = vld [vmem:[%s383 + $0xa8] sm:$0xff]
      %v500 = vld [vmem:[%s383 + $0xb0] sm:$0xff]
      %v501 = vld [vmem:[%s383 + $0xb8] sm:$0xff]
      %v502 = vld [vmem:[%s383 + $0xc0] sm:$0xff]
      %v503 = vld [vmem:[%s383 + $0xc8] sm:$0xff]
      %v504 = vld [vmem:[%s383 + $0xd0] sm:$0xff]
      %v505 = vld [vmem:[%s383 + $0xd8] sm:$0xff]
      %v506 = vld [vmem:[%s383 + $0xe0] sm:$0xff]
      %v507 = vld [vmem:[%s383 + $0xe8] sm:$0xff]
      %v508 = vld [vmem:[%s383 + $0xf0] sm:$0xff]
      %v509 = vld [vmem:[%s383 + $0xf8] sm:$0xff]
      %s510 = scalar_lea.vmem [#allocation2], 24
      %511 = vst.msk [vmem:[%s510 + $0x1] sm:$0xff] %vm472, %v478
      %512 = vst.msk [vmem:[%s510 + $0x9] sm:$0xff] %vm472, %v479
      %513 = vst.msk [vmem:[%s510 + $0x19] sm:$0xff] %vm472, %v480
      %514 = vst.msk [vmem:[%s510 + $0x21] sm:$0xff] %vm472, %v481
      %515 = vst.msk [vmem:[%s510 + $0x31] sm:$0xff] %vm472, %v482
      %516 = vst.msk [vmem:[%s510 + $0x39] sm:$0xff] %vm472, %v483
      %517 = vst.msk [vmem:[%s510 + $0x49] sm:$0xff] %vm472, %v484
      %518 = vst.msk [vmem:[%s510 + $0x51] sm:$0xff] %vm472, %v485
      %519 = vst.msk [vmem:[%s510 + $0x61] sm:$0xff] %vm472, %v486
      %520 = vst.msk [vmem:[%s510 + $0x69] sm:$0xff] %vm472, %v487
      %521 = vst.msk [vmem:[%s510 + $0x79] sm:$0xff] %vm472, %v488
      %522 = vst.msk [vmem:[%s510 + $0x81] sm:$0xff] %vm472, %v489
      %523 = vst.msk [vmem:[%s510 + $0x91] sm:$0xff] %vm472, %v490
      %524 = vst.msk [vmem:[%s510 + $0x99] sm:$0xff] %vm472, %v491
      %525 = vst.msk [vmem:[%s510 + $0xa9] sm:$0xff] %vm472, %v492
      %526 = vst.msk [vmem:[%s510 + $0xb1] sm:$0xff] %vm472, %v493
      %527 = vst.msk [vmem:[%s510 + $0xc1] sm:$0xff] %vm472, %v494
      %528 = vst.msk [vmem:[%s510 + $0xc9] sm:$0xff] %vm472, %v495
      %529 = vst.msk [vmem:[%s510 + $0xd9] sm:$0xff] %vm472, %v496
      %530 = vst.msk [vmem:[%s510 + $0xe1] sm:$0xff] %vm472, %v497
      %531 = vst.msk [vmem:[%s510 + $0xf1] sm:$0xff] %vm472, %v498
      %532 = vst.msk [vmem:[%s510 + $0xf9] sm:$0xff] %vm472, %v499
      %533 = vst.msk [vmem:[%s510 + $0x109] sm:$0xff] %vm472, %v500
      %534 = vst.msk [vmem:[%s510 + $0x111] sm:$0xff] %vm472, %v501
      %535 = vst.msk [vmem:[%s510 + $0x121] sm:$0xff] %vm472, %v502
      %536 = vst.msk [vmem:[%s510 + $0x129] sm:$0xff] %vm472, %v503
      %537 = vst.msk [vmem:[%s510 + $0x139] sm:$0xff] %vm472, %v504
      %538 = vst.msk [vmem:[%s510 + $0x141] sm:$0xff] %vm472, %v505
      %539 = vst.msk [vmem:[%s510 + $0x151] sm:$0xff] %vm472, %v506
      %540 = vst.msk [vmem:[%s510 + $0x159] sm:$0xff] %vm472, %v507
      %541 = vst.msk [vmem:[%s510 + $0x169] sm:$0xff] %vm472, %v508
      %542 = vst.msk [vmem:[%s510 + $0x171] sm:$0xff] %vm472, %v509
      %v543 = vld [vmem:[#allocation2] sm:$0xff]
      %v544 = vld [vmem:[#allocation2 + $0x8] sm:$0xff]
      %v545 = vld [vmem:[#allocation2 + $0x18] sm:$0xff]
      %v546 = vld [vmem:[#allocation2 + $0x20] sm:$0xff]
      %v547 = vld [vmem:[#allocation2 + $0x30] sm:$0xff]
      %v548 = vld [vmem:[#allocation2 + $0x38] sm:$0xff]
      %v549 = vld [vmem:[#allocation2 + $0x48] sm:$0xff]
      %v550 = vld [vmem:[#allocation2 + $0x50] sm:$0xff]
      %v551 = vld [vmem:[#allocation2 + $0x60] sm:$0xff]
      %v552 = vld [vmem:[#allocation2 + $0x68] sm:$0xff]
      %v553 = vld [vmem:[#allocation2 + $0x78] sm:$0xff]
      %v554 = vld [vmem:[#allocation2 + $0x80] sm:$0xff]
      %v555 = vld [vmem:[#allocation2 + $0x90] sm:$0xff]
      %v556 = vld [vmem:[#allocation2 + $0x98] sm:$0xff]
      %v557 = vld [vmem:[#allocation2 + $0xa8] sm:$0xff]
      %v558 = vld [vmem:[#allocation2 + $0xb0] sm:$0xff]
      %v559 = vld [vmem:[#allocation2 + $0xc0] sm:$0xff]
      %v560 = vld [vmem:[#allocation2 + $0xc8] sm:$0xff]
      %v561 = vld [vmem:[#allocation2 + $0xd8] sm:$0xff]
      %v562 = vld [vmem:[#allocation2 + $0xe0] sm:$0xff]
      %v563 = vld [vmem:[#allocation2 + $0xf0] sm:$0xff]
      %v564 = vld [vmem:[#allocation2 + $0xf8] sm:$0xff]
      %v565 = vld [vmem:[#allocation2 + $0x108] sm:$0xff]
      %v566 = vld [vmem:[#allocation2 + $0x110] sm:$0xff]
      %v567 = vld [vmem:[#allocation2 + $0x120] sm:$0xff]
      %v568 = vld [vmem:[#allocation2 + $0x128] sm:$0xff]
      %v569 = vld [vmem:[#allocation2 + $0x138] sm:$0xff]
      %v570 = vld [vmem:[#allocation2 + $0x140] sm:$0xff]
      %v571 = vld [vmem:[#allocation2 + $0x150] sm:$0xff]
      %v572 = vld [vmem:[#allocation2 + $0x158] sm:$0xff]
      %v573 = vld [vmem:[#allocation2 + $0x168] sm:$0xff]
      %v574 = vld [vmem:[#allocation2 + $0x170] sm:$0xff]
      %v575 = vpack.c.bf16 %v544, %v543
      %v576 = vpack.c.bf16 %v546, %v545
      %v577 = vpack.c.bf16 %v548, %v547
      %v578 = vpack.c.bf16 %v550, %v549
      %v579 = vpack.c.bf16 %v552, %v551
      %v580 = vpack.c.bf16 %v554, %v553
      %v581 = vpack.c.bf16 %v556, %v555
      %v582 = vpack.c.bf16 %v558, %v557
      %v583 = vpack.c.bf16 %v560, %v559
      %v584 = vpack.c.bf16 %v562, %v561
      %v585 = vpack.c.bf16 %v564, %v563
      %v586 = vpack.c.bf16 %v566, %v565
      %v587 = vpack.c.bf16 %v568, %v567
      %v588 = vpack.c.bf16 %v570, %v569
      %v589 = vpack.c.bf16 %v572, %v571
      %v590 = vpack.c.bf16 %v574, %v573
      %591 = vst.msk [vmem:[#allocation3] sm:$0xff] %vm472, %v575
      %592 = vst.msk [vmem:[#allocation3 + $0x8] sm:$0xff] %vm472, %v576
      %593 = vst.msk [vmem:[#allocation3 + $0x10] sm:$0xff] %vm472, %v577
      %594 = vst.msk [vmem:[#allocation3 + $0x18] sm:$0xff] %vm472, %v578
      %595 = vst.msk [vmem:[#allocation3 + $0x20] sm:$0xff] %vm472, %v579
      %596 = vst.msk [vmem:[#allocation3 + $0x28] sm:$0xff] %vm472, %v580
      %597 = vst.msk [vmem:[#allocation3 + $0x30] sm:$0xff] %vm472, %v581
      %598 = vst.msk [vmem:[#allocation3 + $0x38] sm:$0xff] %vm472, %v582
      %599 = vst.msk [vmem:[#allocation3 + $0x40] sm:$0xff] %vm472, %v583
      %600 = vst.msk [vmem:[#allocation3 + $0x48] sm:$0xff] %vm472, %v584
      %601 = vst.msk [vmem:[#allocation3 + $0x50] sm:$0xff] %vm472, %v585
      %602 = vst.msk [vmem:[#allocation3 + $0x58] sm:$0xff] %vm472, %v586
      %603 = vst.msk [vmem:[#allocation3 + $0x60] sm:$0xff] %vm472, %v587
      %604 = vst.msk [vmem:[#allocation3 + $0x68] sm:$0xff] %vm472, %v588
      %605 = vst.msk [vmem:[#allocation3 + $0x70] sm:$0xff] %vm472, %v589
      %606 = vst.msk [vmem:[#allocation3 + $0x78] sm:$0xff] %vm472, %v590
      %v607 = vld [vmem:[#allocation2 + $0x1] sm:$0xff]
      %v608 = vld [vmem:[#allocation2 + $0x9] sm:$0xff]
      %v609 = vld [vmem:[#allocation2 + $0x19] sm:$0xff]
      %v610 = vld [vmem:[#allocation2 + $0x21] sm:$0xff]
      %v611 = vld [vmem:[#allocation2 + $0x31] sm:$0xff]
      %v612 = vld [vmem:[#allocation2 + $0x39] sm:$0xff]
      %v613 = vld [vmem:[#allocation2 + $0x49] sm:$0xff]
      %v614 = vld [vmem:[#allocation2 + $0x51] sm:$0xff]
      %v615 = vld [vmem:[#allocation2 + $0x61] sm:$0xff]
      %v616 = vld [vmem:[#allocation2 + $0x69] sm:$0xff]
      %v617 = vld [vmem:[#allocation2 + $0x79] sm:$0xff]
      %v618 = vld [vmem:[#allocation2 + $0x81] sm:$0xff]
      %v619 = vld [vmem:[#allocation2 + $0x91] sm:$0xff]
      %v620 = vld [vmem:[#allocation2 + $0x99] sm:$0xff]
      %v621 = vld [vmem:[#allocation2 + $0xa9] sm:$0xff]
      %v622 = vld [vmem:[#allocation2 + $0xb1] sm:$0xff]
      %v623 = vld [vmem:[#allocation2 + $0xc1] sm:$0xff]
      %v624 = vld [vmem:[#allocation2 + $0xc9] sm:$0xff]
      %v625 = vld [vmem:[#allocation2 + $0xd9] sm:$0xff]
      %v626 = vld [vmem:[#allocation2 + $0xe1] sm:$0xff]
      %v627 = vld [vmem:[#allocation2 + $0xf1] sm:$0xff]
      %v628 = vld [vmem:[#allocation2 + $0xf9] sm:$0xff]
      %v629 = vld [vmem:[#allocation2 + $0x109] sm:$0xff]
      %v630 = vld [vmem:[#allocation2 + $0x111] sm:$0xff]
      %v631 = vld [vmem:[#allocation2 + $0x121] sm:$0xff]
      %v632 = vld [vmem:[#allocation2 + $0x129] sm:$0xff]
      %v633 = vld [vmem:[#allocation2 + $0x139] sm:$0xff]
      %v634 = vld [vmem:[#allocation2 + $0x141] sm:$0xff]
      %v635 = vld [vmem:[#allocation2 + $0x151] sm:$0xff]
      %v636 = vld [vmem:[#allocation2 + $0x159] sm:$0xff]
      %v637 = vld [vmem:[#allocation2 + $0x169] sm:$0xff]
      %v638 = vld [vmem:[#allocation2 + $0x171] sm:$0xff]
      %v639 = vpack.c.bf16 %v608, %v607
      %v640 = vpack.c.bf16 %v610, %v609
      %v641 = vpack.c.bf16 %v612, %v611
      %v642 = vpack.c.bf16 %v614, %v613
      %v643 = vpack.c.bf16 %v616, %v615
      %v644 = vpack.c.bf16 %v618, %v617
      %v645 = vpack.c.bf16 %v620, %v619
      %v646 = vpack.c.bf16 %v622, %v621
      %v647 = vpack.c.bf16 %v624, %v623
      %v648 = vpack.c.bf16 %v626, %v625
      %v649 = vpack.c.bf16 %v628, %v627
      %v650 = vpack.c.bf16 %v630, %v629
      %v651 = vpack.c.bf16 %v632, %v631
      %v652 = vpack.c.bf16 %v634, %v633
      %v653 = vpack.c.bf16 %v636, %v635
      %v654 = vpack.c.bf16 %v638, %v637
      %671 = vrot.lane.b32.xlu0 %v639, 4
      %v672 = vpop.permute.xlu0 %671
      %673 = vrot.lane.b32.xlu0 %v640, 4
      %v674 = vpop.permute.xlu0 %673
      %675 = vrot.lane.b32.xlu0 %v641, 4
      %v676 = vpop.permute.xlu0 %675
      %677 = vrot.lane.b32.xlu0 %v642, 4
      %v678 = vpop.permute.xlu0 %677
      %679 = vrot.lane.b32.xlu0 %v643, 4
      %v680 = vpop.permute.xlu0 %679
      %681 = vrot.lane.b32.xlu0 %v644, 4
      %v682 = vpop.permute.xlu0 %681
      %683 = vrot.lane.b32.xlu0 %v645, 4
      %v684 = vpop.permute.xlu0 %683
      %685 = vrot.lane.b32.xlu0 %v646, 4
      %v686 = vpop.permute.xlu0 %685
      %687 = vrot.lane.b32.xlu0 %v647, 4
      %v688 = vpop.permute.xlu0 %687
      %689 = vrot.lane.b32.xlu0 %v648, 4
      %v690 = vpop.permute.xlu0 %689
      %691 = vrot.lane.b32.xlu0 %v649, 4
      %v692 = vpop.permute.xlu0 %691
      %693 = vrot.lane.b32.xlu0 %v650, 4
      %v694 = vpop.permute.xlu0 %693
      %695 = vrot.lane.b32.xlu0 %v651, 4
      %v696 = vpop.permute.xlu0 %695
      %697 = vrot.lane.b32.xlu0 %v652, 4
      %v698 = vpop.permute.xlu0 %697
      %699 = vrot.lane.b32.xlu0 %v653, 4
      %v700 = vpop.permute.xlu0 %699
      %701 = vrot.lane.b32.xlu0 %v654, 4
      %v702 = vpop.permute.xlu0 %701
      %vm719 = vcmask 64544
      %720 = vst.msk [vmem:[#allocation3] sm:$0xff] %vm719, %v672
      %721 = vst.msk [vmem:[#allocation3 + $0x8] sm:$0xff] %vm719, %v674
      %722 = vst.msk [vmem:[#allocation3 + $0x10] sm:$0xff] %vm719, %v676
      %723 = vst.msk [vmem:[#allocation3 + $0x18] sm:$0xff] %vm719, %v678
      %724 = vst.msk [vmem:[#allocation3 + $0x20] sm:$0xff] %vm719, %v680
      %725 = vst.msk [vmem:[#allocation3 + $0x28] sm:$0xff] %vm719, %v682
      %726 = vst.msk [vmem:[#allocation3 + $0x30] sm:$0xff] %vm719, %v684
      %727 = vst.msk [vmem:[#allocation3 + $0x38] sm:$0xff] %vm719, %v686
      %728 = vst.msk [vmem:[#allocation3 + $0x40] sm:$0xff] %vm719, %v688
      %729 = vst.msk [vmem:[#allocation3 + $0x48] sm:$0xff] %vm719, %v690
      %730 = vst.msk [vmem:[#allocation3 + $0x50] sm:$0xff] %vm719, %v692
      %731 = vst.msk [vmem:[#allocation3 + $0x58] sm:$0xff] %vm719, %v694
      %732 = vst.msk [vmem:[#allocation3 + $0x60] sm:$0xff] %vm719, %v696
      %733 = vst.msk [vmem:[#allocation3 + $0x68] sm:$0xff] %vm719, %v698
      %734 = vst.msk [vmem:[#allocation3 + $0x70] sm:$0xff] %vm719, %v700
      %735 = vst.msk [vmem:[#allocation3 + $0x78] sm:$0xff] %vm719, %v702
      %v736 = vld [vmem:[#allocation2 + $0x2] sm:$0xff]
      %v737 = vld [vmem:[#allocation2 + $0xa] sm:$0xff]
      %v738 = vld [vmem:[#allocation2 + $0x1a] sm:$0xff]
      %v739 = vld [vmem:[#allocation2 + $0x22] sm:$0xff]
      %v740 = vld [vmem:[#allocation2 + $0x32] sm:$0xff]
      %v741 = vld [vmem:[#allocation2 + $0x3a] sm:$0xff]
      %v742 = vld [vmem:[#allocation2 + $0x4a] sm:$0xff]
      %v743 = vld [vmem:[#allocation2 + $0x52] sm:$0xff]
      %v744 = vld [vmem:[#allocation2 + $0x62] sm:$0xff]
      %v745 = vld [vmem:[#allocation2 + $0x6a] sm:$0xff]
      %v746 = vld [vmem:[#allocation2 + $0x7a] sm:$0xff]
      %v747 = vld [vmem:[#allocation2 + $0x82] sm:$0xff]
      %v748 = vld [vmem:[#allocation2 + $0x92] sm:$0xff]
      %v749 = vld [vmem:[#allocation2 + $0x9a] sm:$0xff]
      %v750 = vld [vmem:[#allocation2 + $0xaa] sm:$0xff]
      %v751 = vld [vmem:[#allocation2 + $0xb2] sm:$0xff]
      %v752 = vld [vmem:[#allocation2 + $0xc2] sm:$0xff]
      %v753 = vld [vmem:[#allocation2 + $0xca] sm:$0xff]
      %v754 = vld [vmem:[#allocation2 + $0xda] sm:$0xff]
      %v755 = vld [vmem:[#allocation2 + $0xe2] sm:$0xff]
      %v756 = vld [vmem:[#allocation2 + $0xf2] sm:$0xff]
      %v757 = vld [vmem:[#allocation2 + $0xfa] sm:$0xff]
      %v758 = vld [vmem:[#allocation2 + $0x10a] sm:$0xff]
      %v759 = vld [vmem:[#allocation2 + $0x112] sm:$0xff]
      %v760 = vld [vmem:[#allocation2 + $0x122] sm:$0xff]
      %v761 = vld [vmem:[#allocation2 + $0x12a] sm:$0xff]
      %v762 = vld [vmem:[#allocation2 + $0x13a] sm:$0xff]
      %v763 = vld [vmem:[#allocation2 + $0x142] sm:$0xff]
      %v764 = vld [vmem:[#allocation2 + $0x152] sm:$0xff]
      %v765 = vld [vmem:[#allocation2 + $0x15a] sm:$0xff]
      %v766 = vld [vmem:[#allocation2 + $0x16a] sm:$0xff]
      %v767 = vld [vmem:[#allocation2 + $0x172] sm:$0xff]
      %v768 = vpack.c.bf16 %v737, %v736
      %v769 = vpack.c.bf16 %v739, %v738
      %v770 = vpack.c.bf16 %v741, %v740
      %v771 = vpack.c.bf16 %v743, %v742
      %v772 = vpack.c.bf16 %v745, %v744
      %v773 = vpack.c.bf16 %v747, %v746
      %v774 = vpack.c.bf16 %v749, %v748
      %v775 = vpack.c.bf16 %v751, %v750
      %v776 = vpack.c.bf16 %v753, %v752
      %v777 = vpack.c.bf16 %v755, %v754
      %v778 = vpack.c.bf16 %v757, %v756
      %v779 = vpack.c.bf16 %v759, %v758
      %v780 = vpack.c.bf16 %v761, %v760
      %v781 = vpack.c.bf16 %v763, %v762
      %v782 = vpack.c.bf16 %v765, %v764
      %v783 = vpack.c.bf16 %v767, %v766
      %800 = vrot.lane.b32.xlu0 %v768, 8
      %v801 = vpop.permute.xlu0 %800
      %802 = vrot.lane.b32.xlu0 %v769, 8
      %v803 = vpop.permute.xlu0 %802
      %804 = vrot.lane.b32.xlu0 %v770, 8
      %v805 = vpop.permute.xlu0 %804
      %806 = vrot.lane.b32.xlu0 %v771, 8
      %v807 = vpop.permute.xlu0 %806
      %808 = vrot.lane.b32.xlu0 %v772, 8
      %v809 = vpop.permute.xlu0 %808
      %810 = vrot.lane.b32.xlu0 %v773, 8
      %v811 = vpop.permute.xlu0 %810
      %812 = vrot.lane.b32.xlu0 %v774, 8
      %v813 = vpop.permute.xlu0 %812
      %814 = vrot.lane.b32.xlu0 %v775, 8
      %v815 = vpop.permute.xlu0 %814
      %816 = vrot.lane.b32.xlu0 %v776, 8
      %v817 = vpop.permute.xlu0 %816
      %818 = vrot.lane.b32.xlu0 %v777, 8
      %v819 = vpop.permute.xlu0 %818
      %820 = vrot.lane.b32.xlu0 %v778, 8
      %v821 = vpop.permute.xlu0 %820
      %822 = vrot.lane.b32.xlu0 %v779, 8
      %v823 = vpop.permute.xlu0 %822
      %824 = vrot.lane.b32.xlu0 %v780, 8
      %v825 = vpop.permute.xlu0 %824
      %826 = vrot.lane.b32.xlu0 %v781, 8
      %v827 = vpop.permute.xlu0 %826
      %828 = vrot.lane.b32.xlu0 %v782, 8
      %v829 = vpop.permute.xlu0 %828
      %830 = vrot.lane.b32.xlu0 %v783, 8
      %v831 = vpop.permute.xlu0 %830
      %vm848 = vcmask 97344
      %849 = vst.msk [vmem:[#allocation3] sm:$0xff] %vm848, %v801
      %850 = vst.msk [vmem:[#allocation3 + $0x8] sm:$0xff] %vm848, %v803
      %851 = vst.msk [vmem:[#allocation3 + $0x10] sm:$0xff] %vm848, %v805
      %852 = vst.msk [vmem:[#allocation3 + $0x18] sm:$0xff] %vm848, %v807
      %853 = vst.msk [vmem:[#allocation3 + $0x20] sm:$0xff] %vm848, %v809
      %854 = vst.msk [vmem:[#allocation3 + $0x28] sm:$0xff] %vm848, %v811
      %855 = vst.msk [vmem:[#allocation3 + $0x30] sm:$0xff] %vm848, %v813
      %856 = vst.msk [vmem:[#allocation3 + $0x38] sm:$0xff] %vm848, %v815
      %857 = vst.msk [vmem:[#allocation3 + $0x40] sm:$0xff] %vm848, %v817
      %858 = vst.msk [vmem:[#allocation3 + $0x48] sm:$0xff] %vm848, %v819
      %859 = vst.msk [vmem:[#allocation3 + $0x50] sm:$0xff] %vm848, %v821
      %860 = vst.msk [vmem:[#allocation3 + $0x58] sm:$0xff] %vm848, %v823
      %861 = vst.msk [vmem:[#allocation3 + $0x60] sm:$0xff] %vm848, %v825
      %862 = vst.msk [vmem:[#allocation3 + $0x68] sm:$0xff] %vm848, %v827
      %863 = vst.msk [vmem:[#allocation3 + $0x70] sm:$0xff] %vm848, %v829
      %864 = vst.msk [vmem:[#allocation3 + $0x78] sm:$0xff] %vm848, %v831
      %v865 = vld [vmem:[%s510] sm:$0xff]
      %v866 = vld [vmem:[%s510 + $0x8] sm:$0xff]
      %v867 = vld [vmem:[%s510 + $0x18] sm:$0xff]
      %v868 = vld [vmem:[%s510 + $0x20] sm:$0xff]
      %v869 = vld [vmem:[%s510 + $0x30] sm:$0xff]
      %v870 = vld [vmem:[%s510 + $0x38] sm:$0xff]
      %v871 = vld [vmem:[%s510 + $0x48] sm:$0xff]
      %v872 = vld [vmem:[%s510 + $0x50] sm:$0xff]
      %v873 = vld [vmem:[%s510 + $0x60] sm:$0xff]
      %v874 = vld [vmem:[%s510 + $0x68] sm:$0xff]
      %v875 = vld [vmem:[%s510 + $0x78] sm:$0xff]
      %v876 = vld [vmem:[%s510 + $0x80] sm:$0xff]
      %v877 = vld [vmem:[%s510 + $0x90] sm:$0xff]
      %v878 = vld [vmem:[%s510 + $0x98] sm:$0xff]
      %v879 = vld [vmem:[%s510 + $0xa8] sm:$0xff]
      %v880 = vld [vmem:[%s510 + $0xb0] sm:$0xff]
      %v881 = vld [vmem:[%s510 + $0xc0] sm:$0xff]
      %v882 = vld [vmem:[%s510 + $0xc8] sm:$0xff]
      %v883 = vld [vmem:[%s510 + $0xd8] sm:$0xff]
      %v884 = vld [vmem:[%s510 + $0xe0] sm:$0xff]
      %v885 = vld [vmem:[%s510 + $0xf0] sm:$0xff]
      %v886 = vld [vmem:[%s510 + $0xf8] sm:$0xff]
      %v887 = vld [vmem:[%s510 + $0x108] sm:$0xff]
      %v888 = vld [vmem:[%s510 + $0x110] sm:$0xff]
      %v889 = vld [vmem:[%s510 + $0x120] sm:$0xff]
      %v890 = vld [vmem:[%s510 + $0x128] sm:$0xff]
      %v891 = vld [vmem:[%s510 + $0x138] sm:$0xff]
      %v892 = vld [vmem:[%s510 + $0x140] sm:$0xff]
      %v893 = vld [vmem:[%s510 + $0x150] sm:$0xff]
      %v894 = vld [vmem:[%s510 + $0x158] sm:$0xff]
      %v895 = vld [vmem:[%s510 + $0x168] sm:$0xff]
      %v896 = vld [vmem:[%s510 + $0x170] sm:$0xff]
      %v897 = vpack.c.bf16 %v866, %v865
      %v898 = vpack.c.bf16 %v868, %v867
      %v899 = vpack.c.bf16 %v870, %v869
      %v900 = vpack.c.bf16 %v872, %v871
      %v901 = vpack.c.bf16 %v874, %v873
      %v902 = vpack.c.bf16 %v876, %v875
      %v903 = vpack.c.bf16 %v878, %v877
      %v904 = vpack.c.bf16 %v880, %v879
      %v905 = vpack.c.bf16 %v882, %v881
      %v906 = vpack.c.bf16 %v884, %v883
      %v907 = vpack.c.bf16 %v886, %v885
      %v908 = vpack.c.bf16 %v888, %v887
      %v909 = vpack.c.bf16 %v890, %v889
      %v910 = vpack.c.bf16 %v892, %v891
      %v911 = vpack.c.bf16 %v894, %v893
      %v912 = vpack.c.bf16 %v896, %v895
      %929 = vrot.lane.b32.xlu0 %v897, 12
      %v930 = vpop.permute.xlu0 %929
      %931 = vrot.lane.b32.xlu0 %v898, 12
      %v932 = vpop.permute.xlu0 %931
      %933 = vrot.lane.b32.xlu0 %v899, 12
      %v934 = vpop.permute.xlu0 %933
      %935 = vrot.lane.b32.xlu0 %v900, 12
      %v936 = vpop.permute.xlu0 %935
      %937 = vrot.lane.b32.xlu0 %v901, 12
      %v938 = vpop.permute.xlu0 %937
      %939 = vrot.lane.b32.xlu0 %v902, 12
      %v940 = vpop.permute.xlu0 %939
      %941 = vrot.lane.b32.xlu0 %v903, 12
      %v942 = vpop.permute.xlu0 %941
      %943 = vrot.lane.b32.xlu0 %v904, 12
      %v944 = vpop.permute.xlu0 %943
      %945 = vrot.lane.b32.xlu0 %v905, 12
      %v946 = vpop.permute.xlu0 %945
      %947 = vrot.lane.b32.xlu0 %v906, 12
      %v948 = vpop.permute.xlu0 %947
      %949 = vrot.lane.b32.xlu0 %v907, 12
      %v950 = vpop.permute.xlu0 %949
      %951 = vrot.lane.b32.xlu0 %v908, 12
      %v952 = vpop.permute.xlu0 %951
      %953 = vrot.lane.b32.xlu0 %v909, 12
      %v954 = vpop.permute.xlu0 %953
      %955 = vrot.lane.b32.xlu0 %v910, 12
      %v956 = vpop.permute.xlu0 %955
      %957 = vrot.lane.b32.xlu0 %v911, 12
      %v958 = vpop.permute.xlu0 %957
      %959 = vrot.lane.b32.xlu0 %v912, 12
      %v960 = vpop.permute.xlu0 %959
      %vm977 = vcmask 130144
      %978 = vst.msk [vmem:[#allocation3] sm:$0xff] %vm977, %v930
      %979 = vst.msk [vmem:[#allocation3 + $0x8] sm:$0xff] %vm977, %v932
      %980 = vst.msk [vmem:[#allocation3 + $0x10] sm:$0xff] %vm977, %v934
      %981 = vst.msk [vmem:[#allocation3 + $0x18] sm:$0xff] %vm977, %v936
      %982 = vst.msk [vmem:[#allocation3 + $0x20] sm:$0xff] %vm977, %v938
      %983 = vst.msk [vmem:[#allocation3 + $0x28] sm:$0xff] %vm977, %v940
      %984 = vst.msk [vmem:[#allocation3 + $0x30] sm:$0xff] %vm977, %v942
      %985 = vst.msk [vmem:[#allocation3 + $0x38] sm:$0xff] %vm977, %v944
      %986 = vst.msk [vmem:[#allocation3 + $0x40] sm:$0xff] %vm977, %v946
      %987 = vst.msk [vmem:[#allocation3 + $0x48] sm:$0xff] %vm977, %v948
      %988 = vst.msk [vmem:[#allocation3 + $0x50] sm:$0xff] %vm977, %v950
      %989 = vst.msk [vmem:[#allocation3 + $0x58] sm:$0xff] %vm977, %v952
      %990 = vst.msk [vmem:[#allocation3 + $0x60] sm:$0xff] %vm977, %v954
      %991 = vst.msk [vmem:[#allocation3 + $0x68] sm:$0xff] %vm977, %v956
      %992 = vst.msk [vmem:[#allocation3 + $0x70] sm:$0xff] %vm977, %v958
      %993 = vst.msk [vmem:[#allocation3 + $0x78] sm:$0xff] %vm977, %v960
      %v994 = vld [vmem:[%s510 + $0x1] sm:$0xff]
      %v995 = vld [vmem:[%s510 + $0x9] sm:$0xff]
      %v996 = vld [vmem:[%s510 + $0x19] sm:$0xff]
      %v997 = vld [vmem:[%s510 + $0x21] sm:$0xff]
      %v998 = vld [vmem:[%s510 + $0x31] sm:$0xff]
      %v999 = vld [vmem:[%s510 + $0x39] sm:$0xff]
      %v1000 = vld [vmem:[%s510 + $0x49] sm:$0xff]
      %v1001 = vld [vmem:[%s510 + $0x51] sm:$0xff]
      %v1002 = vld [vmem:[%s510 + $0x61] sm:$0xff]
      %v1003 = vld [vmem:[%s510 + $0x69] sm:$0xff]
      %v1004 = vld [vmem:[%s510 + $0x79] sm:$0xff]
      %v1005 = vld [vmem:[%s510 + $0x81] sm:$0xff]
      %v1006 = vld [vmem:[%s510 + $0x91] sm:$0xff]
      %v1007 = vld [vmem:[%s510 + $0x99] sm:$0xff]
      %v1008 = vld [vmem:[%s510 + $0xa9] sm:$0xff]
      %v1009 = vld [vmem:[%s510 + $0xb1] sm:$0xff]
      %v1010 = vld [vmem:[%s510 + $0xc1] sm:$0xff]
      %v1011 = vld [vmem:[%s510 + $0xc9] sm:$0xff]
      %v1012 = vld [vmem:[%s510 + $0xd9] sm:$0xff]
      %v1013 = vld [vmem:[%s510 + $0xe1] sm:$0xff]
      %v1014 = vld [vmem:[%s510 + $0xf1] sm:$0xff]
      %v1015 = vld [vmem:[%s510 + $0xf9] sm:$0xff]
      %v1016 = vld [vmem:[%s510 + $0x109] sm:$0xff]
      %v1017 = vld [vmem:[%s510 + $0x111] sm:$0xff]
      %v1018 = vld [vmem:[%s510 + $0x121] sm:$0xff]
      %v1019 = vld [vmem:[%s510 + $0x129] sm:$0xff]
      %v1020 = vld [vmem:[%s510 + $0x139] sm:$0xff]
      %v1021 = vld [vmem:[%s510 + $0x141] sm:$0xff]
      %v1022 = vld [vmem:[%s510 + $0x151] sm:$0xff]
      %v1023 = vld [vmem:[%s510 + $0x159] sm:$0xff]
      %v1024 = vld [vmem:[%s510 + $0x169] sm:$0xff]
      %v1025 = vld [vmem:[%s510 + $0x171] sm:$0xff]
      %v1026 = vpack.c.bf16 %v995, %v994
      %v1027 = vpack.c.bf16 %v997, %v996
      %v1028 = vpack.c.bf16 %v999, %v998
      %v1029 = vpack.c.bf16 %v1001, %v1000
      %v1030 = vpack.c.bf16 %v1003, %v1002
      %v1031 = vpack.c.bf16 %v1005, %v1004
      %v1032 = vpack.c.bf16 %v1007, %v1006
      %v1033 = vpack.c.bf16 %v1009, %v1008
      %v1034 = vpack.c.bf16 %v1011, %v1010
      %v1035 = vpack.c.bf16 %v1013, %v1012
      %v1036 = vpack.c.bf16 %v1015, %v1014
      %v1037 = vpack.c.bf16 %v1017, %v1016
      %v1038 = vpack.c.bf16 %v1019, %v1018
      %v1039 = vpack.c.bf16 %v1021, %v1020
      %v1040 = vpack.c.bf16 %v1023, %v1022
      %v1041 = vpack.c.bf16 %v1025, %v1024
      %1058 = vrot.lane.b32.xlu0 %v1026, 16
      %v1059 = vpop.permute.xlu0 %1058
      %1060 = vrot.lane.b32.xlu0 %v1027, 16
      %v1061 = vpop.permute.xlu0 %1060
      %1062 = vrot.lane.b32.xlu0 %v1028, 16
      %v1063 = vpop.permute.xlu0 %1062
      %1064 = vrot.lane.b32.xlu0 %v1029, 16
      %v1065 = vpop.permute.xlu0 %1064
      %1066 = vrot.lane.b32.xlu0 %v1030, 16
      %v1067 = vpop.permute.xlu0 %1066
      %1068 = vrot.lane.b32.xlu0 %v1031, 16
      %v1069 = vpop.permute.xlu0 %1068
      %1070 = vrot.lane.b32.xlu0 %v1032, 16
      %v1071 = vpop.permute.xlu0 %1070
      %1072 = vrot.lane.b32.xlu0 %v1033, 16
      %v1073 = vpop.permute.xlu0 %1072
      %1074 = vrot.lane.b32.xlu0 %v1034, 16
      %v1075 = vpop.permute.xlu0 %1074
      %1076 = vrot.lane.b32.xlu0 %v1035, 16
      %v1077 = vpop.permute.xlu0 %1076
      %1078 = vrot.lane.b32.xlu0 %v1036, 16
      %v1079 = vpop.permute.xlu0 %1078
      %1080 = vrot.lane.b32.xlu0 %v1037, 16
      %v1081 = vpop.permute.xlu0 %1080
      %1082 = vrot.lane.b32.xlu0 %v1038, 16
      %v1083 = vpop.permute.xlu0 %1082
      %1084 = vrot.lane.b32.xlu0 %v1039, 16
      %v1085 = vpop.permute.xlu0 %1084
      %1086 = vrot.lane.b32.xlu0 %v1040, 16
      %v1087 = vpop.permute.xlu0 %1086
      %1088 = vrot.lane.b32.xlu0 %v1041, 16
      %v1089 = vpop.permute.xlu0 %1088
      %vm1106 = vcmask 162944
      %1107 = vst.msk [vmem:[#allocation3] sm:$0xff] %vm1106, %v1059
      %1108 = vst.msk [vmem:[#allocation3 + $0x8] sm:$0xff] %vm1106, %v1061
      %1109 = vst.msk [vmem:[#allocation3 + $0x10] sm:$0xff] %vm1106, %v1063
      %1110 = vst.msk [vmem:[#allocation3 + $0x18] sm:$0xff] %vm1106, %v1065
      %1111 = vst.msk [vmem:[#allocation3 + $0x20] sm:$0xff] %vm1106, %v1067
      %1112 = vst.msk [vmem:[#allocation3 + $0x28] sm:$0xff] %vm1106, %v1069
      %1113 = vst.msk [vmem:[#allocation3 + $0x30] sm:$0xff] %vm1106, %v1071
      %1114 = vst.msk [vmem:[#allocation3 + $0x38] sm:$0xff] %vm1106, %v1073
      %1115 = vst.msk [vmem:[#allocation3 + $0x40] sm:$0xff] %vm1106, %v1075
      %1116 = vst.msk [vmem:[#allocation3 + $0x48] sm:$0xff] %vm1106, %v1077
      %1117 = vst.msk [vmem:[#allocation3 + $0x50] sm:$0xff] %vm1106, %v1079
      %1118 = vst.msk [vmem:[#allocation3 + $0x58] sm:$0xff] %vm1106, %v1081
      %1119 = vst.msk [vmem:[#allocation3 + $0x60] sm:$0xff] %vm1106, %v1083
      %1120 = vst.msk [vmem:[#allocation3 + $0x68] sm:$0xff] %vm1106, %v1085
      %1121 = vst.msk [vmem:[#allocation3 + $0x70] sm:$0xff] %vm1106, %v1087
      %1122 = vst.msk [vmem:[#allocation3 + $0x78] sm:$0xff] %vm1106, %v1089
      %v1123 = vld [vmem:[%s510 + $0x2] sm:$0xff]
      %v1124 = vld [vmem:[%s510 + $0xa] sm:$0xff]
      %v1125 = vld [vmem:[%s510 + $0x1a] sm:$0xff]
      %v1126 = vld [vmem:[%s510 + $0x22] sm:$0xff]
      %v1127 = vld [vmem:[%s510 + $0x32] sm:$0xff]
      %v1128 = vld [vmem:[%s510 + $0x3a] sm:$0xff]
      %v1129 = vld [vmem:[%s510 + $0x4a] sm:$0xff]
      %v1130 = vld [vmem:[%s510 + $0x52] sm:$0xff]
      %v1131 = vld [vmem:[%s510 + $0x62] sm:$0xff]
      %v1132 = vld [vmem:[%s510 + $0x6a] sm:$0xff]
      %v1133 = vld [vmem:[%s510 + $0x7a] sm:$0xff]
      %v1134 = vld [vmem:[%s510 + $0x82] sm:$0xff]
      %v1135 = vld [vmem:[%s510 + $0x92] sm:$0xff]
      %v1136 = vld [vmem:[%s510 + $0x9a] sm:$0xff]
      %v1137 = vld [vmem:[%s510 + $0xaa] sm:$0xff]
      %v1138 = vld [vmem:[%s510 + $0xb2] sm:$0xff]
      %v1139 = vld [vmem:[%s510 + $0xc2] sm:$0xff]
      %v1140 = vld [vmem:[%s510 + $0xca] sm:$0xff]
      %v1141 = vld [vmem:[%s510 + $0xda] sm:$0xff]
      %v1142 = vld [vmem:[%s510 + $0xe2] sm:$0xff]
      %v1143 = vld [vmem:[%s510 + $0xf2] sm:$0xff]
      %v1144 = vld [vmem:[%s510 + $0xfa] sm:$0xff]
      %v1145 = vld [vmem:[%s510 + $0x10a] sm:$0xff]
      %v1146 = vld [vmem:[%s510 + $0x112] sm:$0xff]
      %v1147 = vld [vmem:[%s510 + $0x122] sm:$0xff]
      %v1148 = vld [vmem:[%s510 + $0x12a] sm:$0xff]
      %v1149 = vld [vmem:[%s510 + $0x13a] sm:$0xff]
      %v1150 = vld [vmem:[%s510 + $0x142] sm:$0xff]
      %v1151 = vld [vmem:[%s510 + $0x152] sm:$0xff]
      %v1152 = vld [vmem:[%s510 + $0x15a] sm:$0xff]
      %v1153 = vld [vmem:[%s510 + $0x16a] sm:$0xff]
      %v1154 = vld [vmem:[%s510 + $0x172] sm:$0xff]
      %v1155 = vpack.c.bf16 %v1124, %v1123
      %v1156 = vpack.c.bf16 %v1126, %v1125
      %v1157 = vpack.c.bf16 %v1128, %v1127
      %v1158 = vpack.c.bf16 %v1130, %v1129
      %v1159 = vpack.c.bf16 %v1132, %v1131
      %v1160 = vpack.c.bf16 %v1134, %v1133
      %v1161 = vpack.c.bf16 %v1136, %v1135
      %v1162 = vpack.c.bf16 %v1138, %v1137
      %v1163 = vpack.c.bf16 %v1140, %v1139
      %v1164 = vpack.c.bf16 %v1142, %v1141
      %v1165 = vpack.c.bf16 %v1144, %v1143
      %v1166 = vpack.c.bf16 %v1146, %v1145
      %v1167 = vpack.c.bf16 %v1148, %v1147
      %v1168 = vpack.c.bf16 %v1150, %v1149
      %v1169 = vpack.c.bf16 %v1152, %v1151
      %v1170 = vpack.c.bf16 %v1154, %v1153
      %1187 = vrot.lane.b32.xlu0 %v1155, 20
      %v1188 = vpop.permute.xlu0 %1187
      %1189 = vrot.lane.b32.xlu0 %v1156, 20
      %v1190 = vpop.permute.xlu0 %1189
      %1191 = vrot.lane.b32.xlu0 %v1157, 20
      %v1192 = vpop.permute.xlu0 %1191
      %1193 = vrot.lane.b32.xlu0 %v1158, 20
      %v1194 = vpop.permute.xlu0 %1193
      %1195 = vrot.lane.b32.xlu0 %v1159, 20
      %v1196 = vpop.permute.xlu0 %1195
      %1197 = vrot.lane.b32.xlu0 %v1160, 20
      %v1198 = vpop.permute.xlu0 %1197
      %1199 = vrot.lane.b32.xlu0 %v1161, 20
      %v1200 = vpop.permute.xlu0 %1199
      %1201 = vrot.lane.b32.xlu0 %v1162, 20
      %v1202 = vpop.permute.xlu0 %1201
      %1203 = vrot.lane.b32.xlu0 %v1163, 20
      %v1204 = vpop.permute.xlu0 %1203
      %1205 = vrot.lane.b32.xlu0 %v1164, 20
      %v1206 = vpop.permute.xlu0 %1205
      %1207 = vrot.lane.b32.xlu0 %v1165, 20
      %v1208 = vpop.permute.xlu0 %1207
      %1209 = vrot.lane.b32.xlu0 %v1166, 20
      %v1210 = vpop.permute.xlu0 %1209
      %1211 = vrot.lane.b32.xlu0 %v1167, 20
      %v1212 = vpop.permute.xlu0 %1211
      %1213 = vrot.lane.b32.xlu0 %v1168, 20
      %v1214 = vpop.permute.xlu0 %1213
      %1215 = vrot.lane.b32.xlu0 %v1169, 20
      %v1216 = vpop.permute.xlu0 %1215
      %1217 = vrot.lane.b32.xlu0 %v1170, 20
      %v1218 = vpop.permute.xlu0 %1217
      %vm1235 = vcmask 195744
      %1236 = vst.msk [vmem:[#allocation3] sm:$0xff] %vm1235, %v1188
      %1237 = vst.msk [vmem:[#allocation3 + $0x8] sm:$0xff] %vm1235, %v1190
      %1238 = vst.msk [vmem:[#allocation3 + $0x10] sm:$0xff] %vm1235, %v1192
      %1239 = vst.msk [vmem:[#allocation3 + $0x18] sm:$0xff] %vm1235, %v1194
      %1240 = vst.msk [vmem:[#allocation3 + $0x20] sm:$0xff] %vm1235, %v1196
      %1241 = vst.msk [vmem:[#allocation3 + $0x28] sm:$0xff] %vm1235, %v1198
      %1242 = vst.msk [vmem:[#allocation3 + $0x30] sm:$0xff] %vm1235, %v1200
      %1243 = vst.msk [vmem:[#allocation3 + $0x38] sm:$0xff] %vm1235, %v1202
      %1244 = vst.msk [vmem:[#allocation3 + $0x40] sm:$0xff] %vm1235, %v1204
      %1245 = vst.msk [vmem:[#allocation3 + $0x48] sm:$0xff] %vm1235, %v1206
      %1246 = vst.msk [vmem:[#allocation3 + $0x50] sm:$0xff] %vm1235, %v1208
      %1247 = vst.msk [vmem:[#allocation3 + $0x58] sm:$0xff] %vm1235, %v1210
      %1248 = vst.msk [vmem:[#allocation3 + $0x60] sm:$0xff] %vm1235, %v1212
      %1249 = vst.msk [vmem:[#allocation3 + $0x68] sm:$0xff] %vm1235, %v1214
      %1250 = vst.msk [vmem:[#allocation3 + $0x70] sm:$0xff] %vm1235, %v1216
      %1251 = vst.msk [vmem:[#allocation3 + $0x78] sm:$0xff] %vm1235, %v1218
      %s1252 = scalar_lea.vmem [#allocation2], 48
      %v1253 = vld [vmem:[%s1252] sm:$0xff]
      %v1254 = vld [vmem:[%s1252 + $0x8] sm:$0xff]
      %v1255 = vld [vmem:[%s1252 + $0x18] sm:$0xff]
      %v1256 = vld [vmem:[%s1252 + $0x20] sm:$0xff]
      %v1257 = vld [vmem:[%s1252 + $0x30] sm:$0xff]
      %v1258 = vld [vmem:[%s1252 + $0x38] sm:$0xff]
      %v1259 = vld [vmem:[%s1252 + $0x48] sm:$0xff]
      %v1260 = vld [vmem:[%s1252 + $0x50] sm:$0xff]
      %v1261 = vld [vmem:[%s1252 + $0x60] sm:$0xff]
      %v1262 = vld [vmem:[%s1252 + $0x68] sm:$0xff]
      %v1263 = vld [vmem:[%s1252 + $0x78] sm:$0xff]
      %v1264 = vld [vmem:[%s1252 + $0x80] sm:$0xff]
      %v1265 = vld [vmem:[%s1252 + $0x90] sm:$0xff]
      %v1266 = vld [vmem:[%s1252 + $0x98] sm:$0xff]
      %v1267 = vld [vmem:[%s1252 + $0xa8] sm:$0xff]
      %v1268 = vld [vmem:[%s1252 + $0xb0] sm:$0xff]
      %v1269 = vld [vmem:[%s1252 + $0xc0] sm:$0xff]
      %v1270 = vld [vmem:[%s1252 + $0xc8] sm:$0xff]
      %v1271 = vld [vmem:[%s1252 + $0xd8] sm:$0xff]
      %v1272 = vld [vmem:[%s1252 + $0xe0] sm:$0xff]
      %v1273 = vld [vmem:[%s1252 + $0xf0] sm:$0xff]
      %v1274 = vld [vmem:[%s1252 + $0xf8] sm:$0xff]
      %v1275 = vld [vmem:[%s1252 + $0x108] sm:$0xff]
      %v1276 = vld [vmem:[%s1252 + $0x110] sm:$0xff]
      %v1277 = vld [vmem:[%s1252 + $0x120] sm:$0xff]
      %v1278 = vld [vmem:[%s1252 + $0x128] sm:$0xff]
      %v1279 = vld [vmem:[%s1252 + $0x138] sm:$0xff]
      %v1280 = vld [vmem:[%s1252 + $0x140] sm:$0xff]
      %v1281 = vld [vmem:[%s1252 + $0x150] sm:$0xff]
      %v1282 = vld [vmem:[%s1252 + $0x158] sm:$0xff]
      %v1283 = vld [vmem:[%s1252 + $0x168] sm:$0xff]
      %v1284 = vld [vmem:[%s1252 + $0x170] sm:$0xff]
      %v1285 = vpack.c.bf16 %v1254, %v1253
      %v1286 = vpack.c.bf16 %v1256, %v1255
      %v1287 = vpack.c.bf16 %v1258, %v1257
      %v1288 = vpack.c.bf16 %v1260, %v1259
      %v1289 = vpack.c.bf16 %v1262, %v1261
      %v1290 = vpack.c.bf16 %v1264, %v1263
      %v1291 = vpack.c.bf16 %v1266, %v1265
      %v1292 = vpack.c.bf16 %v1268, %v1267
      %v1293 = vpack.c.bf16 %v1270, %v1269
      %v1294 = vpack.c.bf16 %v1272, %v1271
      %v1295 = vpack.c.bf16 %v1274, %v1273
      %v1296 = vpack.c.bf16 %v1276, %v1275
      %v1297 = vpack.c.bf16 %v1278, %v1277
      %v1298 = vpack.c.bf16 %v1280, %v1279
      %v1299 = vpack.c.bf16 %v1282, %v1281
      %v1300 = vpack.c.bf16 %v1284, %v1283
      %1317 = vrot.lane.b32.xlu0 %v1285, 24
      %v1318 = vpop.permute.xlu0 %1317
      %1319 = vrot.lane.b32.xlu0 %v1286, 24
      %v1320 = vpop.permute.xlu0 %1319
      %1321 = vrot.lane.b32.xlu0 %v1287, 24
      %v1322 = vpop.permute.xlu0 %1321
      %1323 = vrot.lane.b32.xlu0 %v1288, 24
      %v1324 = vpop.permute.xlu0 %1323
      %1325 = vrot.lane.b32.xlu0 %v1289, 24
      %v1326 = vpop.permute.xlu0 %1325
      %1327 = vrot.lane.b32.xlu0 %v1290, 24
      %v1328 = vpop.permute.xlu0 %1327
      %1329 = vrot.lane.b32.xlu0 %v1291, 24
      %v1330 = vpop.permute.xlu0 %1329
      %1331 = vrot.lane.b32.xlu0 %v1292, 24
      %v1332 = vpop.permute.xlu0 %1331
      %1333 = vrot.lane.b32.xlu0 %v1293, 24
      %v1334 = vpop.permute.xlu0 %1333
      %1335 = vrot.lane.b32.xlu0 %v1294, 24
      %v1336 = vpop.permute.xlu0 %1335
      %1337 = vrot.lane.b32.xlu0 %v1295, 24
      %v1338 = vpop.permute.xlu0 %1337
      %1339 = vrot.lane.b32.xlu0 %v1296, 24
      %v1340 = vpop.permute.xlu0 %1339
      %1341 = vrot.lane.b32.xlu0 %v1297, 24
      %v1342 = vpop.permute.xlu0 %1341
      %1343 = vrot.lane.b32.xlu0 %v1298, 24
      %v1344 = vpop.permute.xlu0 %1343
      %1345 = vrot.lane.b32.xlu0 %v1299, 24
      %v1346 = vpop.permute.xlu0 %1345
      %1347 = vrot.lane.b32.xlu0 %v1300, 24
      %v1348 = vpop.permute.xlu0 %1347
      %vm1365 = vcmask 228544
      %1366 = vst.msk [vmem:[#allocation3] sm:$0xff] %vm1365, %v1318
      %1367 = vst.msk [vmem:[#allocation3 + $0x8] sm:$0xff] %vm1365, %v1320
      %1368 = vst.msk [vmem:[#allocation3 + $0x10] sm:$0xff] %vm1365, %v1322
      %1369 = vst.msk [vmem:[#allocation3 + $0x18] sm:$0xff] %vm1365, %v1324
      %1370 = vst.msk [vmem:[#allocation3 + $0x20] sm:$0xff] %vm1365, %v1326
      %1371 = vst.msk [vmem:[#allocation3 + $0x28] sm:$0xff] %vm1365, %v1328
      %1372 = vst.msk [vmem:[#allocation3 + $0x30] sm:$0xff] %vm1365, %v1330
      %1373 = vst.msk [vmem:[#allocation3 + $0x38] sm:$0xff] %vm1365, %v1332
      %1374 = vst.msk [vmem:[#allocation3 + $0x40] sm:$0xff] %vm1365, %v1334
      %1375 = vst.msk [vmem:[#allocation3 + $0x48] sm:$0xff] %vm1365, %v1336
      %1376 = vst.msk [vmem:[#allocation3 + $0x50] sm:$0xff] %vm1365, %v1338
      %1377 = vst.msk [vmem:[#allocation3 + $0x58] sm:$0xff] %vm1365, %v1340
      %1378 = vst.msk [vmem:[#allocation3 + $0x60] sm:$0xff] %vm1365, %v1342
      %1379 = vst.msk [vmem:[#allocation3 + $0x68] sm:$0xff] %vm1365, %v1344
      %1380 = vst.msk [vmem:[#allocation3 + $0x70] sm:$0xff] %vm1365, %v1346
      %1381 = vst.msk [vmem:[#allocation3 + $0x78] sm:$0xff] %vm1365, %v1348
      %v1382 = vld [vmem:[%s1252 + $0x1] sm:$0xff]
      %v1383 = vld [vmem:[%s1252 + $0x9] sm:$0xff]
      %v1384 = vld [vmem:[%s1252 + $0x19] sm:$0xff]
      %v1385 = vld [vmem:[%s1252 + $0x21] sm:$0xff]
      %v1386 = vld [vmem:[%s1252 + $0x31] sm:$0xff]
      %v1387 = vld [vmem:[%s1252 + $0x39] sm:$0xff]
      %v1388 = vld [vmem:[%s1252 + $0x49] sm:$0xff]
      %v1389 = vld [vmem:[%s1252 + $0x51] sm:$0xff]
      %v1390 = vld [vmem:[%s1252 + $0x61] sm:$0xff]
      %v1391 = vld [vmem:[%s1252 + $0x69] sm:$0xff]
      %v1392 = vld [vmem:[%s1252 + $0x79] sm:$0xff]
      %v1393 = vld [vmem:[%s1252 + $0x81] sm:$0xff]
      %v1394 = vld [vmem:[%s1252 + $0x91] sm:$0xff]
      %v1395 = vld [vmem:[%s1252 + $0x99] sm:$0xff]
      %v1396 = vld [vmem:[%s1252 + $0xa9] sm:$0xff]
      %v1397 = vld [vmem:[%s1252 + $0xb1] sm:$0xff]
      %v1398 = vld [vmem:[%s1252 + $0xc1] sm:$0xff]
      %v1399 = vld [vmem:[%s1252 + $0xc9] sm:$0xff]
      %v1400 = vld [vmem:[%s1252 + $0xd9] sm:$0xff]
      %v1401 = vld [vmem:[%s1252 + $0xe1] sm:$0xff]
      %v1402 = vld [vmem:[%s1252 + $0xf1] sm:$0xff]
      %v1403 = vld [vmem:[%s1252 + $0xf9] sm:$0xff]
      %v1404 = vld [vmem:[%s1252 + $0x109] sm:$0xff]
      %v1405 = vld [vmem:[%s1252 + $0x111] sm:$0xff]
      %v1406 = vld [vmem:[%s1252 + $0x121] sm:$0xff]
      %v1407 = vld [vmem:[%s1252 + $0x129] sm:$0xff]
      %v1408 = vld [vmem:[%s1252 + $0x139] sm:$0xff]
      %v1409 = vld [vmem:[%s1252 + $0x141] sm:$0xff]
      %v1410 = vld [vmem:[%s1252 + $0x151] sm:$0xff]
      %v1411 = vld [vmem:[%s1252 + $0x159] sm:$0xff]
      %v1412 = vld [vmem:[%s1252 + $0x169] sm:$0xff]
      %v1413 = vld [vmem:[%s1252 + $0x171] sm:$0xff]
      %v1414 = vpack.c.bf16 %v1383, %v1382
      %v1415 = vpack.c.bf16 %v1385, %v1384
      %v1416 = vpack.c.bf16 %v1387, %v1386
      %v1417 = vpack.c.bf16 %v1389, %v1388
      %v1418 = vpack.c.bf16 %v1391, %v1390
      %v1419 = vpack.c.bf16 %v1393, %v1392
      %v1420 = vpack.c.bf16 %v1395, %v1394
      %v1421 = vpack.c.bf16 %v1397, %v1396
      %v1422 = vpack.c.bf16 %v1399, %v1398
      %v1423 = vpack.c.bf16 %v1401, %v1400
      %v1424 = vpack.c.bf16 %v1403, %v1402
      %v1425 = vpack.c.bf16 %v1405, %v1404
      %v1426 = vpack.c.bf16 %v1407, %v1406
      %v1427 = vpack.c.bf16 %v1409, %v1408
      %v1428 = vpack.c.bf16 %v1411, %v1410
      %v1429 = vpack.c.bf16 %v1413, %v1412
      %1446 = vrot.lane.b32.xlu0 %v1414, 28
      %v1447 = vpop.permute.xlu0 %1446
      %1448 = vrot.lane.b32.xlu0 %v1415, 28
      %v1449 = vpop.permute.xlu0 %1448
      %1450 = vrot.lane.b32.xlu0 %v1416, 28
      %v1451 = vpop.permute.xlu0 %1450
      %1452 = vrot.lane.b32.xlu0 %v1417, 28
      %v1453 = vpop.permute.xlu0 %1452
      %1454 = vrot.lane.b32.xlu0 %v1418, 28
      %v1455 = vpop.permute.xlu0 %1454
      %1456 = vrot.lane.b32.xlu0 %v1419, 28
      %v1457 = vpop.permute.xlu0 %1456
      %1458 = vrot.lane.b32.xlu0 %v1420, 28
      %v1459 = vpop.permute.xlu0 %1458
      %1460 = vrot.lane.b32.xlu0 %v1421, 28
      %v1461 = vpop.permute.xlu0 %1460
      %1462 = vrot.lane.b32.xlu0 %v1422, 28
      %v1463 = vpop.permute.xlu0 %1462
      %1464 = vrot.lane.b32.xlu0 %v1423, 28
      %v1465 = vpop.permute.xlu0 %1464
      %1466 = vrot.lane.b32.xlu0 %v1424, 28
      %v1467 = vpop.permute.xlu0 %1466
      %1468 = vrot.lane.b32.xlu0 %v1425, 28
      %v1469 = vpop.permute.xlu0 %1468
      %1470 = vrot.lane.b32.xlu0 %v1426, 28
      %v1471 = vpop.permute.xlu0 %1470
      %1472 = vrot.lane.b32.xlu0 %v1427, 28
      %v1473 = vpop.permute.xlu0 %1472
      %1474 = vrot.lane.b32.xlu0 %v1428, 28
      %v1475 = vpop.permute.xlu0 %1474
      %1476 = vrot.lane.b32.xlu0 %v1429, 28
      %v1477 = vpop.permute.xlu0 %1476
      %vm1494 = vcmask 261344
      %1495 = vst.msk [vmem:[#allocation3] sm:$0xff] %vm1494, %v1447
      %1496 = vst.msk [vmem:[#allocation3 + $0x8] sm:$0xff] %vm1494, %v1449
      %1497 = vst.msk [vmem:[#allocation3 + $0x10] sm:$0xff] %vm1494, %v1451
      %1498 = vst.msk [vmem:[#allocation3 + $0x18] sm:$0xff] %vm1494, %v1453
      %1499 = vst.msk [vmem:[#allocation3 + $0x20] sm:$0xff] %vm1494, %v1455
      %1500 = vst.msk [vmem:[#allocation3 + $0x28] sm:$0xff] %vm1494, %v1457
      %1501 = vst.msk [vmem:[#allocation3 + $0x30] sm:$0xff] %vm1494, %v1459
      %1502 = vst.msk [vmem:[#allocation3 + $0x38] sm:$0xff] %vm1494, %v1461
      %1503 = vst.msk [vmem:[#allocation3 + $0x40] sm:$0xff] %vm1494, %v1463
      %1504 = vst.msk [vmem:[#allocation3 + $0x48] sm:$0xff] %vm1494, %v1465
      %1505 = vst.msk [vmem:[#allocation3 + $0x50] sm:$0xff] %vm1494, %v1467
      %1506 = vst.msk [vmem:[#allocation3 + $0x58] sm:$0xff] %vm1494, %v1469
      %1507 = vst.msk [vmem:[#allocation3 + $0x60] sm:$0xff] %vm1494, %v1471
      %1508 = vst.msk [vmem:[#allocation3 + $0x68] sm:$0xff] %vm1494, %v1473
      %1509 = vst.msk [vmem:[#allocation3 + $0x70] sm:$0xff] %vm1494, %v1475
      %1510 = vst.msk [vmem:[#allocation3 + $0x78] sm:$0xff] %vm1494, %v1477
      %v1511 = vld [vmem:[%s1252 + $0x2] sm:$0xff]
      %v1512 = vld [vmem:[%s1252 + $0xa] sm:$0xff]
      %v1513 = vld [vmem:[%s1252 + $0x1a] sm:$0xff]
      %v1514 = vld [vmem:[%s1252 + $0x22] sm:$0xff]
      %v1515 = vld [vmem:[%s1252 + $0x32] sm:$0xff]
      %v1516 = vld [vmem:[%s1252 + $0x3a] sm:$0xff]
      %v1517 = vld [vmem:[%s1252 + $0x4a] sm:$0xff]
      %v1518 = vld [vmem:[%s1252 + $0x52] sm:$0xff]
      %v1519 = vld [vmem:[%s1252 + $0x62] sm:$0xff]
      %v1520 = vld [vmem:[%s1252 + $0x6a] sm:$0xff]
      %v1521 = vld [vmem:[%s1252 + $0x7a] sm:$0xff]
      %v1522 = vld [vmem:[%s1252 + $0x82] sm:$0xff]
      %v1523 = vld [vmem:[%s1252 + $0x92] sm:$0xff]
      %v1524 = vld [vmem:[%s1252 + $0x9a] sm:$0xff]
      %v1525 = vld [vmem:[%s1252 + $0xaa] sm:$0xff]
      %v1526 = vld [vmem:[%s1252 + $0xb2] sm:$0xff]
      %v1527 = vld [vmem:[%s1252 + $0xc2] sm:$0xff]
      %v1528 = vld [vmem:[%s1252 + $0xca] sm:$0xff]
      %v1529 = vld [vmem:[%s1252 + $0xda] sm:$0xff]
      %v1530 = vld [vmem:[%s1252 + $0xe2] sm:$0xff]
      %v1531 = vld [vmem:[%s1252 + $0xf2] sm:$0xff]
      %v1532 = vld [vmem:[%s1252 + $0xfa] sm:$0xff]
      %v1533 = vld [vmem:[%s1252 + $0x10a] sm:$0xff]
      %v1534 = vld [vmem:[%s1252 + $0x112] sm:$0xff]
      %v1535 = vld [vmem:[%s1252 + $0x122] sm:$0xff]
      %v1536 = vld [vmem:[%s1252 + $0x12a] sm:$0xff]
      %v1537 = vld [vmem:[%s1252 + $0x13a] sm:$0xff]
      %v1538 = vld [vmem:[%s1252 + $0x142] sm:$0xff]
      %v1539 = vld [vmem:[%s1252 + $0x152] sm:$0xff]
      %v1540 = vld [vmem:[%s1252 + $0x15a] sm:$0xff]
      %v1541 = vld [vmem:[%s1252 + $0x16a] sm:$0xff]
      %v1542 = vld [vmem:[%s1252 + $0x172] sm:$0xff]
      %v1543 = vpack.c.bf16 %v1512, %v1511
      %v1544 = vpack.c.bf16 %v1514, %v1513
      %v1545 = vpack.c.bf16 %v1516, %v1515
      %v1546 = vpack.c.bf16 %v1518, %v1517
      %v1547 = vpack.c.bf16 %v1520, %v1519
      %v1548 = vpack.c.bf16 %v1522, %v1521
      %v1549 = vpack.c.bf16 %v1524, %v1523
      %v1550 = vpack.c.bf16 %v1526, %v1525
      %v1551 = vpack.c.bf16 %v1528, %v1527
      %v1552 = vpack.c.bf16 %v1530, %v1529
      %v1553 = vpack.c.bf16 %v1532, %v1531
      %v1554 = vpack.c.bf16 %v1534, %v1533
      %v1555 = vpack.c.bf16 %v1536, %v1535
      %v1556 = vpack.c.bf16 %v1538, %v1537
      %v1557 = vpack.c.bf16 %v1540, %v1539
      %v1558 = vpack.c.bf16 %v1542, %v1541
      %1575 = vrot.lane.b32.xlu0 %v1543, 32
      %v1576 = vpop.permute.xlu0 %1575
      %1577 = vrot.lane.b32.xlu0 %v1544, 32
      %v1578 = vpop.permute.xlu0 %1577
      %1579 = vrot.lane.b32.xlu0 %v1545, 32
      %v1580 = vpop.permute.xlu0 %1579
      %1581 = vrot.lane.b32.xlu0 %v1546, 32
      %v1582 = vpop.permute.xlu0 %1581
      %1583 = vrot.lane.b32.xlu0 %v1547, 32
      %v1584 = vpop.permute.xlu0 %1583
      %1585 = vrot.lane.b32.xlu0 %v1548, 32
      %v1586 = vpop.permute.xlu0 %1585
      %1587 = vrot.lane.b32.xlu0 %v1549, 32
      %v1588 = vpop.permute.xlu0 %1587
      %1589 = vrot.lane.b32.xlu0 %v1550, 32
      %v1590 = vpop.permute.xlu0 %1589
      %1591 = vrot.lane.b32.xlu0 %v1551, 32
      %v1592 = vpop.permute.xlu0 %1591
      %1593 = vrot.lane.b32.xlu0 %v1552, 32
      %v1594 = vpop.permute.xlu0 %1593
      %1595 = vrot.lane.b32.xlu0 %v1553, 32
      %v1596 = vpop.permute.xlu0 %1595
      %1597 = vrot.lane.b32.xlu0 %v1554, 32
      %v1598 = vpop.permute.xlu0 %1597
      %1599 = vrot.lane.b32.xlu0 %v1555, 32
      %v1600 = vpop.permute.xlu0 %1599
      %1601 = vrot.lane.b32.xlu0 %v1556, 32
      %v1602 = vpop.permute.xlu0 %1601
      %1603 = vrot.lane.b32.xlu0 %v1557, 32
      %v1604 = vpop.permute.xlu0 %1603
      %1605 = vrot.lane.b32.xlu0 %v1558, 32
      %v1606 = vpop.permute.xlu0 %1605
      %vm1623 = vcmask 294144
      %1624 = vst.msk [vmem:[#allocation3] sm:$0xff] %vm1623, %v1576
      %1625 = vst.msk [vmem:[#allocation3 + $0x8] sm:$0xff] %vm1623, %v1578
      %1626 = vst.msk [vmem:[#allocation3 + $0x10] sm:$0xff] %vm1623, %v1580
      %1627 = vst.msk [vmem:[#allocation3 + $0x18] sm:$0xff] %vm1623, %v1582
      %1628 = vst.msk [vmem:[#allocation3 + $0x20] sm:$0xff] %vm1623, %v1584
      %1629 = vst.msk [vmem:[#allocation3 + $0x28] sm:$0xff] %vm1623, %v1586
      %1630 = vst.msk [vmem:[#allocation3 + $0x30] sm:$0xff] %vm1623, %v1588
      %1631 = vst.msk [vmem:[#allocation3 + $0x38] sm:$0xff] %vm1623, %v1590
      %1632 = vst.msk [vmem:[#allocation3 + $0x40] sm:$0xff] %vm1623, %v1592
      %1633 = vst.msk [vmem:[#allocation3 + $0x48] sm:$0xff] %vm1623, %v1594
      %1634 = vst.msk [vmem:[#allocation3 + $0x50] sm:$0xff] %vm1623, %v1596
      %1635 = vst.msk [vmem:[#allocation3 + $0x58] sm:$0xff] %vm1623, %v1598
      %1636 = vst.msk [vmem:[#allocation3 + $0x60] sm:$0xff] %vm1623, %v1600
      %1637 = vst.msk [vmem:[#allocation3 + $0x68] sm:$0xff] %vm1623, %v1602
      %1638 = vst.msk [vmem:[#allocation3 + $0x70] sm:$0xff] %vm1623, %v1604
      %1639 = vst.msk [vmem:[#allocation3 + $0x78] sm:$0xff] %vm1623, %v1606
      %v1640 = vld [vmem:[%s2] sm:$0xf]
      %v1641 = vld [vmem:[%s2 + $0x4] sm:$0xf]
      %v1642 = vld [vmem:[%s2 + $0x8] sm:$0xf]
      %v1643 = vld [vmem:[%s2 + $0xc] sm:$0xf]
      %v1644 = vld [vmem:[%s2 + $0x10] sm:$0x3]
      %v1645 = vld [vmem:[#allocation3] sm:$0xff]
      %v1646 = vld [vmem:[#allocation3 + $0x8] sm:$0xff]
      %v1647 = vld [vmem:[#allocation3 + $0x10] sm:$0xff]
      %v1648 = vld [vmem:[#allocation3 + $0x18] sm:$0xff]
      %v1649 = vld [vmem:[#allocation3 + $0x20] sm:$0xff]
      %v1650 = vld [vmem:[#allocation3 + $0x28] sm:$0xff]
      %v1651 = vld [vmem:[#allocation3 + $0x30] sm:$0xff]
      %v1652 = vld [vmem:[#allocation3 + $0x38] sm:$0xff]
      %v1653 = vld [vmem:[#allocation3 + $0x40] sm:$0xff]
      %v1654 = vld [vmem:[#allocation3 + $0x48] sm:$0xff]
      %v1655 = vld [vmem:[#allocation3 + $0x50] sm:$0xff]
      %v1656 = vld [vmem:[#allocation3 + $0x58] sm:$0xff]
      %v1657 = vld [vmem:[#allocation3 + $0x60] sm:$0xff]
      %v1658 = vld [vmem:[#allocation3 + $0x68] sm:$0xff]
      %v1659 = vld [vmem:[#allocation3 + $0x70] sm:$0xff]
      %v1660 = vld [vmem:[#allocation3 + $0x78] sm:$0xff]
      %v1661 = vld [vmem:[%s3] sm:$0x1]
      %v1663 = vlaneseq
      %v1664 = vshrl.u32 %v1663, 7
      %v1665 = vsub.s32 0, %v1664
      %v1666 = vrot.slane %v1661, %v1665
      %v1673 = vunpack.c.l.b16 %v1640
      %v1674 = vunpack.c.l.b16 %v1641
      %v1675 = vunpack.c.l.b16 %v1642
      %v1676 = vunpack.c.l.b16 %v1643
      %v1677 = vunpack.c.l.b16 %v1644
      %v1678 = vpack.c.b16 %v1674, %v1673
      %v1679 = vpack.c.b16 %v1676, %v1675
      %v1680 = vpack.c.b16 %v1677, %v1677
      %vm1683 = vcmask 293888
      %v1685 = vsel %vm1683, %v1645, 0
      %v1688 = vsel %vm1683, %v1646, 0
      %v1691 = vsel %vm1683, %v1647, 0
      %v1694 = vsel %vm1683, %v1648, 0
      %v1697 = vsel %vm1683, %v1649, 0
      %v1700 = vsel %vm1683, %v1650, 0
      %v1703 = vsel %vm1683, %v1651, 0
      %v1706 = vsel %vm1683, %v1652, 0
      %v1709 = vsel %vm1683, %v1653, 0
      %v1712 = vsel %vm1683, %v1654, 0
      %v1715 = vsel %vm1683, %v1655, 0
      %v1718 = vsel %vm1683, %v1656, 0
      %v1721 = vsel %vm1683, %v1657, 0
      %v1724 = vsel %vm1683, %v1658, 0
      %v1727 = vsel %vm1683, %v1659, 0
      %v1730 = vsel %vm1683, %v1660, 0
      %vm1732 = vcmask 1041408
      %v1734 = vsel %vm1732, %v1680, 0
      %1736 = vmatprep.subr.bf16.mxu0 0
      %1737 = vmatpush1.bf16.msra.mxu0 %v1678
      %1738 = vmatprep.subr.bf16.mxu0 0
      %1739 = vmatpush1.bf16.msra.mxu0 %v1679
      %1740 = vmatprep.subr.bf16.mxu0 0
      %1741 = vmatpush1.bf16.msra.mxu0 %v1734
      %1742 = vmatprep.subr.bf16.mxu0 0
      %1743 = vmatpush1.bf16.msra.mxu0 0
      %1744 = vmatprep.subr.bf16.mxu0 0
      %1745 = vmatpush1.bf16.msra.mxu0 0
      %1746 = vmatprep.subr.bf16.mxu0 0
      %1747 = vmatpush1.bf16.msra.mxu0 0
      %1748 = vmatprep.subr.bf16.mxu0 0
      %1749 = vmatpush1.bf16.msra.mxu0 0
      %1750 = vmatprep.subr.bf16.mxu0 0
      %1751 = vmatpush1.bf16.msra.mxu0 0
      %1752 = vmatprep.subr.bf16.mxu0 0
      %1753 = vmatpush1.bf16.msra.mxu0 0
      %1754 = vmatprep.subr.bf16.mxu0 0
      %1755 = vmatpush1.bf16.msra.mxu0 0
      %1756 = vmatprep.subr.bf16.mxu0 0
      %1757 = vmatpush1.bf16.msra.mxu0 0
      %1758 = vmatprep.subr.bf16.mxu0 0
      %1759 = vmatpush1.bf16.msra.mxu0 0
      %1760 = vmatprep.subr.bf16.mxu0 0
      %1761 = vmatpush1.bf16.msra.mxu0 0
      %1762 = vmatprep.subr.bf16.mxu0 0
      %1763 = vmatpush1.bf16.msra.mxu0 0
      %1764 = vmatprep.subr.bf16.mxu0 0
      %1765 = vmatpush1.bf16.msra.mxu0 0
      %1766 = vmatprep.subr.bf16.mxu0 0
      %1767 = vmatpush1.bf16.msra.mxu0 0
      %1768 = vmatprep.mubr.bf16.mxu0 0
      %1769 = vmatmul.mubr.bf16.gmra.mrb[0].mxu0 %v1685
      %v1770 = vpop.f32.mrb[0].mxu0
      %v1771 = vadd.f32 %v1666, %v1770
      %v1772 = vpop.f32.mrb[0].mxu0
      %v1773 = vpop.f32.mrb[0].mxu0
      %v1774 = vadd.f32 %v1666, %v1773
      %v1775 = vpop.f32.mrb[0].mxu0
      %1776 = vmatprep.mubr.bf16.mxu0 0
      %1777 = vmatmul.mubr.bf16.gmra.mrb[0].mxu0 %v1688
      %v1778 = vpop.f32.mrb[0].mxu0
      %v1779 = vadd.f32 %v1666, %v1778
      %v1780 = vpop.f32.mrb[0].mxu0
      %v1781 = vpop.f32.mrb[0].mxu0
      %v1782 = vadd.f32 %v1666, %v1781
      %v1783 = vpop.f32.mrb[0].mxu0
      %1784 = vmatprep.mubr.bf16.mxu0 0
      %1785 = vmatmul.mubr.bf16.gmra.mrb[0].mxu0 %v1691
      %v1786 = vpop.f32.mrb[0].mxu0
      %v1787 = vadd.f32 %v1666, %v1786
      %v1788 = vpop.f32.mrb[0].mxu0
      %v1789 = vpop.f32.mrb[0].mxu0
      %v1790 = vadd.f32 %v1666, %v1789
      %v1791 = vpop.f32.mrb[0].mxu0
      %1792 = vmatprep.mubr.bf16.mxu0 0
      %1793 = vmatmul.mubr.bf16.gmra.mrb[0].mxu0 %v1694
      %v1794 = vpop.f32.mrb[0].mxu0
      %v1795 = vadd.f32 %v1666, %v1794
      %v1796 = vpop.f32.mrb[0].mxu0
      %v1797 = vpop.f32.mrb[0].mxu0
      %v1798 = vadd.f32 %v1666, %v1797
      %v1799 = vpop.f32.mrb[0].mxu0
      %1800 = vmatprep.mubr.bf16.mxu0 0
      %1801 = vmatmul.mubr.bf16.gmra.mrb[0].mxu0 %v1697
      %v1802 = vpop.f32.mrb[0].mxu0
      %v1803 = vadd.f32 %v1666, %v1802
      %v1804 = vpop.f32.mrb[0].mxu0
      %v1805 = vpop.f32.mrb[0].mxu0
      %v1806 = vadd.f32 %v1666, %v1805
      %v1807 = vpop.f32.mrb[0].mxu0
      %1808 = vmatprep.mubr.bf16.mxu0 0
      %1809 = vmatmul.mubr.bf16.gmra.mrb[0].mxu0 %v1700
      %v1810 = vpop.f32.mrb[0].mxu0
      %v1811 = vadd.f32 %v1666, %v1810
      %v1812 = vpop.f32.mrb[0].mxu0
      %v1813 = vpop.f32.mrb[0].mxu0
      %v1814 = vadd.f32 %v1666, %v1813
      %v1815 = vpop.f32.mrb[0].mxu0
      %1816 = vmatprep.mubr.bf16.mxu0 0
      %1817 = vmatmul.mubr.bf16.gmra.mrb[0].mxu0 %v1703
      %v1818 = vpop.f32.mrb[0].mxu0
      %v1819 = vadd.f32 %v1666, %v1818
      %v1820 = vpop.f32.mrb[0].mxu0
      %v1821 = vpop.f32.mrb[0].mxu0
      %v1822 = vadd.f32 %v1666, %v1821
      %v1823 = vpop.f32.mrb[0].mxu0
      %1824 = vmatprep.mubr.bf16.mxu0 0
      %1825 = vmatmul.mubr.bf16.gmra.mrb[0].mxu0 %v1706
      %v1826 = vpop.f32.mrb[0].mxu0
      %v1827 = vadd.f32 %v1666, %v1826
      %v1828 = vpop.f32.mrb[0].mxu0
      %v1829 = vpop.f32.mrb[0].mxu0
      %v1830 = vadd.f32 %v1666, %v1829
      %v1831 = vpop.f32.mrb[0].mxu0
      %1832 = vmatprep.mubr.bf16.mxu0 0
      %1833 = vmatmul.mubr.bf16.gmra.mrb[0].mxu0 %v1709
      %v1834 = vpop.f32.mrb[0].mxu0
      %v1835 = vadd.f32 %v1666, %v1834
      %v1836 = vpop.f32.mrb[0].mxu0
      %v1837 = vpop.f32.mrb[0].mxu0
      %v1838 = vadd.f32 %v1666, %v1837
      %v1839 = vpop.f32.mrb[0].mxu0
      %1840 = vmatprep.mubr.bf16.mxu0 0
      %1841 = vmatmul.mubr.bf16.gmra.mrb[0].mxu0 %v1712
      %v1842 = vpop.f32.mrb[0].mxu0
      %v1843 = vadd.f32 %v1666, %v1842
      %v1844 = vpop.f32.mrb[0].mxu0
      %v1845 = vpop.f32.mrb[0].mxu0
      %v1846 = vadd.f32 %v1666, %v1845
      %v1847 = vpop.f32.mrb[0].mxu0
      %1848 = vmatprep.mubr.bf16.mxu0 0
      %1849 = vmatmul.mubr.bf16.gmra.mrb[0].mxu0 %v1715
      %v1850 = vpop.f32.mrb[0].mxu0
      %v1851 = vadd.f32 %v1666, %v1850
      %v1852 = vpop.f32.mrb[0].mxu0
      %v1853 = vpop.f32.mrb[0].mxu0
      %v1854 = vadd.f32 %v1666, %v1853
      %v1855 = vpop.f32.mrb[0].mxu0
      %1856 = vmatprep.mubr.bf16.mxu0 0
      %1857 = vmatmul.mubr.bf16.gmra.mrb[0].mxu0 %v1718
      %v1858 = vpop.f32.mrb[0].mxu0
      %v1859 = vadd.f32 %v1666, %v1858
      %v1860 = vpop.f32.mrb[0].mxu0
      %v1861 = vpop.f32.mrb[0].mxu0
      %v1862 = vadd.f32 %v1666, %v1861
      %v1863 = vpop.f32.mrb[0].mxu0
      %1864 = vmatprep.mubr.bf16.mxu0 0
      %1865 = vmatmul.mubr.bf16.gmra.mrb[0].mxu0 %v1721
      %v1866 = vpop.f32.mrb[0].mxu0
      %v1867 = vadd.f32 %v1666, %v1866
      %v1868 = vpop.f32.mrb[0].mxu0
      %v1869 = vpop.f32.mrb[0].mxu0
      %v1870 = vadd.f32 %v1666, %v1869
      %v1871 = vpop.f32.mrb[0].mxu0
      %1872 = vmatprep.mubr.bf16.mxu0 0
      %1873 = vmatmul.mubr.bf16.gmra.mrb[0].mxu0 %v1724
      %v1874 = vpop.f32.mrb[0].mxu0
      %v1875 = vadd.f32 %v1666, %v1874
      %v1876 = vpop.f32.mrb[0].mxu0
      %v1877 = vpop.f32.mrb[0].mxu0
      %v1878 = vadd.f32 %v1666, %v1877
      %v1879 = vpop.f32.mrb[0].mxu0
      %1880 = vmatprep.mubr.bf16.mxu0 0
      %1881 = vmatmul.mubr.bf16.gmra.mrb[0].mxu0 %v1727
      %v1882 = vpop.f32.mrb[0].mxu0
      %v1883 = vadd.f32 %v1666, %v1882
      %v1884 = vpop.f32.mrb[0].mxu0
      %v1885 = vpop.f32.mrb[0].mxu0
      %v1886 = vadd.f32 %v1666, %v1885
      %v1887 = vpop.f32.mrb[0].mxu0
      %1888 = vmatprep.mubr.bf16.mxu0 0
      %1889 = vmatmul.mubr.bf16.gmra.mrb[0].mxu0 %v1730
      %v1890 = vpop.f32.mrb[0].mxu0
      %v1891 = vadd.f32 %v1666, %v1890
      %v1892 = vpop.f32.mrb[0].mxu0
      %v1893 = vpop.f32.mrb[0].mxu0
      %v1894 = vadd.f32 %v1666, %v1893
      %v1895 = vpop.f32.mrb[0].mxu0
      %1896 = vdwg.mxu0
      %v1897 = vpack.c.bf16 %v1774, %v1771
      %v1898 = vpack.c.bf16 %v1782, %v1779
      %v1899 = vpack.c.bf16 %v1790, %v1787
      %v1900 = vpack.c.bf16 %v1798, %v1795
      %v1901 = vpack.c.bf16 %v1806, %v1803
      %v1902 = vpack.c.bf16 %v1814, %v1811
      %v1903 = vpack.c.bf16 %v1822, %v1819
      %v1904 = vpack.c.bf16 %v1830, %v1827
      %v1905 = vpack.c.bf16 %v1838, %v1835
      %v1906 = vpack.c.bf16 %v1846, %v1843
      %v1907 = vpack.c.bf16 %v1854, %v1851
      %v1908 = vpack.c.bf16 %v1862, %v1859
      %v1909 = vpack.c.bf16 %v1870, %v1867
      %v1910 = vpack.c.bf16 %v1878, %v1875
      %v1911 = vpack.c.bf16 %v1886, %v1883
      %v1912 = vpack.c.bf16 %v1894, %v1891
      %v1929 = vunpack.c.l.b16 %v1897
      %v1930 = vunpack.c.h.b16 %v1897
      %v1931 = vunpack.c.l.b16 %v1898
      %v1932 = vunpack.c.h.b16 %v1898
      %v1933 = vunpack.c.l.b16 %v1899
      %v1934 = vunpack.c.h.b16 %v1899
      %v1935 = vunpack.c.l.b16 %v1900
      %v1936 = vunpack.c.h.b16 %v1900
      %v1937 = vunpack.c.l.b16 %v1901
      %v1938 = vunpack.c.h.b16 %v1901
      %v1939 = vunpack.c.l.b16 %v1902
      %v1940 = vunpack.c.h.b16 %v1902
      %v1941 = vunpack.c.l.b16 %v1903
      %v1942 = vunpack.c.h.b16 %v1903
      %v1943 = vunpack.c.l.b16 %v1904
      %v1944 = vunpack.c.h.b16 %v1904
      %v1945 = vunpack.c.l.b16 %v1905
      %v1946 = vunpack.c.h.b16 %v1905
      %v1947 = vunpack.c.l.b16 %v1906
      %v1948 = vunpack.c.h.b16 %v1906
      %v1949 = vunpack.c.l.b16 %v1907
      %v1950 = vunpack.c.h.b16 %v1907
      %v1951 = vunpack.c.l.b16 %v1908
      %v1952 = vunpack.c.h.b16 %v1908
      %v1953 = vunpack.c.l.b16 %v1909
      %v1954 = vunpack.c.h.b16 %v1909
      %v1955 = vunpack.c.l.b16 %v1910
      %v1956 = vunpack.c.h.b16 %v1910
      %v1957 = vunpack.c.l.b16 %v1911
      %v1958 = vunpack.c.h.b16 %v1911
      %v1959 = vunpack.c.l.b16 %v1912
      %v1960 = vunpack.c.h.b16 %v1912
      %v1961 = vpack.c.b16 %v1929, %v1929
      %v1962 = vpack.c.b16 %v1930, %v1930
      %v1963 = vpack.c.b16 %v1931, %v1931
      %v1964 = vpack.c.b16 %v1932, %v1932
      %v1965 = vpack.c.b16 %v1933, %v1933
      %v1966 = vpack.c.b16 %v1934, %v1934
      %v1967 = vpack.c.b16 %v1935, %v1935
      %v1968 = vpack.c.b16 %v1936, %v1936
      %v1969 = vpack.c.b16 %v1937, %v1937
      %v1970 = vpack.c.b16 %v1938, %v1938
      %v1971 = vpack.c.b16 %v1939, %v1939
      %v1972 = vpack.c.b16 %v1940, %v1940
      %v1973 = vpack.c.b16 %v1941, %v1941
      %v1974 = vpack.c.b16 %v1942, %v1942
      %v1975 = vpack.c.b16 %v1943, %v1943
      %v1976 = vpack.c.b16 %v1944, %v1944
      %v1977 = vpack.c.b16 %v1945, %v1945
      %v1978 = vpack.c.b16 %v1946, %v1946
      %v1979 = vpack.c.b16 %v1947, %v1947
      %v1980 = vpack.c.b16 %v1948, %v1948
      %v1981 = vpack.c.b16 %v1949, %v1949
      %v1982 = vpack.c.b16 %v1950, %v1950
      %v1983 = vpack.c.b16 %v1951, %v1951
      %v1984 = vpack.c.b16 %v1952, %v1952
      %v1985 = vpack.c.b16 %v1953, %v1953
      %v1986 = vpack.c.b16 %v1954, %v1954
      %v1987 = vpack.c.b16 %v1955, %v1955
      %v1988 = vpack.c.b16 %v1956, %v1956
      %v1989 = vpack.c.b16 %v1957, %v1957
      %v1990 = vpack.c.b16 %v1958, %v1958
      %v1991 = vpack.c.b16 %v1959, %v1959
      %v1992 = vpack.c.b16 %v1960, %v1960
      %vm2025 = vcmask 60416
      %2026 = vst.msk [vmem:[%s403] sm:$0xf] %vm2025, %v1961
      %2027 = vst.msk [vmem:[%s403 + $0x4] sm:$0xf] %vm2025, %v1962
      %2028 = vst.msk [vmem:[%s403 + $0x8] sm:$0xf] %vm2025, %v1963
      %2029 = vst.msk [vmem:[%s403 + $0xc] sm:$0xf] %vm2025, %v1964
      %2030 = vst.msk [vmem:[%s403 + $0x10] sm:$0xf] %vm2025, %v1965
      %2031 = vst.msk [vmem:[%s403 + $0x14] sm:$0xf] %vm2025, %v1966
      %2032 = vst.msk [vmem:[%s403 + $0x18] sm:$0xf] %vm2025, %v1967
      %2033 = vst.msk [vmem:[%s403 + $0x1c] sm:$0xf] %vm2025, %v1968
      %2034 = vst.msk [vmem:[%s403 + $0x20] sm:$0xf] %vm2025, %v1969
      %2035 = vst.msk [vmem:[%s403 + $0x24] sm:$0xf] %vm2025, %v1970
      %2036 = vst.msk [vmem:[%s403 + $0x28] sm:$0xf] %vm2025, %v1971
      %2037 = vst.msk [vmem:[%s403 + $0x2c] sm:$0xf] %vm2025, %v1972
      %2038 = vst.msk [vmem:[%s403 + $0x30] sm:$0xf] %vm2025, %v1973
      %2039 = vst.msk [vmem:[%s403 + $0x34] sm:$0xf] %vm2025, %v1974
      %2040 = vst.msk [vmem:[%s403 + $0x38] sm:$0xf] %vm2025, %v1975
      %2041 = vst.msk [vmem:[%s403 + $0x3c] sm:$0xf] %vm2025, %v1976
      %2042 = vst.msk [vmem:[%s403 + $0x40] sm:$0xf] %vm2025, %v1977
      %2043 = vst.msk [vmem:[%s403 + $0x44] sm:$0xf] %vm2025, %v1978
      %2044 = vst.msk [vmem:[%s403 + $0x48] sm:$0xf] %vm2025, %v1979
      %2045 = vst.msk [vmem:[%s403 + $0x4c] sm:$0xf] %vm2025, %v1980
      %2046 = vst.msk [vmem:[%s403 + $0x50] sm:$0xf] %vm2025, %v1981
      %2047 = vst.msk [vmem:[%s403 + $0x54] sm:$0xf] %vm2025, %v1982
      %2048 = vst.msk [vmem:[%s403 + $0x58] sm:$0xf] %vm2025, %v1983
      %2049 = vst.msk [vmem:[%s403 + $0x5c] sm:$0xf] %vm2025, %v1984
      %2050 = vst.msk [vmem:[%s403 + $0x60] sm:$0xf] %vm2025, %v1985
      %2051 = vst.msk [vmem:[%s403 + $0x64] sm:$0xf] %vm2025, %v1986
      %2052 = vst.msk [vmem:[%s403 + $0x68] sm:$0xf] %vm2025, %v1987
      %2053 = vst.msk [vmem:[%s403 + $0x6c] sm:$0xf] %vm2025, %v1988
      %2054 = vst.msk [vmem:[%s403 + $0x70] sm:$0xf] %vm2025, %v1989
      %2055 = vst.msk [vmem:[%s403 + $0x74] sm:$0xf] %vm2025, %v1990
      %2056 = vst.msk [vmem:[%s403 + $0x78] sm:$0xf] %vm2025, %v1991
      %2057 = vst.msk [vmem:[%s403 + $0x7c] sm:$0xf] %vm2025, %v1992
      %vm2058 = vcmask 64512
      %v2059 = vsel %vm2058, %v1771, 0.0
      %v2060 = vsel %vm2058, %v1774, 0.0
      %v2061 = vadd.f32 %v2059, %v2060
      %v2062 = vsel %vm2058, %v1779, 0.0
      %v2063 = vadd.f32 %v2061, %v2062
      %v2064 = vsel %vm2058, %v1782, 0.0
      %v2065 = vadd.f32 %v2063, %v2064
      %v2066 = vsel %vm2058, %v1787, 0.0
      %v2067 = vadd.f32 %v2065, %v2066
      %v2068 = vsel %vm2058, %v1790, 0.0
      %v2069 = vadd.f32 %v2067, %v2068
      %v2070 = vsel %vm2058, %v1795, 0.0
      %v2071 = vadd.f32 %v2069, %v2070
      %v2072 = vsel %vm2058, %v1798, 0.0
      %v2073 = vadd.f32 %v2071, %v2072
      %v2074 = vsel %vm2058, %v1803, 0.0
      %v2075 = vadd.f32 %v2073, %v2074
      %v2076 = vsel %vm2058, %v1806, 0.0
      %v2077 = vadd.f32 %v2075, %v2076
      %v2078 = vsel %vm2058, %v1811, 0.0
      %v2079 = vadd.f32 %v2077, %v2078
      %v2080 = vsel %vm2058, %v1814, 0.0
      %v2081 = vadd.f32 %v2079, %v2080
      %v2082 = vsel %vm2058, %v1819, 0.0
      %v2083 = vadd.f32 %v2081, %v2082
      %v2084 = vsel %vm2058, %v1822, 0.0
      %v2085 = vadd.f32 %v2083, %v2084
      %v2086 = vsel %vm2058, %v1827, 0.0
      %v2087 = vadd.f32 %v2085, %v2086
      %v2088 = vsel %vm2058, %v1830, 0.0
      %v2089 = vadd.f32 %v2087, %v2088
      %v2090 = vsel %vm2058, %v1835, 0.0
      %v2091 = vadd.f32 %v2089, %v2090
      %v2092 = vsel %vm2058, %v1838, 0.0
      %v2093 = vadd.f32 %v2091, %v2092
      %v2094 = vsel %vm2058, %v1843, 0.0
      %v2095 = vadd.f32 %v2093, %v2094
      %v2096 = vsel %vm2058, %v1846, 0.0
      %v2097 = vadd.f32 %v2095, %v2096
      %v2098 = vsel %vm2058, %v1851, 0.0
      %v2099 = vadd.f32 %v2097, %v2098
      %v2100 = vsel %vm2058, %v1854, 0.0
      %v2101 = vadd.f32 %v2099, %v2100
      %v2102 = vsel %vm2058, %v1859, 0.0
      %v2103 = vadd.f32 %v2101, %v2102
      %v2104 = vsel %vm2058, %v1862, 0.0
      %v2105 = vadd.f32 %v2103, %v2104
      %v2106 = vsel %vm2058, %v1867, 0.0
      %v2107 = vadd.f32 %v2105, %v2106
      %v2108 = vsel %vm2058, %v1870, 0.0
      %v2109 = vadd.f32 %v2107, %v2108
      %v2110 = vsel %vm2058, %v1875, 0.0
      %v2111 = vadd.f32 %v2109, %v2110
      %v2112 = vsel %vm2058, %v1878, 0.0
      %v2113 = vadd.f32 %v2111, %v2112
      %v2114 = vsel %vm2058, %v1883, 0.0
      %v2115 = vadd.f32 %v2113, %v2114
      %v2116 = vsel %vm2058, %v1886, 0.0
      %v2117 = vadd.f32 %v2115, %v2116
      %v2118 = vsel %vm2058, %v1891, 0.0
      %v2119 = vadd.f32 %v2117, %v2118
      %v2120 = vsel %vm2058, %v1894, 0.0
      %v2121 = vadd.f32 %v2119, %v2120
      %v2122 = vrot.slane %v2121, 4
      %v2123 = vadd.f32 %v2121, %v2122
      %v2124 = vrot.slane %v2123, 2
      %v2125 = vadd.f32 %v2123, %v2124
      %v2126 = vrot.slane %v2125, 1
      %v2127 = vadd.f32 %v2125, %v2126
      %vm2128 = vcmask 57344
      %2129 = vst.msk [vmem:[%s410] sm:$0x1] %vm2128, %v2127
      %v2130 = vmul.f32 %v1771, %v1771
      %v2131 = vmul.f32 %v1774, %v1774
      %v2132 = vmul.f32 %v1779, %v1779
      %v2133 = vmul.f32 %v1782, %v1782
      %v2134 = vmul.f32 %v1787, %v1787
      %v2135 = vmul.f32 %v1790, %v1790
      %v2136 = vmul.f32 %v1795, %v1795
      %v2137 = vmul.f32 %v1798, %v1798
      %v2138 = vmul.f32 %v1803, %v1803
      %v2139 = vmul.f32 %v1806, %v1806
      %v2140 = vmul.f32 %v1811, %v1811
      %v2141 = vmul.f32 %v1814, %v1814
      %v2142 = vmul.f32 %v1819, %v1819
      %v2143 = vmul.f32 %v1822, %v1822
      %v2144 = vmul.f32 %v1827, %v1827
      %v2145 = vmul.f32 %v1830, %v1830
      %v2146 = vmul.f32 %v1835, %v1835
      %v2147 = vmul.f32 %v1838, %v1838
      %v2148 = vmul.f32 %v1843, %v1843
      %v2149 = vmul.f32 %v1846, %v1846
      %v2150 = vmul.f32 %v1851, %v1851
      %v2151 = vmul.f32 %v1854, %v1854
      %v2152 = vmul.f32 %v1859, %v1859
      %v2153 = vmul.f32 %v1862, %v1862
      %v2154 = vmul.f32 %v1867, %v1867
      %v2155 = vmul.f32 %v1870, %v1870
      %v2156 = vmul.f32 %v1875, %v1875
      %v2157 = vmul.f32 %v1878, %v1878
      %v2158 = vmul.f32 %v1883, %v1883
      %v2159 = vmul.f32 %v1886, %v1886
      %v2160 = vmul.f32 %v1891, %v1891
      %v2161 = vmul.f32 %v1894, %v1894
      %v2162 = vsel %vm2058, %v2130, 0.0
      %v2163 = vsel %vm2058, %v2131, 0.0
      %v2164 = vadd.f32 %v2162, %v2163
      %v2165 = vsel %vm2058, %v2132, 0.0
      %v2166 = vadd.f32 %v2164, %v2165
      %v2167 = vsel %vm2058, %v2133, 0.0
      %v2168 = vadd.f32 %v2166, %v2167
      %v2169 = vsel %vm2058, %v2134, 0.0
      %v2170 = vadd.f32 %v2168, %v2169
      %v2171 = vsel %vm2058, %v2135, 0.0
      %v2172 = vadd.f32 %v2170, %v2171
      %v2173 = vsel %vm2058, %v2136, 0.0
      %v2174 = vadd.f32 %v2172, %v2173
      %v2175 = vsel %vm2058, %v2137, 0.0
      %v2176 = vadd.f32 %v2174, %v2175
      %v2177 = vsel %vm2058, %v2138, 0.0
      %v2178 = vadd.f32 %v2176, %v2177
      %v2179 = vsel %vm2058, %v2139, 0.0
      %v2180 = vadd.f32 %v2178, %v2179
      %v2181 = vsel %vm2058, %v2140, 0.0
      %v2182 = vadd.f32 %v2180, %v2181
      %v2183 = vsel %vm2058, %v2141, 0.0
      %v2184 = vadd.f32 %v2182, %v2183
      %v2185 = vsel %vm2058, %v2142, 0.0
      %v2186 = vadd.f32 %v2184, %v2185
      %v2187 = vsel %vm2058, %v2143, 0.0
      %v2188 = vadd.f32 %v2186, %v2187
      %v2189 = vsel %vm2058, %v2144, 0.0
      %v2190 = vadd.f32 %v2188, %v2189
      %v2191 = vsel %vm2058, %v2145, 0.0
      %v2192 = vadd.f32 %v2190, %v2191
      %v2193 = vsel %vm2058, %v2146, 0.0
      %v2194 = vadd.f32 %v2192, %v2193
      %v2195 = vsel %vm2058, %v2147, 0.0
      %v2196 = vadd.f32 %v2194, %v2195
      %v2197 = vsel %vm2058, %v2148, 0.0
      %v2198 = vadd.f32 %v2196, %v2197
      %v2199 = vsel %vm2058, %v2149, 0.0
      %v2200 = vadd.f32 %v2198, %v2199
      %v2201 = vsel %vm2058, %v2150, 0.0
      %v2202 = vadd.f32 %v2200, %v2201
      %v2203 = vsel %vm2058, %v2151, 0.0
      %v2204 = vadd.f32 %v2202, %v2203
      %v2205 = vsel %vm2058, %v2152, 0.0
      %v2206 = vadd.f32 %v2204, %v2205
      %v2207 = vsel %vm2058, %v2153, 0.0
      %v2208 = vadd.f32 %v2206, %v2207
      %v2209 = vsel %vm2058, %v2154, 0.0
      %v2210 = vadd.f32 %v2208, %v2209
      %v2211 = vsel %vm2058, %v2155, 0.0
      %v2212 = vadd.f32 %v2210, %v2211
      %v2213 = vsel %vm2058, %v2156, 0.0
      %v2214 = vadd.f32 %v2212, %v2213
      %v2215 = vsel %vm2058, %v2157, 0.0
      %v2216 = vadd.f32 %v2214, %v2215
      %v2217 = vsel %vm2058, %v2158, 0.0
      %v2218 = vadd.f32 %v2216, %v2217
      %v2219 = vsel %vm2058, %v2159, 0.0
      %v2220 = vadd.f32 %v2218, %v2219
      %v2221 = vsel %vm2058, %v2160, 0.0
      %v2222 = vadd.f32 %v2220, %v2221
      %v2223 = vsel %vm2058, %v2161, 0.0
      %v2224 = vadd.f32 %v2222, %v2223
      %v2225 = vrot.slane %v2224, 4
      %v2226 = vadd.f32 %v2224, %v2225
      %v2227 = vrot.slane %v2226, 2
      %v2228 = vadd.f32 %v2226, %v2227
      %v2229 = vrot.slane %v2228, 1
      %v2230 = vadd.f32 %v2228, %v2229
      %2231 = vst.msk [vmem:[%s416] sm:$0x1] %vm2128, %v2230
      %s2232 = smul.u32 16, %s25
      %p2233 = scmp.lt.s32.totalorder %s24, 1
      %s2234 = scalar_select %p2233, %s24, 1
      %p2235 = scmp.lt.s32.totalorder %s2232, 15
      %s2236 = scalar_select %p2235, %s2232, 15
      %s2237 = smul.addr %s2236, 2
      %s2238 = smul.addr %s2234, 32
      %s2239 = sadd.s32 %s2237, %s2238
      %s2240 = smul.addr %s2239, 4
      %s2241 = scalar_lea.vmem %s6, %s2240
      %p2242 = scmp.lt.s32.totalorder %s24, 1
      %s2243 = scalar_select %p2242, %s24, 1
      %p2244 = scmp.lt.s32.totalorder %s25, 0
      %s2245 = scalar_select %p2244, %s25, 0
      %s2246 = sadd.s32 %s2245, %s2243
      %s2247 = scalar_lea.vmem %s7, %s2246
      %p2248 = scmp.lt.s32.totalorder %s24, 1
      %s2249 = scalar_select %p2248, %s24, 1
      %p2250 = scmp.lt.s32.totalorder %s25, 0
      %s2251 = scalar_select %p2250, %s25, 0
      %s2252 = sadd.s32 %s2251, %s2249
      %s2253 = scalar_lea.vmem %s8, %s2252
      // Predicated region
      $region45: #{conv_block_forward.3} parent=43 // pred_check
        %p2254 = pneg %p192
      $region46: #{conv_block_forward.3} parent=43 // pred_check_branch
        %2256 = sbr.rel (%p2254) target = $region48
      $region47: #{conv_block_forward.3} parent=43 // pred_region
        %s2257 = smul.u32 16, %s25
      $region48: #{conv_block_forward.3} parent=43 // pred_fallthru
        _
      // Predicated region
      $region49: #{conv_block_forward.3} parent=43 // pred_check
        %p2258 = pneg %p220
      $region50: #{conv_block_forward.3} parent=43 // pred_check_branch
        %2260 = sbr.rel (%p2258) target = $region52
      $region51: #{conv_block_forward.3} parent=43 // pred_region
        _
      $region52: #{conv_block_forward.3} parent=43 // pred_fallthru
        _
      // Predicated region
      $region53: #{conv_block_forward.3} parent=43 // pred_check
        %p2261 = pneg %p248
      $region54: #{conv_block_forward.3} parent=43 // pred_check_branch
        %2263 = sbr.rel (%p2261) target = $region56
      $region55: #{conv_block_forward.3} parent=43 // pred_region
        _
      $region56: #{conv_block_forward.3} parent=43 // pred_fallthru
        _
    $region44: #{conv_block_forward.3} parent=5 // pred_fallthru
      _
    %p2264 = scmp.le.s32.totalorder 2, %s15
    // Predicated region
    $region57: #{conv_block_forward.3} parent=5 // pred_check
      %p2265 = pneg %p2264
    $region58: #{conv_block_forward.3} parent=5 // pred_check_branch
      %2267 = sbr.rel (%p2265) target = $region60
    $region59: #{conv_block_forward.3} parent=5 // pred_region
      %s2268 = ssub.s32 %s15, 2
      // Predicated region
      $region61: #{conv_block_forward.3} parent=59 // pred_check
        %p2269 = pneg %p198
      $region62: #{conv_block_forward.3} parent=59 // pred_check_branch
        %2271 = sbr.rel (%p2269) target = $region64
      $region63: #{conv_block_forward.3} parent=59 // pred_region
        %s2272 = smul.u32 16, %s27
        %p2273 = scmp.lt.s32.totalorder %s26, 1
        %s2274 = scalar_select %p2273, %s26, 1
        %p2275 = scmp.lt.s32.totalorder %s2272, 15
        %s2276 = scalar_select %p2275, %s2272, 15
        %s2277 = smul.addr %s2276, 2
        %s2278 = smul.addr %s2274, 32
        %s2279 = sadd.s32 %s2277, %s2278
        %s2280 = smul.addr %s2279, 4
        %s2281 = scalar_lea.vmem %s6, %s2280
      $region64: #{conv_block_forward.3} parent=59 // pred_fallthru
        _
      // Predicated region
      $region65: #{conv_block_forward.3} parent=59 // pred_check
        %p2282 = pneg %p226
      $region66: #{conv_block_forward.3} parent=59 // pred_check_branch
        %2284 = sbr.rel (%p2282) target = $region68
      $region67: #{conv_block_forward.3} parent=59 // pred_region
        %p2285 = scmp.lt.s32.totalorder %s26, 1
        %s2286 = scalar_select %p2285, %s26, 1
        %p2287 = scmp.lt.s32.totalorder %s27, 0
        %s2288 = scalar_select %p2287, %s27, 0
        %s2289 = sadd.s32 %s2288, %s2286
        %s2290 = scalar_lea.vmem %s7, %s2289
      $region68: #{conv_block_forward.3} parent=59 // pred_fallthru
        _
      // Predicated region
      $region69: #{conv_block_forward.3} parent=59 // pred_check
        %p2291 = pneg %p254
      $region70: #{conv_block_forward.3} parent=59 // pred_check_branch
        %2293 = sbr.rel (%p2291) target = $region72
      $region71: #{conv_block_forward.3} parent=59 // pred_region
        %p2294 = scmp.lt.s32.totalorder %s26, 1
        %s2295 = scalar_select %p2294, %s26, 1
        %p2296 = scmp.lt.s32.totalorder %s27, 0
        %s2297 = scalar_select %p2296, %s27, 0
        %s2298 = sadd.s32 %s2297, %s2295
        %s2299 = scalar_lea.vmem %s8, %s2298
      $region72: #{conv_block_forward.3} parent=59 // pred_fallthru
        _
    $region60: #{conv_block_forward.3} parent=5 // pred_fallthru
      _
  $region6: #{conv_block_forward.3} parent=0 // loop_footer
    %s19 = sadd.s32 1, %s15
  $region7: #{conv_block_forward.3} parent=0 // loop_footer_branch
    %14 = sbr.rel target = $region3
  $region8: #{conv_block_forward.3} parent=0 // loop_exit
    _

</llo_original>
